<compile_context>
chip_gen: v5e
topology: v5e:2x2
jax: 0.10.0
libtpu: 0.0.40
codegen_flags: <defaults>
</compile_context>

<pallas_src>
import jax
import jax.numpy as jnp
from jax.experimental import pallas as pl
from jax.experimental.pallas import tpu as pltpu


# --------------------------------------------------------------------------
# Kernel
# --------------------------------------------------------------------------
def _daa_kernel(x_ref, px_ref, py_ref, tx_ref, ty_ref, w1_ref, w2_ref,
                bc_ref, o_ref):
    f32 = jnp.float32
    hi = jax.lax.Precision.HIGHEST

    x = x_ref[...].astype(f32)                       # (B, C, HW) lane-dense
    _, c, _ = x.shape

    px = px_ref[...]                                 # (HW, H) indicator
    py = py_ref[...]                                 # (HW, W) indicator
    h = px.shape[1]
    w = py.shape[1]
    mip = w1_ref.shape[1]
    bc = bc_ref[...]                                 # (6, Lmax) packed biases

    # ---- pools ------------------------------------------------------------
    csum = jnp.sum(x, axis=1)                        # (B, HW)  sum over C
    pool_c = jnp.mean(x, axis=2)                     # (B, C)   mean over HW
    # sum over (C, W) / (C, H) via MXU (mean factor folded into T1 below)
    sum_x = jnp.dot(csum, px, precision=hi, preferred_element_type=f32)  # (B,H)
    sum_y = jnp.dot(csum, py, precision=hi, preferred_element_type=f32)  # (B,W)

    # ---- H gate: conv7(+BN folded) -> ReLU -> conv7(+bias) -> sigmoid -----
    t = jnp.dot(sum_x, tx_ref[0], precision=hi, preferred_element_type=f32)
    t = jnp.maximum(t + bc[2:3, :h], 0.0)
    t = jnp.dot(t, tx_ref[1], precision=hi, preferred_element_type=f32)
    gate_x = jax.nn.sigmoid(t + bc[3:4, :h])         # (B, H)

    # ---- W gate ------------------------------------------------------------
    t = jnp.dot(sum_y, ty_ref[0], precision=hi, preferred_element_type=f32)
    t = jnp.maximum(t + bc[4:5, :w], 0.0)
    t = jnp.dot(t, ty_ref[1], precision=hi, preferred_element_type=f32)
    gate_y = jax.nn.sigmoid(t + bc[5:6, :w])         # (B, W)

    # ---- channel gate: 1x1 convs as matmuls (BN folded into w1) -----------
    t = jnp.dot(pool_c, w1_ref[...], precision=hi, preferred_element_type=f32)
    t = jnp.maximum(t + bc[0:1, :mip], 0.0)
    t = jnp.dot(t, w2_ref[...], precision=hi, preferred_element_type=f32)
    gate_c = jax.nn.sigmoid(t + bc[1:2, :c])         # (B, C)

    # ---- expand spatial gates back to the lane-dense HW axis (MXU) --------
    dn = (((1,), (1,)), ((), ()))
    gx = jax.lax.dot_general(gate_x, px, dn, precision=hi,
                             preferred_element_type=f32)        # (B, HW)
    gy = jax.lax.dot_general(gate_y, py, dn, precision=hi,
                             preferred_element_type=f32)        # (B, HW)
    g_sp = gx * gy                                              # (B, HW)

    out = x * g_sp[:, None, :] * gate_c[:, :, None]             # (B, C, HW)
    o_ref[...] = out.astype(o_ref.dtype)


# --------------------------------------------------------------------------
# Wrapper
# --------------------------------------------------------------------------
def _pick_block_batch(n, c, hw, itemsize, vmem_budget_bytes):
    per_image = c * hw * itemsize
    # in + out, double buffered, ~2 MiB headroom for weights / temporaries
    cap = max(1, int((vmem_budget_bytes - (2 << 20)) // (4 * per_image)))
    b = min(cap, n)
    if n >= 2:                       # keep >=2 grid steps (v7x megacore)
        b = min(b, pl.cdiv(n, 2))
    return max(1, b)


def daa_forward(x, folded, *, vmem_budget_bytes=32 << 20):
    """x: (N, C, H, W); folded: dict from fold_params()."""
    n, c, h, w = x.shape
    hw = h * w
    x2 = x.reshape(n, c, hw)         # free, row-major merge of last two dims

    itemsize = jnp.dtype(x.dtype).itemsize
    bblk = _pick_block_batch(n, c, hw, itemsize, vmem_budget_bytes)
    grid = (pl.cdiv(n, bblk),)

    def const(arr):
        nd = arr.ndim
        return pl.BlockSpec(arr.shape, lambda i, _nd=nd: (0,) * _nd)

    out2 = pl.pallas_call(
        _daa_kernel,
        out_shape=jax.ShapeDtypeStruct((n, c, hw), x.dtype),
        grid_spec=pltpu.PrefetchScalarGridSpec(
            num_scalar_prefetch=0,
            grid=grid,
            in_specs=[
                pl.BlockSpec((bblk, c, hw), lambda i: (i, 0, 0)),   # x slab
                const(folded["px"]),      # (HW, H) pooling/expansion matrix
                const(folded["py"]),      # (HW, W)
                const(folded["tx"]),      # (2, H, H) Toeplitz convs (H branch)
                const(folded["ty"]),      # (2, W, W) Toeplitz convs (W branch)
                const(folded["w1"]),      # (C, mip)  1x1 conv (BN folded)
                const(folded["w2"]),      # (mip, C)  1x1 conv
                const(folded["bc"]),      # (6, Lmax) packed biases
            ],
            out_specs=pl.BlockSpec((bblk, c, hw), lambda i: (i, 0, 0)),
        ),
        compiler_params=pltpu.CompilerParams(
            dimension_semantics=("parallel",),
            vmem_limit_bytes=vmem_budget_bytes,
        ),
    )(x2, folded["px"], folded["py"], folded["tx"], folded["ty"],
      folded["w1"], folded["w2"], folded["bc"])
    return out2.reshape(n, c, h, w)


# --------------------------------------------------------------------------
# Parameter construction / folding (wrapper-side, one-time)
# --------------------------------------------------------------------------
def _toeplitz(k, length):
    """T[m, i] = k[m - i + pad]  ->  cross-correlation(p, k) == p @ T."""
    ks = k.shape[0]
    pad = ks // 2
    m = jnp.arange(length)[:, None]
    i = jnp.arange(length)[None, :]
    d = m - i + pad
    valid = (d >= 0) & (d < ks)
    return jnp.where(valid, k[jnp.clip(d, 0, ks - 1)], 0.0).astype(jnp.float32)


def fold_params(raw, c, h, w, eps=1e-5):
    def bn_fold(bn):
        s = bn["gamma"] / jnp.sqrt(bn["var"] + eps)
        return s, bn["beta"] - bn["mean"] * s

    sx, shx = bn_fold(raw["bnx"])               # scalars
    sy, shy = bn_fold(raw["bny"])               # scalars
    sc, shc = bn_fold(raw["bnc"])               # (mip,)

    hw = h * w
    mip = raw["w1c"].shape[0]

    # Toeplitz conv matrices; mean factor and BN scale folded into the first.
    t1x = _toeplitz(raw["k1x"], h) * (sx / (c * w))
    t2x = _toeplitz(raw["k2x"], h)
    t1y = _toeplitz(raw["k1y"], w) * (sy / (c * h))
    t2y = _toeplitz(raw["k2y"], w)

    s = jnp.arange(hw)
    px = (s[:, None] // w == jnp.arange(h)[None, :]).astype(jnp.float32)  # (hw,h)
    py = (s[:, None] % w == jnp.arange(w)[None, :]).astype(jnp.float32)   # (hw,w)

    w1f = (sc[:, None] * raw["w1c"]).T          # (c, mip), BN scale folded
    w2f = raw["w2c"].T                          # (mip, c)

    lmax = max(mip, c, h, w)

    def row(v):
        r = jnp.zeros((lmax,), jnp.float32)
        return r.at[:v.shape[0]].set(v)

    bc = jnp.stack([
        row(shc),                                # [0] channel BN shift (mip,)
        row(raw["b2c"]),                         # [1] channel conv2 bias (c,)
        row(jnp.full((h,), shx)),                # [2] H-branch BN shift
        row(jnp.full((h,), raw["b2x"])),         # [3] H-branch conv2 bias
        row(jnp.full((w,), shy)),                # [4] W-branch BN shift
        row(jnp.full((w,), raw["b2y"])),         # [5] W-branch conv2 bias
    ])                                           # (6, lmax)

    return dict(px=px, py=py,
                tx=jnp.stack([t1x, t2x]), ty=jnp.stack([t1y, t2y]),
                w1=w1f, w2=w2f, bc=bc)


def init_raw_params(key, planes, k_size=7, ratio=4):
    mip = max(8, planes // ratio)
    ks = list(jax.random.split(key, 21))

    def rnd(i, shape, scale=0.1):
        return scale * jax.random.normal(ks[i], shape, jnp.float32)

    def bn(i, shape):
        return dict(gamma=1.0 + rnd(i, shape), beta=rnd(i + 1, shape),
                    mean=rnd(i + 2, shape),
                    var=1.0 + jnp.abs(rnd(i + 3, shape)))

    return dict(
        k1x=rnd(0, (k_size,), 0.3), bnx=bn(1, ()),
        k2x=rnd(5, (k_size,), 0.3), b2x=rnd(6, ()),
        k1y=rnd(7, (k_size,), 0.3), bny=bn(8, ()),
        k2y=rnd(12, (k_size,), 0.3), b2y=rnd(13, ()),
        w1c=rnd(14, (mip, planes), 0.2), bnc=bn(15, (mip,)),
        w2c=rnd(19, (planes, mip), 0.2), b2c=rnd(20, (planes,)),
    )


# --------------------------------------------------------------------------
# Pure-JAX reference (mirrors the PyTorch forward, BN in eval mode)
# --------------------------------------------------------------------------
def _conv1d_same(p, k):
    """Cross-correlation with zero 'same' padding, PyTorch Conv2d convention."""
    ksz = k.shape[0]
    pad = ksz // 2
    length = p.shape[1]
    pp = jnp.pad(p, ((0, 0), (pad, pad)))
    out = jnp.zeros_like(p)
    for j in range(ksz):
        out = out + k[j] * pp[:, j:j + length]
    return out


def daa_reference(x, raw, eps=1e-5):
    hi = jax.lax.Precision.HIGHEST

    def bn_fold(bn):
        s = bn["gamma"] / jnp.sqrt(bn["var"] + eps)
        return s, bn["beta"] - bn["mean"] * s

    out = x
    # H branch
    sx, shx = bn_fold(raw["bnx"])
    p = x.mean(axis=(1, 3))                                     # (n, h)
    t = _conv1d_same(p, raw["k1x"]) * sx + shx
    t = _conv1d_same(jnp.maximum(t, 0.0), raw["k2x"]) + raw["b2x"]
    out = out * jax.nn.sigmoid(t)[:, None, :, None]
    # W branch
    sy, shy = bn_fold(raw["bny"])
    p = x.mean(axis=(1, 2))                                     # (n, w)
    t = _conv1d_same(p, raw["k1y"]) * sy + shy
    t = _conv1d_same(jnp.maximum(t, 0.0), raw["k2y"]) + raw["b2y"]
    out = out * jax.nn.sigmoid(t)[:, None, None, :]
    # C branch
    sc, shc = bn_fold(raw["bnc"])
    p = x.mean(axis=(2, 3))                                     # (n, c)
    t = jnp.dot(p, raw["w1c"].T, precision=hi) * sc[None, :] + shc[None, :]
    t = jnp.dot(jnp.maximum(t, 0.0), raw["w2c"].T, precision=hi) + raw["b2c"][None, :]
    out = out * jax.nn.sigmoid(t)[:, :, None, None]
    return out


# --------------------------------------------------------------------------
if __name__ == "__main__":
    key = jax.random.PRNGKey(0)
    kx, kp = jax.random.split(key)

    # planes=32, ratio=4 -> mip = max(8, 8) = 8 ; H*W = 256 (lane-dense)
    N, C, H, W = 4, 32, 16, 16
    x = jax.random.normal(kx, (N, C, H, W), jnp.float32)

    raw = init_raw_params(kp, planes=C, k_size=7, ratio=4)
    folded = fold_params(raw, C, H, W)

    out = jax.block_until_ready(daa_forward(x, folded))
    ref = jax.block_until_ready(daa_reference(x, raw))

    assert out.shape == (N, C, H, W)
    err = float(jnp.max(jnp.abs(out - ref)))
    assert err < 1e-4, f"max abs err = {err}"
    print("KERNEL_OK")
</pallas_src>

<mosaic_0001>
module attributes {stable_mosaic.version = 11 : i64} {
  func.func @_daa_kernel(%arg0: i32, %arg1: memref<2x32x256xf32, #tpu.memory_space<vmem>>, %arg2: memref<256x16xf32, #tpu.memory_space<vmem>>, %arg3: memref<256x16xf32, #tpu.memory_space<vmem>>, %arg4: memref<2x16x16xf32, #tpu.memory_space<vmem>>, %arg5: memref<2x16x16xf32, #tpu.memory_space<vmem>>, %arg6: memref<32x8xf32, #tpu.memory_space<vmem>>, %arg7: memref<8x32xf32, #tpu.memory_space<vmem>>, %arg8: memref<6x32xf32, #tpu.memory_space<vmem>>, %arg9: memref<2x32x256xf32, #tpu.memory_space<vmem>>) attributes {dimension_semantics = [#tpu.dimension_semantics<parallel>], iteration_bounds = array<i64: 2>, scalar_prefetch = 0 : i64, scratch_operands = 0 : i64, tpu.core_type = #tpu.core_type<tc>, window_params = [{transform_indices = @transform_0, window_bounds = array<i64: 2, 32, 256>}, {pipeline_mode = #tpu.pipeline_mode<synchronous>, transform_indices = @transform_1, window_bounds = array<i64: 256, 16>}, {pipeline_mode = #tpu.pipeline_mode<synchronous>, transform_indices = @transform_2, window_bounds = array<i64: 256, 16>}, {pipeline_mode = #tpu.pipeline_mode<synchronous>, transform_indices = @transform_3, window_bounds = array<i64: 2, 16, 16>}, {pipeline_mode = #tpu.pipeline_mode<synchronous>, transform_indices = @transform_4, window_bounds = array<i64: 2, 16, 16>}, {pipeline_mode = #tpu.pipeline_mode<synchronous>, transform_indices = @transform_5, window_bounds = array<i64: 32, 8>}, {pipeline_mode = #tpu.pipeline_mode<synchronous>, transform_indices = @transform_6, window_bounds = array<i64: 8, 32>}, {pipeline_mode = #tpu.pipeline_mode<synchronous>, transform_indices = @transform_7, window_bounds = array<i64: 6, 32>}, {transform_indices = @transform_8, window_bounds = array<i64: 2, 32, 256>}]} {
    %c0 = arith.constant 0 : index
    %c0_0 = arith.constant 0 : index
    %c0_1 = arith.constant 0 : index
    %0 = vector.load %arg1[%c0, %c0_0, %c0_1] : memref<2x32x256xf32, #tpu.memory_space<vmem>>, vector<2x32x256xf32>
    %c0_2 = arith.constant 0 : index
    %c0_3 = arith.constant 0 : index
    %1 = vector.load %arg2[%c0_2, %c0_3] : memref<256x16xf32, #tpu.memory_space<vmem>>, vector<256x16xf32>
    %c0_4 = arith.constant 0 : index
    %c0_5 = arith.constant 0 : index
    %2 = vector.load %arg3[%c0_4, %c0_5] : memref<256x16xf32, #tpu.memory_space<vmem>>, vector<256x16xf32>
    %c0_6 = arith.constant 0 : index
    %c0_7 = arith.constant 0 : index
    %3 = vector.load %arg8[%c0_6, %c0_7] : memref<6x32xf32, #tpu.memory_space<vmem>>, vector<6x32xf32>
    %cst = arith.constant dense<0.000000e+00> : vector<2x256xf32>
    %4 = vector.multi_reduction <add>, %0, %cst [1] : vector<2x32x256xf32> to vector<2x256xf32>
    %cst_8 = arith.constant dense<0.000000e+00> : vector<2x32xf32>
    %5 = vector.multi_reduction <add>, %0, %cst_8 [2] : vector<2x32x256xf32> to vector<2x32xf32>
    %cst_9 = arith.constant 2.560000e+02 : f32
    %6 = vector.broadcast %cst_9 : f32 to vector<2x32xf32>
    %7 = arith.divf %5, %6 : vector<2x32xf32>
    %cst_10 = arith.constant dense<0.000000e+00> : vector<2x16xf32>
    %8 = tpu.matmul %4, %1, %cst_10 {dimension_numbers = #tpu.dot_dimension_numbers<[1], [0], [0], [1], [0, 0, 1, 1], [], []>, precision = #tpu.contract_precision<fp32>} : vector<2x256xf32>, vector<256x16xf32>, vector<2x16xf32> -> vector<2x16xf32>
    %cst_11 = arith.constant dense<0.000000e+00> : vector<2x16xf32>
    %9 = tpu.matmul %4, %2, %cst_11 {dimension_numbers = #tpu.dot_dimension_numbers<[1], [0], [0], [1], [0, 0, 1, 1], [], []>, precision = #tpu.contract_precision<fp32>} : vector<2x256xf32>, vector<256x16xf32>, vector<2x16xf32> -> vector<2x16xf32>
    %c0_12 = arith.constant 0 : index
    %c0_13 = arith.constant 0 : index
    %c0_14 = arith.constant 0 : index
    %10 = vector.load %arg4[%c0_12, %c0_13, %c0_14] : memref<2x16x16xf32, #tpu.memory_space<vmem>>, vector<1x16x16xf32>
    %11 = vector.shape_cast %10 : vector<1x16x16xf32> to vector<16x16xf32>
    %cst_15 = arith.constant dense<0.000000e+00> : vector<2x16xf32>
    %12 = tpu.matmul %8, %11, %cst_15 {dimension_numbers = #tpu.dot_dimension_numbers<[1], [0], [0], [1], [0, 0, 1, 1], [], []>, precision = #tpu.contract_precision<fp32>} : vector<2x16xf32>, vector<16x16xf32>, vector<2x16xf32> -> vector<2x16xf32>
    %13 = vector.extract_strided_slice %3 {offsets = [2, 0], sizes = [1, 16], strides = [1, 1]} : vector<6x32xf32> to vector<1x16xf32>
    %14 = vector.broadcast %13 : vector<1x16xf32> to vector<2x16xf32>
    %15 = arith.addf %12, %14 : vector<2x16xf32>
    %cst_16 = arith.constant 0.000000e+00 : f32
    %16 = vector.broadcast %cst_16 : f32 to vector<2x16xf32>
    %17 = arith.maximumf %15, %16 : vector<2x16xf32>
    %c1 = arith.constant 1 : index
    %c0_17 = arith.constant 0 : index
    %c0_18 = arith.constant 0 : index
    %18 = vector.load %arg4[%c1, %c0_17, %c0_18] : memref<2x16x16xf32, #tpu.memory_space<vmem>>, vector<1x16x16xf32>
    %19 = vector.shape_cast %18 : vector<1x16x16xf32> to vector<16x16xf32>
    %cst_19 = arith.constant dense<0.000000e+00> : vector<2x16xf32>
    %20 = tpu.matmul %17, %19, %cst_19 {dimension_numbers = #tpu.dot_dimension_numbers<[1], [0], [0], [1], [0, 0, 1, 1], [], []>, precision = #tpu.contract_precision<fp32>} : vector<2x16xf32>, vector<16x16xf32>, vector<2x16xf32> -> vector<2x16xf32>
    %21 = vector.extract_strided_slice %3 {offsets = [3, 0], sizes = [1, 16], strides = [1, 1]} : vector<6x32xf32> to vector<1x16xf32>
    %22 = vector.broadcast %21 : vector<1x16xf32> to vector<2x16xf32>
    %23 = arith.addf %20, %22 : vector<2x16xf32>
    %24 = arith.negf %23 : vector<2x16xf32>
    %25 = math.exp %24 : vector<2x16xf32>
    %cst_20 = arith.constant 1.000000e+00 : f32
    %26 = vector.broadcast %cst_20 : f32 to vector<2x16xf32>
    %27 = arith.addf %26, %25 : vector<2x16xf32>
    %28 = arith.divf %26, %27 : vector<2x16xf32>
    %c0_21 = arith.constant 0 : index
    %c0_22 = arith.constant 0 : index
    %c0_23 = arith.constant 0 : index
    %29 = vector.load %arg5[%c0_21, %c0_22, %c0_23] : memref<2x16x16xf32, #tpu.memory_space<vmem>>, vector<1x16x16xf32>
    %30 = vector.shape_cast %29 : vector<1x16x16xf32> to vector<16x16xf32>
    %cst_24 = arith.constant dense<0.000000e+00> : vector<2x16xf32>
    %31 = tpu.matmul %9, %30, %cst_24 {dimension_numbers = #tpu.dot_dimension_numbers<[1], [0], [0], [1], [0, 0, 1, 1], [], []>, precision = #tpu.contract_precision<fp32>} : vector<2x16xf32>, vector<16x16xf32>, vector<2x16xf32> -> vector<2x16xf32>
    %32 = vector.extract_strided_slice %3 {offsets = [4, 0], sizes = [1, 16], strides = [1, 1]} : vector<6x32xf32> to vector<1x16xf32>
    %33 = vector.broadcast %32 : vector<1x16xf32> to vector<2x16xf32>
    %34 = arith.addf %31, %33 : vector<2x16xf32>
    %cst_25 = arith.constant 0.000000e+00 : f32
    %35 = vector.broadcast %cst_25 : f32 to vector<2x16xf32>
    %36 = arith.maximumf %34, %35 : vector<2x16xf32>
    %c1_26 = arith.constant 1 : index
    %c0_27 = arith.constant 0 : index
    %c0_28 = arith.constant 0 : index
    %37 = vector.load %arg5[%c1_26, %c0_27, %c0_28] : memref<2x16x16xf32, #tpu.memory_space<vmem>>, vector<1x16x16xf32>
    %38 = vector.shape_cast %37 : vector<1x16x16xf32> to vector<16x16xf32>
    %cst_29 = arith.constant dense<0.000000e+00> : vector<2x16xf32>
    %39 = tpu.matmul %36, %38, %cst_29 {dimension_numbers = #tpu.dot_dimension_numbers<[1], [0], [0], [1], [0, 0, 1, 1], [], []>, precision = #tpu.contract_precision<fp32>} : vector<2x16xf32>, vector<16x16xf32>, vector<2x16xf32> -> vector<2x16xf32>
    %40 = vector.extract_strided_slice %3 {offsets = [5, 0], sizes = [1, 16], strides = [1, 1]} : vector<6x32xf32> to vector<1x16xf32>
    %41 = vector.broadcast %40 : vector<1x16xf32> to vector<2x16xf32>
    %42 = arith.addf %39, %41 : vector<2x16xf32>
    %43 = arith.negf %42 : vector<2x16xf32>
    %44 = math.exp %43 : vector<2x16xf32>
    %cst_30 = arith.constant 1.000000e+00 : f32
    %45 = vector.broadcast %cst_30 : f32 to vector<2x16xf32>
    %46 = arith.addf %45, %44 : vector<2x16xf32>
    %47 = arith.divf %45, %46 : vector<2x16xf32>
    %c0_31 = arith.constant 0 : index
    %c0_32 = arith.constant 0 : index
    %48 = vector.load %arg6[%c0_31, %c0_32] : memref<32x8xf32, #tpu.memory_space<vmem>>, vector<32x8xf32>
    %cst_33 = arith.constant dense<0.000000e+00> : vector<2x8xf32>
    %49 = tpu.matmul %7, %48, %cst_33 {dimension_numbers = #tpu.dot_dimension_numbers<[1], [0], [0], [1], [0, 0, 1, 1], [], []>, precision = #tpu.contract_precision<fp32>} : vector<2x32xf32>, vector<32x8xf32>, vector<2x8xf32> -> vector<2x8xf32>
    %50 = vector.extract_strided_slice %3 {offsets = [0, 0], sizes = [1, 8], strides = [1, 1]} : vector<6x32xf32> to vector<1x8xf32>
    %51 = vector.broadcast %50 : vector<1x8xf32> to vector<2x8xf32>
    %52 = arith.addf %49, %51 : vector<2x8xf32>
    %cst_34 = arith.constant 0.000000e+00 : f32
    %53 = vector.broadcast %cst_34 : f32 to vector<2x8xf32>
    %54 = arith.maximumf %52, %53 : vector<2x8xf32>
    %c0_35 = arith.constant 0 : index
    %c0_36 = arith.constant 0 : index
    %55 = vector.load %arg7[%c0_35, %c0_36] : memref<8x32xf32, #tpu.memory_space<vmem>>, vector<8x32xf32>
    %cst_37 = arith.constant dense<0.000000e+00> : vector<2x32xf32>
    %56 = tpu.matmul %54, %55, %cst_37 {dimension_numbers = #tpu.dot_dimension_numbers<[1], [0], [0], [1], [0, 0, 1, 1], [], []>, precision = #tpu.contract_precision<fp32>} : vector<2x8xf32>, vector<8x32xf32>, vector<2x32xf32> -> vector<2x32xf32>
    %57 = vector.extract_strided_slice %3 {offsets = [1, 0], sizes = [1, 32], strides = [1, 1]} : vector<6x32xf32> to vector<1x32xf32>
    %58 = vector.broadcast %57 : vector<1x32xf32> to vector<2x32xf32>
    %59 = arith.addf %56, %58 : vector<2x32xf32>
    %60 = arith.negf %59 : vector<2x32xf32>
    %61 = math.exp %60 : vector<2x32xf32>
    %cst_38 = arith.constant 1.000000e+00 : f32
    %62 = vector.broadcast %cst_38 : f32 to vector<2x32xf32>
    %63 = arith.addf %62, %61 : vector<2x32xf32>
    %64 = arith.divf %62, %63 : vector<2x32xf32>
    %cst_39 = arith.constant dense<0.000000e+00> : vector<2x256xf32>
    %65 = tpu.matmul %28, %1, %cst_39 {dimension_numbers = #tpu.dot_dimension_numbers<[1], [1], [0], [0], [0, 0, 1, 0], [], []>, precision = #tpu.contract_precision<fp32>} : vector<2x16xf32>, vector<256x16xf32>, vector<2x256xf32> -> vector<2x256xf32>
    %cst_40 = arith.constant dense<0.000000e+00> : vector<2x256xf32>
    %66 = tpu.matmul %47, %2, %cst_40 {dimension_numbers = #tpu.dot_dimension_numbers<[1], [1], [0], [0], [0, 0, 1, 0], [], []>, precision = #tpu.contract_precision<fp32>} : vector<2x16xf32>, vector<256x16xf32>, vector<2x256xf32> -> vector<2x256xf32>
    %67 = arith.mulf %65, %66 : vector<2x256xf32>
    %68 = vector.shape_cast %67 : vector<2x256xf32> to vector<2x1x256xf32>
    %69 = vector.broadcast %68 : vector<2x1x256xf32> to vector<2x32x256xf32>
    %70 = arith.mulf %0, %69 : vector<2x32x256xf32>
    %71 = vector.shape_cast %64 : vector<2x32xf32> to vector<2x32x1xf32>
    %72 = vector.broadcast %71 : vector<2x32x1xf32> to vector<2x32x256xf32>
    %73 = arith.mulf %70, %72 : vector<2x32x256xf32>
    %c0_41 = arith.constant 0 : index
    %c0_42 = arith.constant 0 : index
    %c0_43 = arith.constant 0 : index
    %74 = vector.load %arg9[%c0_41, %c0_42, %c0_43] : memref<2x32x256xf32, #tpu.memory_space<vmem>>, vector<2x32x256xf32>
    tpu.vector_store %arg9[%c0_41, %c0_42, %c0_43], %73 {strides = array<i32>} : memref<2x32x256xf32, #tpu.memory_space<vmem>>, vector<2x32x256xf32>,
    return
  }
  func.func @transform_0(%arg0: i32) -> (i32, i32, i32) {
    %c0_i32 = arith.constant 0 : i32
    %c0_i32_0 = arith.constant 0 : i32
    %c0_i32_1 = arith.constant 0 : i32
    return %arg0, %c0_i32, %c0_i32_0 : i32, i32, i32
  }
  func.func @transform_1(%arg0: i32) -> (i32, i32) {
    %c0_i32 = arith.constant 0 : i32
    %c0_i32_0 = arith.constant 0 : i32
    %c0_i32_1 = arith.constant 0 : i32
    return %c0_i32, %c0_i32_0 : i32, i32
  }
  func.func @transform_2(%arg0: i32) -> (i32, i32) {
    %c0_i32 = arith.constant 0 : i32
    %c0_i32_0 = arith.constant 0 : i32
    %c0_i32_1 = arith.constant 0 : i32
    return %c0_i32, %c0_i32_0 : i32, i32
  }
  func.func @transform_3(%arg0: i32) -> (i32, i32, i32) {
    %c0_i32 = arith.constant 0 : i32
    %c0_i32_0 = arith.constant 0 : i32
    %c0_i32_1 = arith.constant 0 : i32
    %c0_i32_2 = arith.constant 0 : i32
    return %c0_i32, %c0_i32_0, %c0_i32_1 : i32, i32, i32
  }
  func.func @transform_4(%arg0: i32) -> (i32, i32, i32) {
    %c0_i32 = arith.constant 0 : i32
    %c0_i32_0 = arith.constant 0 : i32
    %c0_i32_1 = arith.constant 0 : i32
    %c0_i32_2 = arith.constant 0 : i32
    return %c0_i32, %c0_i32_0, %c0_i32_1 : i32, i32, i32
  }
  func.func @transform_5(%arg0: i32) -> (i32, i32) {
    %c0_i32 = arith.constant 0 : i32
    %c0_i32_0 = arith.constant 0 : i32
    %c0_i32_1 = arith.constant 0 : i32
    return %c0_i32, %c0_i32_0 : i32, i32
  }
  func.func @transform_6(%arg0: i32) -> (i32, i32) {
    %c0_i32 = arith.constant 0 : i32
    %c0_i32_0 = arith.constant 0 : i32
    %c0_i32_1 = arith.constant 0 : i32
    return %c0_i32, %c0_i32_0 : i32, i32
  }
  func.func @transform_7(%arg0: i32) -> (i32, i32) {
    %c0_i32 = arith.constant 0 : i32
    %c0_i32_0 = arith.constant 0 : i32
    %c0_i32_1 = arith.constant 0 : i32
    return %c0_i32, %c0_i32_0 : i32, i32
  }
  func.func @transform_8(%arg0: i32) -> (i32, i32, i32) {
    %c0_i32 = arith.constant 0 : i32
    %c0_i32_0 = arith.constant 0 : i32
    %c0_i32_1 = arith.constant 0 : i32
    return %arg0, %c0_i32, %c0_i32_0 : i32, i32, i32
  }
}

</mosaic_0001>

<llo_original>
// kernel: tpu_custom_call.1
$region0: #{tpu_custom_call.1}
  #allocation0 [shape = 'u32[]', space=smem, size = 0x4, offset = 0x4, fixed_abs, tag = 'smem constant byte address 0x4 - core index']
  #allocation1 [shape = 'u32[72,128]{1,0:T(1,128)}', space=vmem, size = 0x9000, scoped, tag = 'internal scratch']
  %s0 = inlined_call_operand.vmem [shape: f32[4,32,256], index: 0, kind: input, shape index: {}]
  %s1 = inlined_call_operand.vmem [shape: f32[256,16], index: 1, kind: input, shape index: {}]
  %s2 = inlined_call_operand.vmem [shape: f32[256,16], index: 2, kind: input, shape index: {}]
  %s3 = inlined_call_operand.vmem [shape: f32[2,16,16], index: 3, kind: input, shape index: {}]
  %s4 = inlined_call_operand.vmem [shape: f32[2,16,16], index: 4, kind: input, shape index: {}]
  %s5 = inlined_call_operand.vmem [shape: f32[32,8], index: 5, kind: input, shape index: {}]
  %s6 = inlined_call_operand.vmem [shape: f32[8,32], index: 6, kind: input, shape index: {}]
  %s7 = inlined_call_operand.vmem [shape: f32[6,32], index: 7, kind: input, shape index: {}]
  %s8 = inlined_call_operand.hbm [shape: f32[4,32,256], index: 8, kind: output, shape index: {}]
  %s9 = sld [smem:[#allocation0]]
  $region65: #{tpu_custom_call.1} parent=0
    _
  %s11 = ssub.s32 1, %s9
  %s12 = scalar_select 0, %s11, %s9
  $region1: #{tpu_custom_call.1} parent=0
    #allocation2 [shape = 'u8[131072]{0}', space=vmem, size = 0x20000, scoped, tag = 'output window, operand 0']
    #allocation3 [shape = 's32[2]{0}', space=sflag, size = 0x8, scoped, tag = 'scoped memory for tpu_custom_call.1']
    %13 = vsyncpa [#allocation3], 0
    %s14 = scalar_lea.sflag [#allocation3], 1
    %15 = vsyncpa %s14, 0
    loop: start=0, step=1, limit=4
    $region2: #{tpu_custom_call.1} parent=1 // loop_pre_header
      _
    $region3: #{tpu_custom_call.1} parent=1 // loop_header
      %s17 = sphi 0, %s21
      %p18 = scmp.ge.s32.totalorder %s17, 4
      %s27 = sphi 0, %s29
      %s30 = sphi 0, %s27
      %s31 = sphi 0, %s30
      %s47 = sphi 0, %s31
      %s51 = sphi 0, %s51
      %s53 = sphi 0, %s51
      %s54 = sphi 0, %s53
      %s68 = sphi 0, %s54
      %s72 = sphi 0, %s72
      %s74 = sphi 0, %s72
      %s75 = sphi 0, %s74
      %s89 = sphi 0, %s75
      %s93 = sphi 0, %s93
      %s95 = sphi 0, %s93
      %s96 = sphi 0, %s95
      %s110 = sphi 0, %s96
      %s114 = sphi 0, %s114
      %s116 = sphi 0, %s114
      %s117 = sphi 0, %s116
      %s131 = sphi 0, %s117
      %s135 = sphi 0, %s135
      %s137 = sphi 0, %s135
      %s138 = sphi 0, %s137
      %s152 = sphi 0, %s138
      %s156 = sphi 0, %s156
      %s158 = sphi 0, %s156
      %s159 = sphi 0, %s158
      %s173 = sphi 0, %s159
      %s177 = sphi 0, %s177
      %s179 = sphi 0, %s177
      %s180 = sphi 0, %s179
      %s194 = sphi 0, %s180
      %s200 = sphi 0, %s202
      %s203 = sphi 0, %s200
      %s204 = sphi 0, %s203
      %s220 = sphi 0, %s204
    $region4: #{tpu_custom_call.1} parent=1 // loop_header_branch
      %20 = sbr.rel (%p18) target = $region8
    $region5: #{tpu_custom_call.1} parent=1 // loop_body
      %s22 = ssub.s32 %s17, 1
      %s23 = ssub.s32 %s17, 2
      %s24 = sadd.s32 %s17, 1
      %s25 = ssub.s32 %s17, %s24
      %p26 = scmp.eq.s32.totalorder %s25, 0
      %s28 = sadd.s32 %s27, 1
      %s29 = scalar_select %p26, %s27, %s28
      %p32 = pneg %p26
      %p33 = scmp.eq.s32.totalorder %s17, 1
      %p34 = por %p32, %p33
      %p35 = scmp.ne.s32.totalorder %s27, %s30
      %p36 = scmp.eq.s32.totalorder %s17, 0
      %p37 = por %p35, %p36
      %p38 = scmp.ne.s32.totalorder %s27, %s30
      %p39 = scmp.eq.s32.totalorder %s22, 1
      %p40 = por %p38, %p39
      %p41 = scmp.ne.s32.totalorder %s30, %s31
      %p42 = scmp.eq.s32.totalorder %s22, 0
      %p43 = por %p41, %p42
      %p44 = scmp.ne.s32.totalorder %s30, %s31
      %p45 = scmp.eq.s32.totalorder %s23, 1
      %p46 = por %p44, %p45
      %p48 = scmp.ne.s32.totalorder %s31, %s47
      %p49 = scmp.eq.s32.totalorder %s23, 0
      %p50 = por %p48, %p49
      %s52 = sadd.s32 %s51, 1
      %p55 = scmp.eq.s32.totalorder %s17, 1
      %p56 = scmp.ne.s32.totalorder %s51, %s53
      %p57 = scmp.eq.s32.totalorder %s17, 0
      %p58 = por %p56, %p57
      %p59 = scmp.ne.s32.totalorder %s51, %s53
      %p60 = scmp.eq.s32.totalorder %s22, 1
      %p61 = por %p59, %p60
      %p62 = scmp.ne.s32.totalorder %s53, %s54
      %p63 = scmp.eq.s32.totalorder %s22, 0
      %p64 = por %p62, %p63
      %p65 = scmp.ne.s32.totalorder %s53, %s54
      %p66 = scmp.eq.s32.totalorder %s23, 1
      %p67 = por %p65, %p66
      %p69 = scmp.ne.s32.totalorder %s54, %s68
      %p70 = scmp.eq.s32.totalorder %s23, 0
      %p71 = por %p69, %p70
      %s73 = sadd.s32 %s72, 1
      %p76 = scmp.eq.s32.totalorder %s17, 1
      %p77 = scmp.ne.s32.totalorder %s72, %s74
      %p78 = scmp.eq.s32.totalorder %s17, 0
      %p79 = por %p77, %p78
      %p80 = scmp.ne.s32.totalorder %s72, %s74
      %p81 = scmp.eq.s32.totalorder %s22, 1
      %p82 = por %p80, %p81
      %p83 = scmp.ne.s32.totalorder %s74, %s75
      %p84 = scmp.eq.s32.totalorder %s22, 0
      %p85 = por %p83, %p84
      %p86 = scmp.ne.s32.totalorder %s74, %s75
      %p87 = scmp.eq.s32.totalorder %s23, 1
      %p88 = por %p86, %p87
      %p90 = scmp.ne.s32.totalorder %s75, %s89
      %p91 = scmp.eq.s32.totalorder %s23, 0
      %p92 = por %p90, %p91
      %s94 = sadd.s32 %s93, 1
      %p97 = scmp.eq.s32.totalorder %s17, 1
      %p98 = scmp.ne.s32.totalorder %s93, %s95
      %p99 = scmp.eq.s32.totalorder %s17, 0
      %p100 = por %p98, %p99
      %p101 = scmp.ne.s32.totalorder %s93, %s95
      %p102 = scmp.eq.s32.totalorder %s22, 1
      %p103 = por %p101, %p102
      %p104 = scmp.ne.s32.totalorder %s95, %s96
      %p105 = scmp.eq.s32.totalorder %s22, 0
      %p106 = por %p104, %p105
      %p107 = scmp.ne.s32.totalorder %s95, %s96
      %p108 = scmp.eq.s32.totalorder %s23, 1
      %p109 = por %p107, %p108
      %p111 = scmp.ne.s32.totalorder %s96, %s110
      %p112 = scmp.eq.s32.totalorder %s23, 0
      %p113 = por %p111, %p112
      %s115 = sadd.s32 %s114, 1
      %p118 = scmp.eq.s32.totalorder %s17, 1
      %p119 = scmp.ne.s32.totalorder %s114, %s116
      %p120 = scmp.eq.s32.totalorder %s17, 0
      %p121 = por %p119, %p120
      %p122 = scmp.ne.s32.totalorder %s114, %s116
      %p123 = scmp.eq.s32.totalorder %s22, 1
      %p124 = por %p122, %p123
      %p125 = scmp.ne.s32.totalorder %s116, %s117
      %p126 = scmp.eq.s32.totalorder %s22, 0
      %p127 = por %p125, %p126
      %p128 = scmp.ne.s32.totalorder %s116, %s117
      %p129 = scmp.eq.s32.totalorder %s23, 1
      %p130 = por %p128, %p129
      %p132 = scmp.ne.s32.totalorder %s117, %s131
      %p133 = scmp.eq.s32.totalorder %s23, 0
      %p134 = por %p132, %p133
      %s136 = sadd.s32 %s135, 1
      %p139 = scmp.eq.s32.totalorder %s17, 1
      %p140 = scmp.ne.s32.totalorder %s135, %s137
      %p141 = scmp.eq.s32.totalorder %s17, 0
      %p142 = por %p140, %p141
      %p143 = scmp.ne.s32.totalorder %s135, %s137
      %p144 = scmp.eq.s32.totalorder %s22, 1
      %p145 = por %p143, %p144
      %p146 = scmp.ne.s32.totalorder %s137, %s138
      %p147 = scmp.eq.s32.totalorder %s22, 0
      %p148 = por %p146, %p147
      %p149 = scmp.ne.s32.totalorder %s137, %s138
      %p150 = scmp.eq.s32.totalorder %s23, 1
      %p151 = por %p149, %p150
      %p153 = scmp.ne.s32.totalorder %s138, %s152
      %p154 = scmp.eq.s32.totalorder %s23, 0
      %p155 = por %p153, %p154
      %s157 = sadd.s32 %s156, 1
      %p160 = scmp.eq.s32.totalorder %s17, 1
      %p161 = scmp.ne.s32.totalorder %s156, %s158
      %p162 = scmp.eq.s32.totalorder %s17, 0
      %p163 = por %p161, %p162
      %p164 = scmp.ne.s32.totalorder %s156, %s158
      %p165 = scmp.eq.s32.totalorder %s22, 1
      %p166 = por %p164, %p165
      %p167 = scmp.ne.s32.totalorder %s158, %s159
      %p168 = scmp.eq.s32.totalorder %s22, 0
      %p169 = por %p167, %p168
      %p170 = scmp.ne.s32.totalorder %s158, %s159
      %p171 = scmp.eq.s32.totalorder %s23, 1
      %p172 = por %p170, %p171
      %p174 = scmp.ne.s32.totalorder %s159, %s173
      %p175 = scmp.eq.s32.totalorder %s23, 0
      %p176 = por %p174, %p175
      %s178 = sadd.s32 %s177, 1
      %p181 = scmp.eq.s32.totalorder %s17, 1
      %p182 = scmp.ne.s32.totalorder %s177, %s179
      %p183 = scmp.eq.s32.totalorder %s17, 0
      %p184 = por %p182, %p183
      %p185 = scmp.ne.s32.totalorder %s177, %s179
      %p186 = scmp.eq.s32.totalorder %s22, 1
      %p187 = por %p185, %p186
      %p188 = scmp.ne.s32.totalorder %s179, %s180
      %p189 = scmp.eq.s32.totalorder %s22, 0
      %p190 = por %p188, %p189
      %p191 = scmp.ne.s32.totalorder %s179, %s180
      %p192 = scmp.eq.s32.totalorder %s23, 1
      %p193 = por %p191, %p192
      %p195 = scmp.ne.s32.totalorder %s180, %s194
      %p196 = scmp.eq.s32.totalorder %s23, 0
      %p197 = por %p195, %p196
      %s198 = ssub.s32 %s17, %s24
      %p199 = scmp.eq.s32.totalorder %s198, 0
      %s201 = sadd.s32 %s200, 1
      %s202 = scalar_select %p199, %s200, %s201
      %p205 = pneg %p199
      %p206 = scmp.eq.s32.totalorder %s17, 1
      %p207 = por %p205, %p206
      %p208 = scmp.ne.s32.totalorder %s200, %s203
      %p209 = scmp.eq.s32.totalorder %s17, 0
      %p210 = por %p208, %p209
      %p211 = scmp.ne.s32.totalorder %s200, %s203
      %p212 = scmp.eq.s32.totalorder %s22, 1
      %p213 = por %p211, %p212
      %p214 = scmp.ne.s32.totalorder %s203, %s204
      %p215 = scmp.eq.s32.totalorder %s22, 0
      %p216 = por %p214, %p215
      %p217 = scmp.ne.s32.totalorder %s203, %s204
      %p218 = scmp.eq.s32.totalorder %s23, 1
      %p219 = por %p217, %p218
      %p221 = scmp.ne.s32.totalorder %s204, %s220
      %p222 = scmp.eq.s32.totalorder %s23, 0
      %p223 = por %p221, %p222
      %p224 = scmp.le.s32.totalorder 1, %s17
      %p225 = scmp.lt.s32.totalorder %s17, 3
      %p226 = pnand %p224, %p225
      %p227 = pneg %p226
      // Predicated region
      $region9: #{tpu_custom_call.1} parent=5 // pred_check
        _
      $region10: #{tpu_custom_call.1} parent=5 // pred_check_branch
        %229 = sbr.rel (%p226) target = $region12
      $region11: #{tpu_custom_call.1} parent=5 // pred_region
        %s230 = ssub.s32 %s17, 1
        // Predicated region
        $region13: #{tpu_custom_call.1} parent=11 // pred_check
          %p231 = pneg %p64
        $region14: #{tpu_custom_call.1} parent=11 // pred_check_branch
          %233 = sbr.rel (%p231) target = $region16
        $region15: #{tpu_custom_call.1} parent=11 // pred_region
          _
        $region16: #{tpu_custom_call.1} parent=11 // pred_fallthru
          _
        // Predicated region
        $region17: #{tpu_custom_call.1} parent=11 // pred_check
          %p234 = pneg %p85
        $region18: #{tpu_custom_call.1} parent=11 // pred_check_branch
          %236 = sbr.rel (%p234) target = $region20
        $region19: #{tpu_custom_call.1} parent=11 // pred_region
          _
        $region20: #{tpu_custom_call.1} parent=11 // pred_fallthru
          _
        // Predicated region
        $region21: #{tpu_custom_call.1} parent=11 // pred_check
          %p237 = pneg %p106
        $region22: #{tpu_custom_call.1} parent=11 // pred_check_branch
          %239 = sbr.rel (%p237) target = $region24
        $region23: #{tpu_custom_call.1} parent=11 // pred_region
          _
        $region24: #{tpu_custom_call.1} parent=11 // pred_fallthru
          _
        // Predicated region
        $region25: #{tpu_custom_call.1} parent=11 // pred_check
          %p240 = pneg %p127
        $region26: #{tpu_custom_call.1} parent=11 // pred_check_branch
          %242 = sbr.rel (%p240) target = $region28
        $region27: #{tpu_custom_call.1} parent=11 // pred_region
          _
        $region28: #{tpu_custom_call.1} parent=11 // pred_fallthru
          _
        // Predicated region
        $region29: #{tpu_custom_call.1} parent=11 // pred_check
          %p243 = pneg %p148
        $region30: #{tpu_custom_call.1} parent=11 // pred_check_branch
          %245 = sbr.rel (%p243) target = $region32
        $region31: #{tpu_custom_call.1} parent=11 // pred_region
          _
        $region32: #{tpu_custom_call.1} parent=11 // pred_fallthru
          _
        // Predicated region
        $region33: #{tpu_custom_call.1} parent=11 // pred_check
          %p246 = pneg %p169
        $region34: #{tpu_custom_call.1} parent=11 // pred_check_branch
          %248 = sbr.rel (%p246) target = $region36
        $region35: #{tpu_custom_call.1} parent=11 // pred_region
          _
        $region36: #{tpu_custom_call.1} parent=11 // pred_fallthru
          _
        // Predicated region
        $region37: #{tpu_custom_call.1} parent=11 // pred_check
          %p249 = pneg %p190
        $region38: #{tpu_custom_call.1} parent=11 // pred_check_branch
          %251 = sbr.rel (%p249) target = $region40
        $region39: #{tpu_custom_call.1} parent=11 // pred_region
          _
        $region40: #{tpu_custom_call.1} parent=11 // pred_fallthru
          _
      $region12: #{tpu_custom_call.1} parent=5 // pred_fallthru
        _
      %p252 = scmp.lt.s32.totalorder %s17, 2
      // Predicated region
      $region41: #{tpu_custom_call.1} parent=5 // pred_check
        %p253 = pneg %p252
      $region42: #{tpu_custom_call.1} parent=5 // pred_check_branch
        %255 = sbr.rel (%p253) target = $region44
      $region43: #{tpu_custom_call.1} parent=5 // pred_region
        // Predicated region
        $region45: #{tpu_custom_call.1} parent=43 // pred_check
          %p256 = pneg %p37
        $region46: #{tpu_custom_call.1} parent=43 // pred_check_branch
          %258 = sbr.rel (%p256) target = $region48
        $region47: #{tpu_custom_call.1} parent=43 // pred_region
          %s259 = smul.u32 2, %s17
          %p260 = scmp.lt.s32.totalorder %s259, 3
          %s261 = scalar_select %p260, %s259, 3
          %s262 = smul.addr %s261, 8
          %s263 = smul.addr %s262, 8
          %s264 = scalar_lea.vmem %s0, %s263
          %s265 = smul.u32 2, %s17
        $region48: #{tpu_custom_call.1} parent=43 // pred_fallthru
          _
      $region44: #{tpu_custom_call.1} parent=5 // pred_fallthru
        _
      %p266 = scmp.le.s32.totalorder 1, %s17
      %p267 = scmp.lt.s32.totalorder %s17, 3
      %p268 = pnand %p266, %p267
      %p269 = pneg %p268
      // Predicated region
      $region49: #{tpu_custom_call.1} parent=5 // pred_check
        _
      $region50: #{tpu_custom_call.1} parent=5 // pred_check_branch
        %271 = sbr.rel (%p268) target = $region52
      $region51: #{tpu_custom_call.1} parent=5 // pred_region
        %s272 = ssub.s32 %s17, 1
        %s273 = smul.u32 2, %s22
        %p274 = scmp.lt.s32.totalorder %s273, 3
        %s275 = scalar_select %p274, %s273, 3
        %s276 = smul.addr %s275, 8
        %s277 = smul.addr %s276, 8
        %s278 = scalar_lea.vmem %s0, %s277
        %p279 = pneg %p43
        %p280 = pneg %p40
        %p281 = pneg %p64
        %p282 = pneg %p61
        %p283 = pneg %p85
        %p284 = pneg %p82
        %p285 = pneg %p106
        %p286 = pneg %p103
        %p287 = pneg %p127
        %p288 = pneg %p124
        %p289 = pneg %p148
        %p290 = pneg %p145
        %p291 = pneg %p169
        %p292 = pneg %p166
        %p293 = pneg %p190
        %p294 = pneg %p187
        %p295 = pneg %p216
        %p296 = pneg %p213
        %s297 = sand.u32 %s203, 1
        %s298 = scalar_lea.sflag [#allocation3], %s297
        %s299 = sand.u32 %s203, 1
        %s300 = smul.addr %s299, 128
        %s301 = scalar_lea.vmem [#allocation2], %s300
        %s302 = smul.u32 2, %s22
        %p303 = scmp.lt.s32.totalorder %s302, 3
        %s304 = scalar_select %p303, %s302, 3
        %s305 = smul.addr %s304, 8
        %s306 = smul.addr %s305, 8
        %s307 = scalar_lea.vmem %s0, %s306
        %s308 = smul.u32 2, %s22
        %s309 = smul.u32 2, %s22
        %v310 = vld [vmem:[%s307] sm:$0xff]
        %v311 = vld [vmem:[%s307 + $0x8] sm:$0xff]
        %v312 = vld [vmem:[%s307 + $0x10] sm:$0xff]
        %v313 = vld [vmem:[%s307 + $0x18] sm:$0xff]
        %v314 = vld [vmem:[%s307 + $0x20] sm:$0xff]
        %v315 = vld [vmem:[%s307 + $0x28] sm:$0xff]
        %v316 = vld [vmem:[%s307 + $0x30] sm:$0xff]
        %v317 = vld [vmem:[%s307 + $0x38] sm:$0xff]
        %v318 = vld [vmem:[%s307 + $0x40] sm:$0xff]
        %v319 = vld [vmem:[%s307 + $0x48] sm:$0xff]
        %v320 = vld [vmem:[%s307 + $0x50] sm:$0xff]
        %v321 = vld [vmem:[%s307 + $0x58] sm:$0xff]
        %v322 = vld [vmem:[%s307 + $0x60] sm:$0xff]
        %v323 = vld [vmem:[%s307 + $0x68] sm:$0xff]
        %v324 = vld [vmem:[%s307 + $0x70] sm:$0xff]
        %v325 = vld [vmem:[%s307 + $0x78] sm:$0xff]
        %v326 = vld [vmem:[%s1] sm:$0xff]
        %v327 = vld [vmem:[%s1 + $0x8] sm:$0xff]
        %v328 = vld [vmem:[%s1 + $0x10] sm:$0xff]
        %v329 = vld [vmem:[%s1 + $0x18] sm:$0xff]
        %v330 = vld [vmem:[%s1 + $0x20] sm:$0xff]
        %v331 = vld [vmem:[%s1 + $0x28] sm:$0xff]
        %v332 = vld [vmem:[%s1 + $0x30] sm:$0xff]
        %v333 = vld [vmem:[%s1 + $0x38] sm:$0xff]
        %v334 = vld [vmem:[%s1 + $0x40] sm:$0xff]
        %v335 = vld [vmem:[%s1 + $0x48] sm:$0xff]
        %v336 = vld [vmem:[%s1 + $0x50] sm:$0xff]
        %v337 = vld [vmem:[%s1 + $0x58] sm:$0xff]
        %v338 = vld [vmem:[%s1 + $0x60] sm:$0xff]
        %v339 = vld [vmem:[%s1 + $0x68] sm:$0xff]
        %v340 = vld [vmem:[%s1 + $0x70] sm:$0xff]
        %v341 = vld [vmem:[%s1 + $0x78] sm:$0xff]
        %v342 = vld [vmem:[%s1 + $0x80] sm:$0xff]
        %v343 = vld [vmem:[%s1 + $0x88] sm:$0xff]
        %v344 = vld [vmem:[%s1 + $0x90] sm:$0xff]
        %v345 = vld [vmem:[%s1 + $0x98] sm:$0xff]
        %v346 = vld [vmem:[%s1 + $0xa0] sm:$0xff]
        %v347 = vld [vmem:[%s1 + $0xa8] sm:$0xff]
        %v348 = vld [vmem:[%s1 + $0xb0] sm:$0xff]
        %v349 = vld [vmem:[%s1 + $0xb8] sm:$0xff]
        %v350 = vld [vmem:[%s1 + $0xc0] sm:$0xff]
        %v351 = vld [vmem:[%s1 + $0xc8] sm:$0xff]
        %v352 = vld [vmem:[%s1 + $0xd0] sm:$0xff]
        %v353 = vld [vmem:[%s1 + $0xd8] sm:$0xff]
        %v354 = vld [vmem:[%s1 + $0xe0] sm:$0xff]
        %v355 = vld [vmem:[%s1 + $0xe8] sm:$0xff]
        %v356 = vld [vmem:[%s1 + $0xf0] sm:$0xff]
        %v357 = vld [vmem:[%s1 + $0xf8] sm:$0xff]
        %v358 = vld [vmem:[%s2] sm:$0xff]
        %v359 = vld [vmem:[%s2 + $0x8] sm:$0xff]
        %v360 = vld [vmem:[%s2 + $0x10] sm:$0xff]
        %v361 = vld [vmem:[%s2 + $0x18] sm:$0xff]
        %v362 = vld [vmem:[%s2 + $0x20] sm:$0xff]
        %v363 = vld [vmem:[%s2 + $0x28] sm:$0xff]
        %v364 = vld [vmem:[%s2 + $0x30] sm:$0xff]
        %v365 = vld [vmem:[%s2 + $0x38] sm:$0xff]
        %v366 = vld [vmem:[%s2 + $0x40] sm:$0xff]
        %v367 = vld [vmem:[%s2 + $0x48] sm:$0xff]
        %v368 = vld [vmem:[%s2 + $0x50] sm:$0xff]
        %v369 = vld [vmem:[%s2 + $0x58] sm:$0xff]
        %v370 = vld [vmem:[%s2 + $0x60] sm:$0xff]
        %v371 = vld [vmem:[%s2 + $0x68] sm:$0xff]
        %v372 = vld [vmem:[%s2 + $0x70] sm:$0xff]
        %v373 = vld [vmem:[%s2 + $0x78] sm:$0xff]
        %v374 = vld [vmem:[%s2 + $0x80] sm:$0xff]
        %v375 = vld [vmem:[%s2 + $0x88] sm:$0xff]
        %v376 = vld [vmem:[%s2 + $0x90] sm:$0xff]
        %v377 = vld [vmem:[%s2 + $0x98] sm:$0xff]
        %v378 = vld [vmem:[%s2 + $0xa0] sm:$0xff]
        %v379 = vld [vmem:[%s2 + $0xa8] sm:$0xff]
        %v380 = vld [vmem:[%s2 + $0xb0] sm:$0xff]
        %v381 = vld [vmem:[%s2 + $0xb8] sm:$0xff]
        %v382 = vld [vmem:[%s2 + $0xc0] sm:$0xff]
        %v383 = vld [vmem:[%s2 + $0xc8] sm:$0xff]
        %v384 = vld [vmem:[%s2 + $0xd0] sm:$0xff]
        %v385 = vld [vmem:[%s2 + $0xd8] sm:$0xff]
        %v386 = vld [vmem:[%s2 + $0xe0] sm:$0xff]
        %v387 = vld [vmem:[%s2 + $0xe8] sm:$0xff]
        %v388 = vld [vmem:[%s2 + $0xf0] sm:$0xff]
        %v389 = vld [vmem:[%s2 + $0xf8] sm:$0xff]
        %v390 = vld [vmem:[%s7] sm:$0x3f]
        %v391 = vadd.f32 %v310, %v312
        %v392 = vadd.f32 %v391, %v314
        %v393 = vadd.f32 %v392, %v316
        %v394 = vrot.slane %v393, 4
        %v395 = vadd.f32 %v393, %v394
        %v396 = vrot.slane %v395, 2
        %v397 = vadd.f32 %v395, %v396
        %v398 = vrot.slane %v397, 1
        %v399 = vadd.f32 %v397, %v398
        %v400 = vadd.f32 %v311, %v313
        %v401 = vadd.f32 %v400, %v315
        %v402 = vadd.f32 %v401, %v317
        %v403 = vrot.slane %v402, 4
        %v404 = vadd.f32 %v402, %v403
        %v405 = vrot.slane %v404, 2
        %v406 = vadd.f32 %v404, %v405
        %v407 = vrot.slane %v406, 1
        %v408 = vadd.f32 %v406, %v407
        %v409 = vadd.f32 %v318, %v320
        %v410 = vadd.f32 %v409, %v322
        %v411 = vadd.f32 %v410, %v324
        %v412 = vrot.slane %v411, 4
        %v413 = vadd.f32 %v411, %v412
        %v414 = vrot.slane %v413, 2
        %v415 = vadd.f32 %v413, %v414
        %v416 = vrot.slane %v415, 1
        %v417 = vadd.f32 %v415, %v416
        %v418 = vadd.f32 %v319, %v321
        %v419 = vadd.f32 %v418, %v323
        %v420 = vadd.f32 %v419, %v325
        %v421 = vrot.slane %v420, 4
        %v422 = vadd.f32 %v420, %v421
        %v423 = vrot.slane %v422, 2
        %v424 = vadd.f32 %v422, %v423
        %v425 = vrot.slane %v424, 1
        %v426 = vadd.f32 %v424, %v425
        %v427 = vadd.f32 %v310, %v311
        %428 = vadd.xlane.f32.xlu0 %v427
        %v429 = vpop.xlane.xlu0 %428
        %v430 = vadd.f32 %v312, %v313
        %431 = vadd.xlane.f32.xlu0 %v430
        %v432 = vpop.xlane.xlu0 %431
        %v433 = vadd.f32 %v314, %v315
        %434 = vadd.xlane.f32.xlu0 %v433
        %v435 = vpop.xlane.xlu0 %434
        %v436 = vadd.f32 %v316, %v317
        %437 = vadd.xlane.f32.xlu0 %v436
        %v438 = vpop.xlane.xlu0 %437
        %v439 = vadd.f32 %v318, %v319
        %440 = vadd.xlane.f32.xlu0 %v439
        %v441 = vpop.xlane.xlu0 %440
        %v442 = vadd.f32 %v320, %v321
        %443 = vadd.xlane.f32.xlu0 %v442
        %v444 = vpop.xlane.xlu0 %443
        %v445 = vadd.f32 %v322, %v323
        %446 = vadd.xlane.f32.xlu0 %v445
        %v447 = vpop.xlane.xlu0 %446
        %v448 = vadd.f32 %v324, %v325
        %449 = vadd.xlane.f32.xlu0 %v448
        %v450 = vpop.xlane.xlu0 %449
        %v451 = vrcp.pop 256.0
        %v452 = vmul.f32 256.0, %v451
        %v453 = vsub.f32 1.0, %v452
        %v454 = vmul.f32 %v451, %v453
        %v455 = vadd.f32 %v451, %v454
        %vm456 = vweird.f32 %v451
        %v457 = vsel %vm456, %v451, %v455
        %v458 = vmul.f32 %v429, %v457
        %v459 = vmul.f32 %v432, %v457
        %v460 = vmul.f32 %v435, %v457
        %v461 = vmul.f32 %v438, %v457
        %v462 = vmul.f32 %v441, %v457
        %v463 = vmul.f32 %v444, %v457
        %v464 = vmul.f32 %v447, %v457
        %v465 = vmul.f32 %v450, %v457
        %vm470 = vcmask 1041409
        %v471 = vsel %vm470, %v417, %v399
        %v472 = vsel %vm470, %v426, %v408
        %v475 = vand.u32 %v341, 4294901760
        %476 = vmatpush.msra.mxu0 %v475
        %v477 = vand.u32 %v340, 4294901760
        %478 = vmatpush.msra.mxu0 %v477
        %v479 = vand.u32 %v339, 4294901760
        %480 = vmatpush.msra.mxu0 %v479
        %v481 = vand.u32 %v338, 4294901760
        %482 = vmatpush.msra.mxu0 %v481
        %v483 = vand.u32 %v337, 4294901760
        %484 = vmatpush.msra.mxu0 %v483
        %v485 = vand.u32 %v336, 4294901760
        %486 = vmatpush.msra.mxu0 %v485
        %v487 = vand.u32 %v335, 4294901760
        %488 = vmatpush.msra.mxu0 %v487
        %v489 = vand.u32 %v334, 4294901760
        %490 = vmatpush.msra.mxu0 %v489
        %v491 = vand.u32 %v333, 4294901760
        %492 = vmatpush.msra.mxu0 %v491
        %v493 = vand.u32 %v332, 4294901760
        %494 = vmatpush.msra.mxu0 %v493
        %v495 = vand.u32 %v331, 4294901760
        %496 = vmatpush.msra.mxu0 %v495
        %v497 = vand.u32 %v330, 4294901760
        %498 = vmatpush.msra.mxu0 %v497
        %v499 = vand.u32 %v329, 4294901760
        %500 = vmatpush.msra.mxu0 %v499
        %v501 = vand.u32 %v328, 4294901760
        %502 = vmatpush.msra.mxu0 %v501
        %v503 = vand.u32 %v327, 4294901760
        %504 = vmatpush.msra.mxu0 %v503
        %v505 = vand.u32 %v326, 4294901760
        %506 = vmatpush.msra.mxu0 %v505
        %v507 = vand.u32 %v471, 4294901760
        %v508 = vsub.f32 %v471, %v507
        %v509 = vand.u32 %v508, 4294901760
        %v510 = vsub.f32 %v508, %v509
        %v511 = vand.u32 %v510, 4294901760
        %512 = vmatmul.f32.gmra.mxu0 %v511
        %v513 = vpop.f32.mrf.mxu0
        %v514 = vadd.f32 0.0, %v513
        %515 = vdwg.mxu0
        %v516 = vand.u32 %v341, 4294901760
        %v517 = vsub.f32 %v341, %v516
        %v518 = vand.u32 %v517, 4294901760
        %v519 = vsub.f32 %v517, %v518
        %v520 = vand.u32 %v519, 4294901760
        %521 = vmatpush.msra.mxu0 %v520
        %v522 = vand.u32 %v340, 4294901760
        %v523 = vsub.f32 %v340, %v522
        %v524 = vand.u32 %v523, 4294901760
        %v525 = vsub.f32 %v523, %v524
        %v526 = vand.u32 %v525, 4294901760
        %527 = vmatpush.msra.mxu0 %v526
        %v528 = vand.u32 %v339, 4294901760
        %v529 = vsub.f32 %v339, %v528
        %v530 = vand.u32 %v529, 4294901760
        %v531 = vsub.f32 %v529, %v530
        %v532 = vand.u32 %v531, 4294901760
        %533 = vmatpush.msra.mxu0 %v532
        %v534 = vand.u32 %v338, 4294901760
        %v535 = vsub.f32 %v338, %v534
        %v536 = vand.u32 %v535, 4294901760
        %v537 = vsub.f32 %v535, %v536
        %v538 = vand.u32 %v537, 4294901760
        %539 = vmatpush.msra.mxu0 %v538
        %v540 = vand.u32 %v337, 4294901760
        %v541 = vsub.f32 %v337, %v540
        %v542 = vand.u32 %v541, 4294901760
        %v543 = vsub.f32 %v541, %v542
        %v544 = vand.u32 %v543, 4294901760
        %545 = vmatpush.msra.mxu0 %v544
        %v546 = vand.u32 %v336, 4294901760
        %v547 = vsub.f32 %v336, %v546
        %v548 = vand.u32 %v547, 4294901760
        %v549 = vsub.f32 %v547, %v548
        %v550 = vand.u32 %v549, 4294901760
        %551 = vmatpush.msra.mxu0 %v550
        %v552 = vand.u32 %v335, 4294901760
        %v553 = vsub.f32 %v335, %v552
        %v554 = vand.u32 %v553, 4294901760
        %v555 = vsub.f32 %v553, %v554
        %v556 = vand.u32 %v555, 4294901760
        %557 = vmatpush.msra.mxu0 %v556
        %v558 = vand.u32 %v334, 4294901760
        %v559 = vsub.f32 %v334, %v558
        %v560 = vand.u32 %v559, 4294901760
        %v561 = vsub.f32 %v559, %v560
        %v562 = vand.u32 %v561, 4294901760
        %563 = vmatpush.msra.mxu0 %v562
        %v564 = vand.u32 %v333, 4294901760
        %v565 = vsub.f32 %v333, %v564
        %v566 = vand.u32 %v565, 4294901760
        %v567 = vsub.f32 %v565, %v566
        %v568 = vand.u32 %v567, 4294901760
        %569 = vmatpush.msra.mxu0 %v568
        %v570 = vand.u32 %v332, 4294901760
        %v571 = vsub.f32 %v332, %v570
        %v572 = vand.u32 %v571, 4294901760
        %v573 = vsub.f32 %v571, %v572
        %v574 = vand.u32 %v573, 4294901760
        %575 = vmatpush.msra.mxu0 %v574
        %v576 = vand.u32 %v331, 4294901760
        %v577 = vsub.f32 %v331, %v576
        %v578 = vand.u32 %v577, 4294901760
        %v579 = vsub.f32 %v577, %v578
        %v580 = vand.u32 %v579, 4294901760
        %581 = vmatpush.msra.mxu0 %v580
        %v582 = vand.u32 %v330, 4294901760
        %v583 = vsub.f32 %v330, %v582
        %v584 = vand.u32 %v583, 4294901760
        %v585 = vsub.f32 %v583, %v584
        %v586 = vand.u32 %v585, 4294901760
        %587 = vmatpush.msra.mxu0 %v586
        %v588 = vand.u32 %v329, 4294901760
        %v589 = vsub.f32 %v329, %v588
        %v590 = vand.u32 %v589, 4294901760
        %v591 = vsub.f32 %v589, %v590
        %v592 = vand.u32 %v591, 4294901760
        %593 = vmatpush.msra.mxu0 %v592
        %v594 = vand.u32 %v328, 4294901760
        %v595 = vsub.f32 %v328, %v594
        %v596 = vand.u32 %v595, 4294901760
        %v597 = vsub.f32 %v595, %v596
        %v598 = vand.u32 %v597, 4294901760
        %599 = vmatpush.msra.mxu0 %v598
        %v600 = vand.u32 %v327, 4294901760
        %v601 = vsub.f32 %v327, %v600
        %v602 = vand.u32 %v601, 4294901760
        %v603 = vsub.f32 %v601, %v602
        %v604 = vand.u32 %v603, 4294901760
        %605 = vmatpush.msra.mxu0 %v604
        %v606 = vand.u32 %v326, 4294901760
        %v607 = vsub.f32 %v326, %v606
        %v608 = vand.u32 %v607, 4294901760
        %v609 = vsub.f32 %v607, %v608
        %v610 = vand.u32 %v609, 4294901760
        %611 = vmatpush.msra.mxu0 %v610
        %v612 = vand.u32 %v471, 4294901760
        %613 = vmatmul.f32.gmra.mxu0 %v612
        %v614 = vpop.f32.mrf.mxu0
        %v615 = vadd.f32 %v514, %v614
        %616 = vdwg.mxu0
        %v617 = vand.u32 %v341, 4294901760
        %v618 = vsub.f32 %v341, %v617
        %619 = vmatpush.msra.mxu0 %v618
        %v620 = vand.u32 %v340, 4294901760
        %v621 = vsub.f32 %v340, %v620
        %622 = vmatpush.msra.mxu0 %v621
        %v623 = vand.u32 %v339, 4294901760
        %v624 = vsub.f32 %v339, %v623
        %625 = vmatpush.msra.mxu0 %v624
        %v626 = vand.u32 %v338, 4294901760
        %v627 = vsub.f32 %v338, %v626
        %628 = vmatpush.msra.mxu0 %v627
        %v629 = vand.u32 %v337, 4294901760
        %v630 = vsub.f32 %v337, %v629
        %631 = vmatpush.msra.mxu0 %v630
        %v632 = vand.u32 %v336, 4294901760
        %v633 = vsub.f32 %v336, %v632
        %634 = vmatpush.msra.mxu0 %v633
        %v635 = vand.u32 %v335, 4294901760
        %v636 = vsub.f32 %v335, %v635
        %637 = vmatpush.msra.mxu0 %v636
        %v638 = vand.u32 %v334, 4294901760
        %v639 = vsub.f32 %v334, %v638
        %640 = vmatpush.msra.mxu0 %v639
        %v641 = vand.u32 %v333, 4294901760
        %v642 = vsub.f32 %v333, %v641
        %643 = vmatpush.msra.mxu0 %v642
        %v644 = vand.u32 %v332, 4294901760
        %v645 = vsub.f32 %v332, %v644
        %646 = vmatpush.msra.mxu0 %v645
        %v647 = vand.u32 %v331, 4294901760
        %v648 = vsub.f32 %v331, %v647
        %649 = vmatpush.msra.mxu0 %v648
        %v650 = vand.u32 %v330, 4294901760
        %v651 = vsub.f32 %v330, %v650
        %652 = vmatpush.msra.mxu0 %v651
        %v653 = vand.u32 %v329, 4294901760
        %v654 = vsub.f32 %v329, %v653
        %655 = vmatpush.msra.mxu0 %v654
        %v656 = vand.u32 %v328, 4294901760
        %v657 = vsub.f32 %v328, %v656
        %658 = vmatpush.msra.mxu0 %v657
        %v659 = vand.u32 %v327, 4294901760
        %v660 = vsub.f32 %v327, %v659
        %661 = vmatpush.msra.mxu0 %v660
        %v662 = vand.u32 %v326, 4294901760
        %v663 = vsub.f32 %v326, %v662
        %664 = vmatpush.msra.mxu0 %v663
        %v665 = vand.u32 %v471, 4294901760
        %v666 = vsub.f32 %v471, %v665
        %667 = vmatmul.f32.gmra.mxu0 %v666
        %v668 = vpop.f32.mrf.mxu0
        %v669 = vadd.f32 %v615, %v668
        %670 = vdwg.mxu0
        %v671 = vand.u32 %v341, 4294901760
        %672 = vmatpush.msra.mxu0 %v671
        %v673 = vand.u32 %v340, 4294901760
        %674 = vmatpush.msra.mxu0 %v673
        %v675 = vand.u32 %v339, 4294901760
        %676 = vmatpush.msra.mxu0 %v675
        %v677 = vand.u32 %v338, 4294901760
        %678 = vmatpush.msra.mxu0 %v677
        %v679 = vand.u32 %v337, 4294901760
        %680 = vmatpush.msra.mxu0 %v679
        %v681 = vand.u32 %v336, 4294901760
        %682 = vmatpush.msra.mxu0 %v681
        %v683 = vand.u32 %v335, 4294901760
        %684 = vmatpush.msra.mxu0 %v683
        %v685 = vand.u32 %v334, 4294901760
        %686 = vmatpush.msra.mxu0 %v685
        %v687 = vand.u32 %v333, 4294901760
        %688 = vmatpush.msra.mxu0 %v687
        %v689 = vand.u32 %v332, 4294901760
        %690 = vmatpush.msra.mxu0 %v689
        %v691 = vand.u32 %v331, 4294901760
        %692 = vmatpush.msra.mxu0 %v691
        %v693 = vand.u32 %v330, 4294901760
        %694 = vmatpush.msra.mxu0 %v693
        %v695 = vand.u32 %v329, 4294901760
        %696 = vmatpush.msra.mxu0 %v695
        %v697 = vand.u32 %v328, 4294901760
        %698 = vmatpush.msra.mxu0 %v697
        %v699 = vand.u32 %v327, 4294901760
        %700 = vmatpush.msra.mxu0 %v699
        %v701 = vand.u32 %v326, 4294901760
        %702 = vmatpush.msra.mxu0 %v701
        %v703 = vand.u32 %v471, 4294901760
        %v704 = vsub.f32 %v471, %v703
        %v705 = vand.u32 %v704, 4294901760
        %706 = vmatmul.f32.gmra.mxu0 %v705
        %v707 = vpop.f32.mrf.mxu0
        %v708 = vadd.f32 %v669, %v707
        %709 = vdwg.mxu0
        %v710 = vand.u32 %v341, 4294901760
        %v711 = vsub.f32 %v341, %v710
        %v712 = vand.u32 %v711, 4294901760
        %713 = vmatpush.msra.mxu0 %v712
        %v714 = vand.u32 %v340, 4294901760
        %v715 = vsub.f32 %v340, %v714
        %v716 = vand.u32 %v715, 4294901760
        %717 = vmatpush.msra.mxu0 %v716
        %v718 = vand.u32 %v339, 4294901760
        %v719 = vsub.f32 %v339, %v718
        %v720 = vand.u32 %v719, 4294901760
        %721 = vmatpush.msra.mxu0 %v720
        %v722 = vand.u32 %v338, 4294901760
        %v723 = vsub.f32 %v338, %v722
        %v724 = vand.u32 %v723, 4294901760
        %725 = vmatpush.msra.mxu0 %v724
        %v726 = vand.u32 %v337, 4294901760
        %v727 = vsub.f32 %v337, %v726
        %v728 = vand.u32 %v727, 4294901760
        %729 = vmatpush.msra.mxu0 %v728
        %v730 = vand.u32 %v336, 4294901760
        %v731 = vsub.f32 %v336, %v730
        %v732 = vand.u32 %v731, 4294901760
        %733 = vmatpush.msra.mxu0 %v732
        %v734 = vand.u32 %v335, 4294901760
        %v735 = vsub.f32 %v335, %v734
        %v736 = vand.u32 %v735, 4294901760
        %737 = vmatpush.msra.mxu0 %v736
        %v738 = vand.u32 %v334, 4294901760
        %v739 = vsub.f32 %v334, %v738
        %v740 = vand.u32 %v739, 4294901760
        %741 = vmatpush.msra.mxu0 %v740
        %v742 = vand.u32 %v333, 4294901760
        %v743 = vsub.f32 %v333, %v742
        %v744 = vand.u32 %v743, 4294901760
        %745 = vmatpush.msra.mxu0 %v744
        %v746 = vand.u32 %v332, 4294901760
        %v747 = vsub.f32 %v332, %v746
        %v748 = vand.u32 %v747, 4294901760
        %749 = vmatpush.msra.mxu0 %v748
        %v750 = vand.u32 %v331, 4294901760
        %v751 = vsub.f32 %v331, %v750
        %v752 = vand.u32 %v751, 4294901760
        %753 = vmatpush.msra.mxu0 %v752
        %v754 = vand.u32 %v330, 4294901760
        %v755 = vsub.f32 %v330, %v754
        %v756 = vand.u32 %v755, 4294901760
        %757 = vmatpush.msra.mxu0 %v756
        %v758 = vand.u32 %v329, 4294901760
        %v759 = vsub.f32 %v329, %v758
        %v760 = vand.u32 %v759, 4294901760
        %761 = vmatpush.msra.mxu0 %v760
        %v762 = vand.u32 %v328, 4294901760
        %v763 = vsub.f32 %v328, %v762
        %v764 = vand.u32 %v763, 4294901760
        %765 = vmatpush.msra.mxu0 %v764
        %v766 = vand.u32 %v327, 4294901760
        %v767 = vsub.f32 %v327, %v766
        %v768 = vand.u32 %v767, 4294901760
        %769 = vmatpush.msra.mxu0 %v768
        %v770 = vand.u32 %v326, 4294901760
        %v771 = vsub.f32 %v326, %v770
        %v772 = vand.u32 %v771, 4294901760
        %773 = vmatpush.msra.mxu0 %v772
        %v774 = vand.u32 %v471, 4294901760
        %775 = vmatmul.f32.gmra.mxu0 %v774
        %v776 = vpop.f32.mrf.mxu0
        %v777 = vadd.f32 %v708, %v776
        %778 = vdwg.mxu0
        %v779 = vand.u32 %v341, 4294901760
        %780 = vmatpush.msra.mxu0 %v779
        %v781 = vand.u32 %v340, 4294901760
        %782 = vmatpush.msra.mxu0 %v781
        %v783 = vand.u32 %v339, 4294901760
        %784 = vmatpush.msra.mxu0 %v783
        %v785 = vand.u32 %v338, 4294901760
        %786 = vmatpush.msra.mxu0 %v785
        %v787 = vand.u32 %v337, 4294901760
        %788 = vmatpush.msra.mxu0 %v787
        %v789 = vand.u32 %v336, 4294901760
        %790 = vmatpush.msra.mxu0 %v789
        %v791 = vand.u32 %v335, 4294901760
        %792 = vmatpush.msra.mxu0 %v791
        %v793 = vand.u32 %v334, 4294901760
        %794 = vmatpush.msra.mxu0 %v793
        %v795 = vand.u32 %v333, 4294901760
        %796 = vmatpush.msra.mxu0 %v795
        %v797 = vand.u32 %v332, 4294901760
        %798 = vmatpush.msra.mxu0 %v797
        %v799 = vand.u32 %v331, 4294901760
        %800 = vmatpush.msra.mxu0 %v799
        %v801 = vand.u32 %v330, 4294901760
        %802 = vmatpush.msra.mxu0 %v801
        %v803 = vand.u32 %v329, 4294901760
        %804 = vmatpush.msra.mxu0 %v803
        %v805 = vand.u32 %v328, 4294901760
        %806 = vmatpush.msra.mxu0 %v805
        %v807 = vand.u32 %v327, 4294901760
        %808 = vmatpush.msra.mxu0 %v807
        %v809 = vand.u32 %v326, 4294901760
        %810 = vmatpush.msra.mxu0 %v809
        %v811 = vand.u32 %v471, 4294901760
        %812 = vmatmul.f32.gmra.mxu0 %v811
        %v813 = vpop.f32.mrf.mxu0
        %v814 = vadd.f32 %v777, %v813
        %815 = vdwg.mxu0
        %v816 = vand.u32 %v357, 4294901760
        %817 = vmatpush.msra.mxu0 %v816
        %v818 = vand.u32 %v356, 4294901760
        %819 = vmatpush.msra.mxu0 %v818
        %v820 = vand.u32 %v355, 4294901760
        %821 = vmatpush.msra.mxu0 %v820
        %v822 = vand.u32 %v354, 4294901760
        %823 = vmatpush.msra.mxu0 %v822
        %v824 = vand.u32 %v353, 4294901760
        %825 = vmatpush.msra.mxu0 %v824
        %v826 = vand.u32 %v352, 4294901760
        %827 = vmatpush.msra.mxu0 %v826
        %v828 = vand.u32 %v351, 4294901760
        %829 = vmatpush.msra.mxu0 %v828
        %v830 = vand.u32 %v350, 4294901760
        %831 = vmatpush.msra.mxu0 %v830
        %v832 = vand.u32 %v349, 4294901760
        %833 = vmatpush.msra.mxu0 %v832
        %v834 = vand.u32 %v348, 4294901760
        %835 = vmatpush.msra.mxu0 %v834
        %v836 = vand.u32 %v347, 4294901760
        %837 = vmatpush.msra.mxu0 %v836
        %v838 = vand.u32 %v346, 4294901760
        %839 = vmatpush.msra.mxu0 %v838
        %v840 = vand.u32 %v345, 4294901760
        %841 = vmatpush.msra.mxu0 %v840
        %v842 = vand.u32 %v344, 4294901760
        %843 = vmatpush.msra.mxu0 %v842
        %v844 = vand.u32 %v343, 4294901760
        %845 = vmatpush.msra.mxu0 %v844
        %v846 = vand.u32 %v342, 4294901760
        %847 = vmatpush.msra.mxu0 %v846
        %v848 = vand.u32 %v472, 4294901760
        %v849 = vsub.f32 %v472, %v848
        %v850 = vand.u32 %v849, 4294901760
        %v851 = vsub.f32 %v849, %v850
        %v852 = vand.u32 %v851, 4294901760
        %853 = vmatmul.f32.gmra.mxu0 %v852
        %v854 = vpop.f32.mrf.mxu0
        %v855 = vadd.f32 %v814, %v854
        %856 = vdwg.mxu0
        %v857 = vand.u32 %v357, 4294901760
        %v858 = vsub.f32 %v357, %v857
        %v859 = vand.u32 %v858, 4294901760
        %v860 = vsub.f32 %v858, %v859
        %v861 = vand.u32 %v860, 4294901760
        %862 = vmatpush.msra.mxu0 %v861
        %v863 = vand.u32 %v356, 4294901760
        %v864 = vsub.f32 %v356, %v863
        %v865 = vand.u32 %v864, 4294901760
        %v866 = vsub.f32 %v864, %v865
        %v867 = vand.u32 %v866, 4294901760
        %868 = vmatpush.msra.mxu0 %v867
        %v869 = vand.u32 %v355, 4294901760
        %v870 = vsub.f32 %v355, %v869
        %v871 = vand.u32 %v870, 4294901760
        %v872 = vsub.f32 %v870, %v871
        %v873 = vand.u32 %v872, 4294901760
        %874 = vmatpush.msra.mxu0 %v873
        %v875 = vand.u32 %v354, 4294901760
        %v876 = vsub.f32 %v354, %v875
        %v877 = vand.u32 %v876, 4294901760
        %v878 = vsub.f32 %v876, %v877
        %v879 = vand.u32 %v878, 4294901760
        %880 = vmatpush.msra.mxu0 %v879
        %v881 = vand.u32 %v353, 4294901760
        %v882 = vsub.f32 %v353, %v881
        %v883 = vand.u32 %v882, 4294901760
        %v884 = vsub.f32 %v882, %v883
        %v885 = vand.u32 %v884, 4294901760
        %886 = vmatpush.msra.mxu0 %v885
        %v887 = vand.u32 %v352, 4294901760
        %v888 = vsub.f32 %v352, %v887
        %v889 = vand.u32 %v888, 4294901760
        %v890 = vsub.f32 %v888, %v889
        %v891 = vand.u32 %v890, 4294901760
        %892 = vmatpush.msra.mxu0 %v891
        %v893 = vand.u32 %v351, 4294901760
        %v894 = vsub.f32 %v351, %v893
        %v895 = vand.u32 %v894, 4294901760
        %v896 = vsub.f32 %v894, %v895
        %v897 = vand.u32 %v896, 4294901760
        %898 = vmatpush.msra.mxu0 %v897
        %v899 = vand.u32 %v350, 4294901760
        %v900 = vsub.f32 %v350, %v899
        %v901 = vand.u32 %v900, 4294901760
        %v902 = vsub.f32 %v900, %v901
        %v903 = vand.u32 %v902, 4294901760
        %904 = vmatpush.msra.mxu0 %v903
        %v905 = vand.u32 %v349, 4294901760
        %v906 = vsub.f32 %v349, %v905
        %v907 = vand.u32 %v906, 4294901760
        %v908 = vsub.f32 %v906, %v907
        %v909 = vand.u32 %v908, 4294901760
        %910 = vmatpush.msra.mxu0 %v909
        %v911 = vand.u32 %v348, 4294901760
        %v912 = vsub.f32 %v348, %v911
        %v913 = vand.u32 %v912, 4294901760
        %v914 = vsub.f32 %v912, %v913
        %v915 = vand.u32 %v914, 4294901760
        %916 = vmatpush.msra.mxu0 %v915
        %v917 = vand.u32 %v347, 4294901760
        %v918 = vsub.f32 %v347, %v917
        %v919 = vand.u32 %v918, 4294901760
        %v920 = vsub.f32 %v918, %v919
        %v921 = vand.u32 %v920, 4294901760
        %922 = vmatpush.msra.mxu0 %v921
        %v923 = vand.u32 %v346, 4294901760
        %v924 = vsub.f32 %v346, %v923
        %v925 = vand.u32 %v924, 4294901760
        %v926 = vsub.f32 %v924, %v925
        %v927 = vand.u32 %v926, 4294901760
        %928 = vmatpush.msra.mxu0 %v927
        %v929 = vand.u32 %v345, 4294901760
        %v930 = vsub.f32 %v345, %v929
        %v931 = vand.u32 %v930, 4294901760
        %v932 = vsub.f32 %v930, %v931
        %v933 = vand.u32 %v932, 4294901760
        %934 = vmatpush.msra.mxu0 %v933
        %v935 = vand.u32 %v344, 4294901760
        %v936 = vsub.f32 %v344, %v935
        %v937 = vand.u32 %v936, 4294901760
        %v938 = vsub.f32 %v936, %v937
        %v939 = vand.u32 %v938, 4294901760
        %940 = vmatpush.msra.mxu0 %v939
        %v941 = vand.u32 %v343, 4294901760
        %v942 = vsub.f32 %v343, %v941
        %v943 = vand.u32 %v942, 4294901760
        %v944 = vsub.f32 %v942, %v943
        %v945 = vand.u32 %v944, 4294901760
        %946 = vmatpush.msra.mxu0 %v945
        %v947 = vand.u32 %v342, 4294901760
        %v948 = vsub.f32 %v342, %v947
        %v949 = vand.u32 %v948, 4294901760
        %v950 = vsub.f32 %v948, %v949
        %v951 = vand.u32 %v950, 4294901760
        %952 = vmatpush.msra.mxu0 %v951
        %v953 = vand.u32 %v472, 4294901760
        %954 = vmatmul.f32.gmra.mxu0 %v953
        %v955 = vpop.f32.mrf.mxu0
        %v956 = vadd.f32 %v855, %v955
        %957 = vdwg.mxu0
        %v958 = vand.u32 %v357, 4294901760
        %v959 = vsub.f32 %v357, %v958
        %960 = vmatpush.msra.mxu0 %v959
        %v961 = vand.u32 %v356, 4294901760
        %v962 = vsub.f32 %v356, %v961
        %963 = vmatpush.msra.mxu0 %v962
        %v964 = vand.u32 %v355, 4294901760
        %v965 = vsub.f32 %v355, %v964
        %966 = vmatpush.msra.mxu0 %v965
        %v967 = vand.u32 %v354, 4294901760
        %v968 = vsub.f32 %v354, %v967
        %969 = vmatpush.msra.mxu0 %v968
        %v970 = vand.u32 %v353, 4294901760
        %v971 = vsub.f32 %v353, %v970
        %972 = vmatpush.msra.mxu0 %v971
        %v973 = vand.u32 %v352, 4294901760
        %v974 = vsub.f32 %v352, %v973
        %975 = vmatpush.msra.mxu0 %v974
        %v976 = vand.u32 %v351, 4294901760
        %v977 = vsub.f32 %v351, %v976
        %978 = vmatpush.msra.mxu0 %v977
        %v979 = vand.u32 %v350, 4294901760
        %v980 = vsub.f32 %v350, %v979
        %981 = vmatpush.msra.mxu0 %v980
        %v982 = vand.u32 %v349, 4294901760
        %v983 = vsub.f32 %v349, %v982
        %984 = vmatpush.msra.mxu0 %v983
        %v985 = vand.u32 %v348, 4294901760
        %v986 = vsub.f32 %v348, %v985
        %987 = vmatpush.msra.mxu0 %v986
        %v988 = vand.u32 %v347, 4294901760
        %v989 = vsub.f32 %v347, %v988
        %990 = vmatpush.msra.mxu0 %v989
        %v991 = vand.u32 %v346, 4294901760
        %v992 = vsub.f32 %v346, %v991
        %993 = vmatpush.msra.mxu0 %v992
        %v994 = vand.u32 %v345, 4294901760
        %v995 = vsub.f32 %v345, %v994
        %996 = vmatpush.msra.mxu0 %v995
        %v997 = vand.u32 %v344, 4294901760
        %v998 = vsub.f32 %v344, %v997
        %999 = vmatpush.msra.mxu0 %v998
        %v1000 = vand.u32 %v343, 4294901760
        %v1001 = vsub.f32 %v343, %v1000
        %1002 = vmatpush.msra.mxu0 %v1001
        %v1003 = vand.u32 %v342, 4294901760
        %v1004 = vsub.f32 %v342, %v1003
        %1005 = vmatpush.msra.mxu0 %v1004
        %v1006 = vand.u32 %v472, 4294901760
        %v1007 = vsub.f32 %v472, %v1006
        %1008 = vmatmul.f32.gmra.mxu0 %v1007
        %v1009 = vpop.f32.mrf.mxu0
        %v1010 = vadd.f32 %v956, %v1009
        %1011 = vdwg.mxu0
        %v1012 = vand.u32 %v357, 4294901760
        %1013 = vmatpush.msra.mxu0 %v1012
        %v1014 = vand.u32 %v356, 4294901760
        %1015 = vmatpush.msra.mxu0 %v1014
        %v1016 = vand.u32 %v355, 4294901760
        %1017 = vmatpush.msra.mxu0 %v1016
        %v1018 = vand.u32 %v354, 4294901760
        %1019 = vmatpush.msra.mxu0 %v1018
        %v1020 = vand.u32 %v353, 4294901760
        %1021 = vmatpush.msra.mxu0 %v1020
        %v1022 = vand.u32 %v352, 4294901760
        %1023 = vmatpush.msra.mxu0 %v1022
        %v1024 = vand.u32 %v351, 4294901760
        %1025 = vmatpush.msra.mxu0 %v1024
        %v1026 = vand.u32 %v350, 4294901760
        %1027 = vmatpush.msra.mxu0 %v1026
        %v1028 = vand.u32 %v349, 4294901760
        %1029 = vmatpush.msra.mxu0 %v1028
        %v1030 = vand.u32 %v348, 4294901760
        %1031 = vmatpush.msra.mxu0 %v1030
        %v1032 = vand.u32 %v347, 4294901760
        %1033 = vmatpush.msra.mxu0 %v1032
        %v1034 = vand.u32 %v346, 4294901760
        %1035 = vmatpush.msra.mxu0 %v1034
        %v1036 = vand.u32 %v345, 4294901760
        %1037 = vmatpush.msra.mxu0 %v1036
        %v1038 = vand.u32 %v344, 4294901760
        %1039 = vmatpush.msra.mxu0 %v1038
        %v1040 = vand.u32 %v343, 4294901760
        %1041 = vmatpush.msra.mxu0 %v1040
        %v1042 = vand.u32 %v342, 4294901760
        %1043 = vmatpush.msra.mxu0 %v1042
        %v1044 = vand.u32 %v472, 4294901760
        %v1045 = vsub.f32 %v472, %v1044
        %v1046 = vand.u32 %v1045, 4294901760
        %1047 = vmatmul.f32.gmra.mxu0 %v1046
        %v1048 = vpop.f32.mrf.mxu0
        %v1049 = vadd.f32 %v1010, %v1048
        %1050 = vdwg.mxu0
        %v1051 = vand.u32 %v357, 4294901760
        %v1052 = vsub.f32 %v357, %v1051
        %v1053 = vand.u32 %v1052, 4294901760
        %1054 = vmatpush.msra.mxu0 %v1053
        %v1055 = vand.u32 %v356, 4294901760
        %v1056 = vsub.f32 %v356, %v1055
        %v1057 = vand.u32 %v1056, 4294901760
        %1058 = vmatpush.msra.mxu0 %v1057
        %v1059 = vand.u32 %v355, 4294901760
        %v1060 = vsub.f32 %v355, %v1059
        %v1061 = vand.u32 %v1060, 4294901760
        %1062 = vmatpush.msra.mxu0 %v1061
        %v1063 = vand.u32 %v354, 4294901760
        %v1064 = vsub.f32 %v354, %v1063
        %v1065 = vand.u32 %v1064, 4294901760
        %1066 = vmatpush.msra.mxu0 %v1065
        %v1067 = vand.u32 %v353, 4294901760
        %v1068 = vsub.f32 %v353, %v1067
        %v1069 = vand.u32 %v1068, 4294901760
        %1070 = vmatpush.msra.mxu0 %v1069
        %v1071 = vand.u32 %v352, 4294901760
        %v1072 = vsub.f32 %v352, %v1071
        %v1073 = vand.u32 %v1072, 4294901760
        %1074 = vmatpush.msra.mxu0 %v1073
        %v1075 = vand.u32 %v351, 4294901760
        %v1076 = vsub.f32 %v351, %v1075
        %v1077 = vand.u32 %v1076, 4294901760
        %1078 = vmatpush.msra.mxu0 %v1077
        %v1079 = vand.u32 %v350, 4294901760
        %v1080 = vsub.f32 %v350, %v1079
        %v1081 = vand.u32 %v1080, 4294901760
        %1082 = vmatpush.msra.mxu0 %v1081
        %v1083 = vand.u32 %v349, 4294901760
        %v1084 = vsub.f32 %v349, %v1083
        %v1085 = vand.u32 %v1084, 4294901760
        %1086 = vmatpush.msra.mxu0 %v1085
        %v1087 = vand.u32 %v348, 4294901760
        %v1088 = vsub.f32 %v348, %v1087
        %v1089 = vand.u32 %v1088, 4294901760
        %1090 = vmatpush.msra.mxu0 %v1089
        %v1091 = vand.u32 %v347, 4294901760
        %v1092 = vsub.f32 %v347, %v1091
        %v1093 = vand.u32 %v1092, 4294901760
        %1094 = vmatpush.msra.mxu0 %v1093
        %v1095 = vand.u32 %v346, 4294901760
        %v1096 = vsub.f32 %v346, %v1095
        %v1097 = vand.u32 %v1096, 4294901760
        %1098 = vmatpush.msra.mxu0 %v1097
        %v1099 = vand.u32 %v345, 4294901760
        %v1100 = vsub.f32 %v345, %v1099
        %v1101 = vand.u32 %v1100, 4294901760
        %1102 = vmatpush.msra.mxu0 %v1101
        %v1103 = vand.u32 %v344, 4294901760
        %v1104 = vsub.f32 %v344, %v1103
        %v1105 = vand.u32 %v1104, 4294901760
        %1106 = vmatpush.msra.mxu0 %v1105
        %v1107 = vand.u32 %v343, 4294901760
        %v1108 = vsub.f32 %v343, %v1107
        %v1109 = vand.u32 %v1108, 4294901760
        %1110 = vmatpush.msra.mxu0 %v1109
        %v1111 = vand.u32 %v342, 4294901760
        %v1112 = vsub.f32 %v342, %v1111
        %v1113 = vand.u32 %v1112, 4294901760
        %1114 = vmatpush.msra.mxu0 %v1113
        %v1115 = vand.u32 %v472, 4294901760
        %1116 = vmatmul.f32.gmra.mxu0 %v1115
        %v1117 = vpop.f32.mrf.mxu0
        %v1118 = vadd.f32 %v1049, %v1117
        %1119 = vdwg.mxu0
        %v1120 = vand.u32 %v357, 4294901760
        %1121 = vmatpush.msra.mxu0 %v1120
        %v1122 = vand.u32 %v356, 4294901760
        %1123 = vmatpush.msra.mxu0 %v1122
        %v1124 = vand.u32 %v355, 4294901760
        %1125 = vmatpush.msra.mxu0 %v1124
        %v1126 = vand.u32 %v354, 4294901760
        %1127 = vmatpush.msra.mxu0 %v1126
        %v1128 = vand.u32 %v353, 4294901760
        %1129 = vmatpush.msra.mxu0 %v1128
        %v1130 = vand.u32 %v352, 4294901760
        %1131 = vmatpush.msra.mxu0 %v1130
        %v1132 = vand.u32 %v351, 4294901760
        %1133 = vmatpush.msra.mxu0 %v1132
        %v1134 = vand.u32 %v350, 4294901760
        %1135 = vmatpush.msra.mxu0 %v1134
        %v1136 = vand.u32 %v349, 4294901760
        %1137 = vmatpush.msra.mxu0 %v1136
        %v1138 = vand.u32 %v348, 4294901760
        %1139 = vmatpush.msra.mxu0 %v1138
        %v1140 = vand.u32 %v347, 4294901760
        %1141 = vmatpush.msra.mxu0 %v1140
        %v1142 = vand.u32 %v346, 4294901760
        %1143 = vmatpush.msra.mxu0 %v1142
        %v1144 = vand.u32 %v345, 4294901760
        %1145 = vmatpush.msra.mxu0 %v1144
        %v1146 = vand.u32 %v344, 4294901760
        %1147 = vmatpush.msra.mxu0 %v1146
        %v1148 = vand.u32 %v343, 4294901760
        %1149 = vmatpush.msra.mxu0 %v1148
        %v1150 = vand.u32 %v342, 4294901760
        %1151 = vmatpush.msra.mxu0 %v1150
        %v1152 = vand.u32 %v472, 4294901760
        %1153 = vmatmul.f32.gmra.mxu0 %v1152
        %v1154 = vpop.f32.mrf.mxu0
        %v1155 = vadd.f32 %v1118, %v1154
        %1156 = vdwg.mxu0
        %v1157 = vand.u32 %v373, 4294901760
        %1158 = vmatpush.msra.mxu0 %v1157
        %v1159 = vand.u32 %v372, 4294901760
        %1160 = vmatpush.msra.mxu0 %v1159
        %v1161 = vand.u32 %v371, 4294901760
        %1162 = vmatpush.msra.mxu0 %v1161
        %v1163 = vand.u32 %v370, 4294901760
        %1164 = vmatpush.msra.mxu0 %v1163
        %v1165 = vand.u32 %v369, 4294901760
        %1166 = vmatpush.msra.mxu0 %v1165
        %v1167 = vand.u32 %v368, 4294901760
        %1168 = vmatpush.msra.mxu0 %v1167
        %v1169 = vand.u32 %v367, 4294901760
        %1170 = vmatpush.msra.mxu0 %v1169
        %v1171 = vand.u32 %v366, 4294901760
        %1172 = vmatpush.msra.mxu0 %v1171
        %v1173 = vand.u32 %v365, 4294901760
        %1174 = vmatpush.msra.mxu0 %v1173
        %v1175 = vand.u32 %v364, 4294901760
        %1176 = vmatpush.msra.mxu0 %v1175
        %v1177 = vand.u32 %v363, 4294901760
        %1178 = vmatpush.msra.mxu0 %v1177
        %v1179 = vand.u32 %v362, 4294901760
        %1180 = vmatpush.msra.mxu0 %v1179
        %v1181 = vand.u32 %v361, 4294901760
        %1182 = vmatpush.msra.mxu0 %v1181
        %v1183 = vand.u32 %v360, 4294901760
        %1184 = vmatpush.msra.mxu0 %v1183
        %v1185 = vand.u32 %v359, 4294901760
        %1186 = vmatpush.msra.mxu0 %v1185
        %v1187 = vand.u32 %v358, 4294901760
        %1188 = vmatpush.msra.mxu0 %v1187
        %v1189 = vand.u32 %v471, 4294901760
        %v1190 = vsub.f32 %v471, %v1189
        %v1191 = vand.u32 %v1190, 4294901760
        %v1192 = vsub.f32 %v1190, %v1191
        %v1193 = vand.u32 %v1192, 4294901760
        %1194 = vmatmul.f32.gmra.mxu0 %v1193
        %v1195 = vpop.f32.mrf.mxu0
        %v1196 = vadd.f32 0.0, %v1195
        %1197 = vdwg.mxu0
        %v1198 = vand.u32 %v373, 4294901760
        %v1199 = vsub.f32 %v373, %v1198
        %v1200 = vand.u32 %v1199, 4294901760
        %v1201 = vsub.f32 %v1199, %v1200
        %v1202 = vand.u32 %v1201, 4294901760
        %1203 = vmatpush.msra.mxu0 %v1202
        %v1204 = vand.u32 %v372, 4294901760
        %v1205 = vsub.f32 %v372, %v1204
        %v1206 = vand.u32 %v1205, 4294901760
        %v1207 = vsub.f32 %v1205, %v1206
        %v1208 = vand.u32 %v1207, 4294901760
        %1209 = vmatpush.msra.mxu0 %v1208
        %v1210 = vand.u32 %v371, 4294901760
        %v1211 = vsub.f32 %v371, %v1210
        %v1212 = vand.u32 %v1211, 4294901760
        %v1213 = vsub.f32 %v1211, %v1212
        %v1214 = vand.u32 %v1213, 4294901760
        %1215 = vmatpush.msra.mxu0 %v1214
        %v1216 = vand.u32 %v370, 4294901760
        %v1217 = vsub.f32 %v370, %v1216
        %v1218 = vand.u32 %v1217, 4294901760
        %v1219 = vsub.f32 %v1217, %v1218
        %v1220 = vand.u32 %v1219, 4294901760
        %1221 = vmatpush.msra.mxu0 %v1220
        %v1222 = vand.u32 %v369, 4294901760
        %v1223 = vsub.f32 %v369, %v1222
        %v1224 = vand.u32 %v1223, 4294901760
        %v1225 = vsub.f32 %v1223, %v1224
        %v1226 = vand.u32 %v1225, 4294901760
        %1227 = vmatpush.msra.mxu0 %v1226
        %v1228 = vand.u32 %v368, 4294901760
        %v1229 = vsub.f32 %v368, %v1228
        %v1230 = vand.u32 %v1229, 4294901760
        %v1231 = vsub.f32 %v1229, %v1230
        %v1232 = vand.u32 %v1231, 4294901760
        %1233 = vmatpush.msra.mxu0 %v1232
        %v1234 = vand.u32 %v367, 4294901760
        %v1235 = vsub.f32 %v367, %v1234
        %v1236 = vand.u32 %v1235, 4294901760
        %v1237 = vsub.f32 %v1235, %v1236
        %v1238 = vand.u32 %v1237, 4294901760
        %1239 = vmatpush.msra.mxu0 %v1238
        %v1240 = vand.u32 %v366, 4294901760
        %v1241 = vsub.f32 %v366, %v1240
        %v1242 = vand.u32 %v1241, 4294901760
        %v1243 = vsub.f32 %v1241, %v1242
        %v1244 = vand.u32 %v1243, 4294901760
        %1245 = vmatpush.msra.mxu0 %v1244
        %v1246 = vand.u32 %v365, 4294901760
        %v1247 = vsub.f32 %v365, %v1246
        %v1248 = vand.u32 %v1247, 4294901760
        %v1249 = vsub.f32 %v1247, %v1248
        %v1250 = vand.u32 %v1249, 4294901760
        %1251 = vmatpush.msra.mxu0 %v1250
        %v1252 = vand.u32 %v364, 4294901760
        %v1253 = vsub.f32 %v364, %v1252
        %v1254 = vand.u32 %v1253, 4294901760
        %v1255 = vsub.f32 %v1253, %v1254
        %v1256 = vand.u32 %v1255, 4294901760
        %1257 = vmatpush.msra.mxu0 %v1256
        %v1258 = vand.u32 %v363, 4294901760
        %v1259 = vsub.f32 %v363, %v1258
        %v1260 = vand.u32 %v1259, 4294901760
        %v1261 = vsub.f32 %v1259, %v1260
        %v1262 = vand.u32 %v1261, 4294901760
        %1263 = vmatpush.msra.mxu0 %v1262
        %v1264 = vand.u32 %v362, 4294901760
        %v1265 = vsub.f32 %v362, %v1264
        %v1266 = vand.u32 %v1265, 4294901760
        %v1267 = vsub.f32 %v1265, %v1266
        %v1268 = vand.u32 %v1267, 4294901760
        %1269 = vmatpush.msra.mxu0 %v1268
        %v1270 = vand.u32 %v361, 4294901760
        %v1271 = vsub.f32 %v361, %v1270
        %v1272 = vand.u32 %v1271, 4294901760
        %v1273 = vsub.f32 %v1271, %v1272
        %v1274 = vand.u32 %v1273, 4294901760
        %1275 = vmatpush.msra.mxu0 %v1274
        %v1276 = vand.u32 %v360, 4294901760
        %v1277 = vsub.f32 %v360, %v1276
        %v1278 = vand.u32 %v1277, 4294901760
        %v1279 = vsub.f32 %v1277, %v1278
        %v1280 = vand.u32 %v1279, 4294901760
        %1281 = vmatpush.msra.mxu0 %v1280
        %v1282 = vand.u32 %v359, 4294901760
        %v1283 = vsub.f32 %v359, %v1282
        %v1284 = vand.u32 %v1283, 4294901760
        %v1285 = vsub.f32 %v1283, %v1284
        %v1286 = vand.u32 %v1285, 4294901760
        %1287 = vmatpush.msra.mxu0 %v1286
        %v1288 = vand.u32 %v358, 4294901760
        %v1289 = vsub.f32 %v358, %v1288
        %v1290 = vand.u32 %v1289, 4294901760
        %v1291 = vsub.f32 %v1289, %v1290
        %v1292 = vand.u32 %v1291, 4294901760
        %1293 = vmatpush.msra.mxu0 %v1292
        %v1294 = vand.u32 %v471, 4294901760
        %1295 = vmatmul.f32.gmra.mxu0 %v1294
        %v1296 = vpop.f32.mrf.mxu0
        %v1297 = vadd.f32 %v1196, %v1296
        %1298 = vdwg.mxu0
        %v1299 = vand.u32 %v373, 4294901760
        %v1300 = vsub.f32 %v373, %v1299
        %1301 = vmatpush.msra.mxu0 %v1300
        %v1302 = vand.u32 %v372, 4294901760
        %v1303 = vsub.f32 %v372, %v1302
        %1304 = vmatpush.msra.mxu0 %v1303
        %v1305 = vand.u32 %v371, 4294901760
        %v1306 = vsub.f32 %v371, %v1305
        %1307 = vmatpush.msra.mxu0 %v1306
        %v1308 = vand.u32 %v370, 4294901760
        %v1309 = vsub.f32 %v370, %v1308
        %1310 = vmatpush.msra.mxu0 %v1309
        %v1311 = vand.u32 %v369, 4294901760
        %v1312 = vsub.f32 %v369, %v1311
        %1313 = vmatpush.msra.mxu0 %v1312
        %v1314 = vand.u32 %v368, 4294901760
        %v1315 = vsub.f32 %v368, %v1314
        %1316 = vmatpush.msra.mxu0 %v1315
        %v1317 = vand.u32 %v367, 4294901760
        %v1318 = vsub.f32 %v367, %v1317
        %1319 = vmatpush.msra.mxu0 %v1318
        %v1320 = vand.u32 %v366, 4294901760
        %v1321 = vsub.f32 %v366, %v1320
        %1322 = vmatpush.msra.mxu0 %v1321
        %v1323 = vand.u32 %v365, 4294901760
        %v1324 = vsub.f32 %v365, %v1323
        %1325 = vmatpush.msra.mxu0 %v1324
        %v1326 = vand.u32 %v364, 4294901760
        %v1327 = vsub.f32 %v364, %v1326
        %1328 = vmatpush.msra.mxu0 %v1327
        %v1329 = vand.u32 %v363, 4294901760
        %v1330 = vsub.f32 %v363, %v1329
        %1331 = vmatpush.msra.mxu0 %v1330
        %v1332 = vand.u32 %v362, 4294901760
        %v1333 = vsub.f32 %v362, %v1332
        %1334 = vmatpush.msra.mxu0 %v1333
        %v1335 = vand.u32 %v361, 4294901760
        %v1336 = vsub.f32 %v361, %v1335
        %1337 = vmatpush.msra.mxu0 %v1336
        %v1338 = vand.u32 %v360, 4294901760
        %v1339 = vsub.f32 %v360, %v1338
        %1340 = vmatpush.msra.mxu0 %v1339
        %v1341 = vand.u32 %v359, 4294901760
        %v1342 = vsub.f32 %v359, %v1341
        %1343 = vmatpush.msra.mxu0 %v1342
        %v1344 = vand.u32 %v358, 4294901760
        %v1345 = vsub.f32 %v358, %v1344
        %1346 = vmatpush.msra.mxu0 %v1345
        %v1347 = vand.u32 %v471, 4294901760
        %v1348 = vsub.f32 %v471, %v1347
        %1349 = vmatmul.f32.gmra.mxu0 %v1348
        %v1350 = vpop.f32.mrf.mxu0
        %v1351 = vadd.f32 %v1297, %v1350
        %1352 = vdwg.mxu0
        %v1353 = vand.u32 %v373, 4294901760
        %1354 = vmatpush.msra.mxu0 %v1353
        %v1355 = vand.u32 %v372, 4294901760
        %1356 = vmatpush.msra.mxu0 %v1355
        %v1357 = vand.u32 %v371, 4294901760
        %1358 = vmatpush.msra.mxu0 %v1357
        %v1359 = vand.u32 %v370, 4294901760
        %1360 = vmatpush.msra.mxu0 %v1359
        %v1361 = vand.u32 %v369, 4294901760
        %1362 = vmatpush.msra.mxu0 %v1361
        %v1363 = vand.u32 %v368, 4294901760
        %1364 = vmatpush.msra.mxu0 %v1363
        %v1365 = vand.u32 %v367, 4294901760
        %1366 = vmatpush.msra.mxu0 %v1365
        %v1367 = vand.u32 %v366, 4294901760
        %1368 = vmatpush.msra.mxu0 %v1367
        %v1369 = vand.u32 %v365, 4294901760
        %1370 = vmatpush.msra.mxu0 %v1369
        %v1371 = vand.u32 %v364, 4294901760
        %1372 = vmatpush.msra.mxu0 %v1371
        %v1373 = vand.u32 %v363, 4294901760
        %1374 = vmatpush.msra.mxu0 %v1373
        %v1375 = vand.u32 %v362, 4294901760
        %1376 = vmatpush.msra.mxu0 %v1375
        %v1377 = vand.u32 %v361, 4294901760
        %1378 = vmatpush.msra.mxu0 %v1377
        %v1379 = vand.u32 %v360, 4294901760
        %1380 = vmatpush.msra.mxu0 %v1379
        %v1381 = vand.u32 %v359, 4294901760
        %1382 = vmatpush.msra.mxu0 %v1381
        %v1383 = vand.u32 %v358, 4294901760
        %1384 = vmatpush.msra.mxu0 %v1383
        %v1385 = vand.u32 %v471, 4294901760
        %v1386 = vsub.f32 %v471, %v1385
        %v1387 = vand.u32 %v1386, 4294901760
        %1388 = vmatmul.f32.gmra.mxu0 %v1387
        %v1389 = vpop.f32.mrf.mxu0
        %v1390 = vadd.f32 %v1351, %v1389
        %1391 = vdwg.mxu0
        %v1392 = vand.u32 %v373, 4294901760
        %v1393 = vsub.f32 %v373, %v1392
        %v1394 = vand.u32 %v1393, 4294901760
        %1395 = vmatpush.msra.mxu0 %v1394
        %v1396 = vand.u32 %v372, 4294901760
        %v1397 = vsub.f32 %v372, %v1396
        %v1398 = vand.u32 %v1397, 4294901760
        %1399 = vmatpush.msra.mxu0 %v1398
        %v1400 = vand.u32 %v371, 4294901760
        %v1401 = vsub.f32 %v371, %v1400
        %v1402 = vand.u32 %v1401, 4294901760
        %1403 = vmatpush.msra.mxu0 %v1402
        %v1404 = vand.u32 %v370, 4294901760
        %v1405 = vsub.f32 %v370, %v1404
        %v1406 = vand.u32 %v1405, 4294901760
        %1407 = vmatpush.msra.mxu0 %v1406
        %v1408 = vand.u32 %v369, 4294901760
        %v1409 = vsub.f32 %v369, %v1408
        %v1410 = vand.u32 %v1409, 4294901760
        %1411 = vmatpush.msra.mxu0 %v1410
        %v1412 = vand.u32 %v368, 4294901760
        %v1413 = vsub.f32 %v368, %v1412
        %v1414 = vand.u32 %v1413, 4294901760
        %1415 = vmatpush.msra.mxu0 %v1414
        %v1416 = vand.u32 %v367, 4294901760
        %v1417 = vsub.f32 %v367, %v1416
        %v1418 = vand.u32 %v1417, 4294901760
        %1419 = vmatpush.msra.mxu0 %v1418
        %v1420 = vand.u32 %v366, 4294901760
        %v1421 = vsub.f32 %v366, %v1420
        %v1422 = vand.u32 %v1421, 4294901760
        %1423 = vmatpush.msra.mxu0 %v1422
        %v1424 = vand.u32 %v365, 4294901760
        %v1425 = vsub.f32 %v365, %v1424
        %v1426 = vand.u32 %v1425, 4294901760
        %1427 = vmatpush.msra.mxu0 %v1426
        %v1428 = vand.u32 %v364, 4294901760
        %v1429 = vsub.f32 %v364, %v1428
        %v1430 = vand.u32 %v1429, 4294901760
        %1431 = vmatpush.msra.mxu0 %v1430
        %v1432 = vand.u32 %v363, 4294901760
        %v1433 = vsub.f32 %v363, %v1432
        %v1434 = vand.u32 %v1433, 4294901760
        %1435 = vmatpush.msra.mxu0 %v1434
        %v1436 = vand.u32 %v362, 4294901760
        %v1437 = vsub.f32 %v362, %v1436
        %v1438 = vand.u32 %v1437, 4294901760
        %1439 = vmatpush.msra.mxu0 %v1438
        %v1440 = vand.u32 %v361, 4294901760
        %v1441 = vsub.f32 %v361, %v1440
        %v1442 = vand.u32 %v1441, 4294901760
        %1443 = vmatpush.msra.mxu0 %v1442
        %v1444 = vand.u32 %v360, 4294901760
        %v1445 = vsub.f32 %v360, %v1444
        %v1446 = vand.u32 %v1445, 4294901760
        %1447 = vmatpush.msra.mxu0 %v1446
        %v1448 = vand.u32 %v359, 4294901760
        %v1449 = vsub.f32 %v359, %v1448
        %v1450 = vand.u32 %v1449, 4294901760
        %1451 = vmatpush.msra.mxu0 %v1450
        %v1452 = vand.u32 %v358, 4294901760
        %v1453 = vsub.f32 %v358, %v1452
        %v1454 = vand.u32 %v1453, 4294901760
        %1455 = vmatpush.msra.mxu0 %v1454
        %v1456 = vand.u32 %v471, 4294901760
        %1457 = vmatmul.f32.gmra.mxu0 %v1456
        %v1458 = vpop.f32.mrf.mxu0
        %v1459 = vadd.f32 %v1390, %v1458
        %1460 = vdwg.mxu0
        %v1461 = vand.u32 %v373, 4294901760
        %1462 = vmatpush.msra.mxu0 %v1461
        %v1463 = vand.u32 %v372, 4294901760
        %1464 = vmatpush.msra.mxu0 %v1463
        %v1465 = vand.u32 %v371, 4294901760
        %1466 = vmatpush.msra.mxu0 %v1465
        %v1467 = vand.u32 %v370, 4294901760
        %1468 = vmatpush.msra.mxu0 %v1467
        %v1469 = vand.u32 %v369, 4294901760
        %1470 = vmatpush.msra.mxu0 %v1469
        %v1471 = vand.u32 %v368, 4294901760
        %1472 = vmatpush.msra.mxu0 %v1471
        %v1473 = vand.u32 %v367, 4294901760
        %1474 = vmatpush.msra.mxu0 %v1473
        %v1475 = vand.u32 %v366, 4294901760
        %1476 = vmatpush.msra.mxu0 %v1475
        %v1477 = vand.u32 %v365, 4294901760
        %1478 = vmatpush.msra.mxu0 %v1477
        %v1479 = vand.u32 %v364, 4294901760
        %1480 = vmatpush.msra.mxu0 %v1479
        %v1481 = vand.u32 %v363, 4294901760
        %1482 = vmatpush.msra.mxu0 %v1481
        %v1483 = vand.u32 %v362, 4294901760
        %1484 = vmatpush.msra.mxu0 %v1483
        %v1485 = vand.u32 %v361, 4294901760
        %1486 = vmatpush.msra.mxu0 %v1485
        %v1487 = vand.u32 %v360, 4294901760
        %1488 = vmatpush.msra.mxu0 %v1487
        %v1489 = vand.u32 %v359, 4294901760
        %1490 = vmatpush.msra.mxu0 %v1489
        %v1491 = vand.u32 %v358, 4294901760
        %1492 = vmatpush.msra.mxu0 %v1491
        %v1493 = vand.u32 %v471, 4294901760
        %1494 = vmatmul.f32.gmra.mxu0 %v1493
        %v1495 = vpop.f32.mrf.mxu0
        %v1496 = vadd.f32 %v1459, %v1495
        %1497 = vdwg.mxu0
        %v1498 = vand.u32 %v389, 4294901760
        %1499 = vmatpush.msra.mxu0 %v1498
        %v1500 = vand.u32 %v388, 4294901760
        %1501 = vmatpush.msra.mxu0 %v1500
        %v1502 = vand.u32 %v387, 4294901760
        %1503 = vmatpush.msra.mxu0 %v1502
        %v1504 = vand.u32 %v386, 4294901760
        %1505 = vmatpush.msra.mxu0 %v1504
        %v1506 = vand.u32 %v385, 4294901760
        %1507 = vmatpush.msra.mxu0 %v1506
        %v1508 = vand.u32 %v384, 4294901760
        %1509 = vmatpush.msra.mxu0 %v1508
        %v1510 = vand.u32 %v383, 4294901760
        %1511 = vmatpush.msra.mxu0 %v1510
        %v1512 = vand.u32 %v382, 4294901760
        %1513 = vmatpush.msra.mxu0 %v1512
        %v1514 = vand.u32 %v381, 4294901760
        %1515 = vmatpush.msra.mxu0 %v1514
        %v1516 = vand.u32 %v380, 4294901760
        %1517 = vmatpush.msra.mxu0 %v1516
        %v1518 = vand.u32 %v379, 4294901760
        %1519 = vmatpush.msra.mxu0 %v1518
        %v1520 = vand.u32 %v378, 4294901760
        %1521 = vmatpush.msra.mxu0 %v1520
        %v1522 = vand.u32 %v377, 4294901760
        %1523 = vmatpush.msra.mxu0 %v1522
        %v1524 = vand.u32 %v376, 4294901760
        %1525 = vmatpush.msra.mxu0 %v1524
        %v1526 = vand.u32 %v375, 4294901760
        %1527 = vmatpush.msra.mxu0 %v1526
        %v1528 = vand.u32 %v374, 4294901760
        %1529 = vmatpush.msra.mxu0 %v1528
        %v1530 = vand.u32 %v472, 4294901760
        %v1531 = vsub.f32 %v472, %v1530
        %v1532 = vand.u32 %v1531, 4294901760
        %v1533 = vsub.f32 %v1531, %v1532
        %v1534 = vand.u32 %v1533, 4294901760
        %1535 = vmatmul.f32.gmra.mxu0 %v1534
        %v1536 = vpop.f32.mrf.mxu0
        %v1537 = vadd.f32 %v1496, %v1536
        %1538 = vdwg.mxu0
        %v1539 = vand.u32 %v389, 4294901760
        %v1540 = vsub.f32 %v389, %v1539
        %v1541 = vand.u32 %v1540, 4294901760
        %v1542 = vsub.f32 %v1540, %v1541
        %v1543 = vand.u32 %v1542, 4294901760
        %1544 = vmatpush.msra.mxu0 %v1543
        %v1545 = vand.u32 %v388, 4294901760
        %v1546 = vsub.f32 %v388, %v1545
        %v1547 = vand.u32 %v1546, 4294901760
        %v1548 = vsub.f32 %v1546, %v1547
        %v1549 = vand.u32 %v1548, 4294901760
        %1550 = vmatpush.msra.mxu0 %v1549
        %v1551 = vand.u32 %v387, 4294901760
        %v1552 = vsub.f32 %v387, %v1551
        %v1553 = vand.u32 %v1552, 4294901760
        %v1554 = vsub.f32 %v1552, %v1553
        %v1555 = vand.u32 %v1554, 4294901760
        %1556 = vmatpush.msra.mxu0 %v1555
        %v1557 = vand.u32 %v386, 4294901760
        %v1558 = vsub.f32 %v386, %v1557
        %v1559 = vand.u32 %v1558, 4294901760
        %v1560 = vsub.f32 %v1558, %v1559
        %v1561 = vand.u32 %v1560, 4294901760
        %1562 = vmatpush.msra.mxu0 %v1561
        %v1563 = vand.u32 %v385, 4294901760
        %v1564 = vsub.f32 %v385, %v1563
        %v1565 = vand.u32 %v1564, 4294901760
        %v1566 = vsub.f32 %v1564, %v1565
        %v1567 = vand.u32 %v1566, 4294901760
        %1568 = vmatpush.msra.mxu0 %v1567
        %v1569 = vand.u32 %v384, 4294901760
        %v1570 = vsub.f32 %v384, %v1569
        %v1571 = vand.u32 %v1570, 4294901760
        %v1572 = vsub.f32 %v1570, %v1571
        %v1573 = vand.u32 %v1572, 4294901760
        %1574 = vmatpush.msra.mxu0 %v1573
        %v1575 = vand.u32 %v383, 4294901760
        %v1576 = vsub.f32 %v383, %v1575
        %v1577 = vand.u32 %v1576, 4294901760
        %v1578 = vsub.f32 %v1576, %v1577
        %v1579 = vand.u32 %v1578, 4294901760
        %1580 = vmatpush.msra.mxu0 %v1579
        %v1581 = vand.u32 %v382, 4294901760
        %v1582 = vsub.f32 %v382, %v1581
        %v1583 = vand.u32 %v1582, 4294901760
        %v1584 = vsub.f32 %v1582, %v1583
        %v1585 = vand.u32 %v1584, 4294901760
        %1586 = vmatpush.msra.mxu0 %v1585
        %v1587 = vand.u32 %v381, 4294901760
        %v1588 = vsub.f32 %v381, %v1587
        %v1589 = vand.u32 %v1588, 4294901760
        %v1590 = vsub.f32 %v1588, %v1589
        %v1591 = vand.u32 %v1590, 4294901760
        %1592 = vmatpush.msra.mxu0 %v1591
        %v1593 = vand.u32 %v380, 4294901760
        %v1594 = vsub.f32 %v380, %v1593
        %v1595 = vand.u32 %v1594, 4294901760
        %v1596 = vsub.f32 %v1594, %v1595
        %v1597 = vand.u32 %v1596, 4294901760
        %1598 = vmatpush.msra.mxu0 %v1597
        %v1599 = vand.u32 %v379, 4294901760
        %v1600 = vsub.f32 %v379, %v1599
        %v1601 = vand.u32 %v1600, 4294901760
        %v1602 = vsub.f32 %v1600, %v1601
        %v1603 = vand.u32 %v1602, 4294901760
        %1604 = vmatpush.msra.mxu0 %v1603
        %v1605 = vand.u32 %v378, 4294901760
        %v1606 = vsub.f32 %v378, %v1605
        %v1607 = vand.u32 %v1606, 4294901760
        %v1608 = vsub.f32 %v1606, %v1607
        %v1609 = vand.u32 %v1608, 4294901760
        %1610 = vmatpush.msra.mxu0 %v1609
        %v1611 = vand.u32 %v377, 4294901760
        %v1612 = vsub.f32 %v377, %v1611
        %v1613 = vand.u32 %v1612, 4294901760
        %v1614 = vsub.f32 %v1612, %v1613
        %v1615 = vand.u32 %v1614, 4294901760
        %1616 = vmatpush.msra.mxu0 %v1615
        %v1617 = vand.u32 %v376, 4294901760
        %v1618 = vsub.f32 %v376, %v1617
        %v1619 = vand.u32 %v1618, 4294901760
        %v1620 = vsub.f32 %v1618, %v1619
        %v1621 = vand.u32 %v1620, 4294901760
        %1622 = vmatpush.msra.mxu0 %v1621
        %v1623 = vand.u32 %v375, 4294901760
        %v1624 = vsub.f32 %v375, %v1623
        %v1625 = vand.u32 %v1624, 4294901760
        %v1626 = vsub.f32 %v1624, %v1625
        %v1627 = vand.u32 %v1626, 4294901760
        %1628 = vmatpush.msra.mxu0 %v1627
        %v1629 = vand.u32 %v374, 4294901760
        %v1630 = vsub.f32 %v374, %v1629
        %v1631 = vand.u32 %v1630, 4294901760
        %v1632 = vsub.f32 %v1630, %v1631
        %v1633 = vand.u32 %v1632, 4294901760
        %1634 = vmatpush.msra.mxu0 %v1633
        %v1635 = vand.u32 %v472, 4294901760
        %1636 = vmatmul.f32.gmra.mxu0 %v1635
        %v1637 = vpop.f32.mrf.mxu0
        %v1638 = vadd.f32 %v1537, %v1637
        %1639 = vdwg.mxu0
        %v1640 = vand.u32 %v389, 4294901760
        %v1641 = vsub.f32 %v389, %v1640
        %1642 = vmatpush.msra.mxu0 %v1641
        %v1643 = vand.u32 %v388, 4294901760
        %v1644 = vsub.f32 %v388, %v1643
        %1645 = vmatpush.msra.mxu0 %v1644
        %v1646 = vand.u32 %v387, 4294901760
        %v1647 = vsub.f32 %v387, %v1646
        %1648 = vmatpush.msra.mxu0 %v1647
        %v1649 = vand.u32 %v386, 4294901760
        %v1650 = vsub.f32 %v386, %v1649
        %1651 = vmatpush.msra.mxu0 %v1650
        %v1652 = vand.u32 %v385, 4294901760
        %v1653 = vsub.f32 %v385, %v1652
        %1654 = vmatpush.msra.mxu0 %v1653
        %v1655 = vand.u32 %v384, 4294901760
        %v1656 = vsub.f32 %v384, %v1655
        %1657 = vmatpush.msra.mxu0 %v1656
        %v1658 = vand.u32 %v383, 4294901760
        %v1659 = vsub.f32 %v383, %v1658
        %1660 = vmatpush.msra.mxu0 %v1659
        %v1661 = vand.u32 %v382, 4294901760
        %v1662 = vsub.f32 %v382, %v1661
        %1663 = vmatpush.msra.mxu0 %v1662
        %v1664 = vand.u32 %v381, 4294901760
        %v1665 = vsub.f32 %v381, %v1664
        %1666 = vmatpush.msra.mxu0 %v1665
        %v1667 = vand.u32 %v380, 4294901760
        %v1668 = vsub.f32 %v380, %v1667
        %1669 = vmatpush.msra.mxu0 %v1668
        %v1670 = vand.u32 %v379, 4294901760
        %v1671 = vsub.f32 %v379, %v1670
        %1672 = vmatpush.msra.mxu0 %v1671
        %v1673 = vand.u32 %v378, 4294901760
        %v1674 = vsub.f32 %v378, %v1673
        %1675 = vmatpush.msra.mxu0 %v1674
        %v1676 = vand.u32 %v377, 4294901760
        %v1677 = vsub.f32 %v377, %v1676
        %1678 = vmatpush.msra.mxu0 %v1677
        %v1679 = vand.u32 %v376, 4294901760
        %v1680 = vsub.f32 %v376, %v1679
        %1681 = vmatpush.msra.mxu0 %v1680
        %v1682 = vand.u32 %v375, 4294901760
        %v1683 = vsub.f32 %v375, %v1682
        %1684 = vmatpush.msra.mxu0 %v1683
        %v1685 = vand.u32 %v374, 4294901760
        %v1686 = vsub.f32 %v374, %v1685
        %1687 = vmatpush.msra.mxu0 %v1686
        %v1688 = vand.u32 %v472, 4294901760
        %v1689 = vsub.f32 %v472, %v1688
        %1690 = vmatmul.f32.gmra.mxu0 %v1689
        %v1691 = vpop.f32.mrf.mxu0
        %v1692 = vadd.f32 %v1638, %v1691
        %1693 = vdwg.mxu0
        %v1694 = vand.u32 %v389, 4294901760
        %1695 = vmatpush.msra.mxu0 %v1694
        %v1696 = vand.u32 %v388, 4294901760
        %1697 = vmatpush.msra.mxu0 %v1696
        %v1698 = vand.u32 %v387, 4294901760
        %1699 = vmatpush.msra.mxu0 %v1698
        %v1700 = vand.u32 %v386, 4294901760
        %1701 = vmatpush.msra.mxu0 %v1700
        %v1702 = vand.u32 %v385, 4294901760
        %1703 = vmatpush.msra.mxu0 %v1702
        %v1704 = vand.u32 %v384, 4294901760
        %1705 = vmatpush.msra.mxu0 %v1704
        %v1706 = vand.u32 %v383, 4294901760
        %1707 = vmatpush.msra.mxu0 %v1706
        %v1708 = vand.u32 %v382, 4294901760
        %1709 = vmatpush.msra.mxu0 %v1708
        %v1710 = vand.u32 %v381, 4294901760
        %1711 = vmatpush.msra.mxu0 %v1710
        %v1712 = vand.u32 %v380, 4294901760
        %1713 = vmatpush.msra.mxu0 %v1712
        %v1714 = vand.u32 %v379, 4294901760
        %1715 = vmatpush.msra.mxu0 %v1714
        %v1716 = vand.u32 %v378, 4294901760
        %1717 = vmatpush.msra.mxu0 %v1716
        %v1718 = vand.u32 %v377, 4294901760
        %1719 = vmatpush.msra.mxu0 %v1718
        %v1720 = vand.u32 %v376, 4294901760
        %1721 = vmatpush.msra.mxu0 %v1720
        %v1722 = vand.u32 %v375, 4294901760
        %1723 = vmatpush.msra.mxu0 %v1722
        %v1724 = vand.u32 %v374, 4294901760
        %1725 = vmatpush.msra.mxu0 %v1724
        %v1726 = vand.u32 %v472, 4294901760
        %v1727 = vsub.f32 %v472, %v1726
        %v1728 = vand.u32 %v1727, 4294901760
        %1729 = vmatmul.f32.gmra.mxu0 %v1728
        %v1730 = vpop.f32.mrf.mxu0
        %v1731 = vadd.f32 %v1692, %v1730
        %1732 = vdwg.mxu0
        %v1733 = vand.u32 %v389, 4294901760
        %v1734 = vsub.f32 %v389, %v1733
        %v1735 = vand.u32 %v1734, 4294901760
        %1736 = vmatpush.msra.mxu0 %v1735
        %v1737 = vand.u32 %v388, 4294901760
        %v1738 = vsub.f32 %v388, %v1737
        %v1739 = vand.u32 %v1738, 4294901760
        %1740 = vmatpush.msra.mxu0 %v1739
        %v1741 = vand.u32 %v387, 4294901760
        %v1742 = vsub.f32 %v387, %v1741
        %v1743 = vand.u32 %v1742, 4294901760
        %1744 = vmatpush.msra.mxu0 %v1743
        %v1745 = vand.u32 %v386, 4294901760
        %v1746 = vsub.f32 %v386, %v1745
        %v1747 = vand.u32 %v1746, 4294901760
        %1748 = vmatpush.msra.mxu0 %v1747
        %v1749 = vand.u32 %v385, 4294901760
        %v1750 = vsub.f32 %v385, %v1749
        %v1751 = vand.u32 %v1750, 4294901760
        %1752 = vmatpush.msra.mxu0 %v1751
        %v1753 = vand.u32 %v384, 4294901760
        %v1754 = vsub.f32 %v384, %v1753
        %v1755 = vand.u32 %v1754, 4294901760
        %1756 = vmatpush.msra.mxu0 %v1755
        %v1757 = vand.u32 %v383, 4294901760
        %v1758 = vsub.f32 %v383, %v1757
        %v1759 = vand.u32 %v1758, 4294901760
        %1760 = vmatpush.msra.mxu0 %v1759
        %v1761 = vand.u32 %v382, 4294901760
        %v1762 = vsub.f32 %v382, %v1761
        %v1763 = vand.u32 %v1762, 4294901760
        %1764 = vmatpush.msra.mxu0 %v1763
        %v1765 = vand.u32 %v381, 4294901760
        %v1766 = vsub.f32 %v381, %v1765
        %v1767 = vand.u32 %v1766, 4294901760
        %1768 = vmatpush.msra.mxu0 %v1767
        %v1769 = vand.u32 %v380, 4294901760
        %v1770 = vsub.f32 %v380, %v1769
        %v1771 = vand.u32 %v1770, 4294901760
        %1772 = vmatpush.msra.mxu0 %v1771
        %v1773 = vand.u32 %v379, 4294901760
        %v1774 = vsub.f32 %v379, %v1773
        %v1775 = vand.u32 %v1774, 4294901760
        %1776 = vmatpush.msra.mxu0 %v1775
        %v1777 = vand.u32 %v378, 4294901760
        %v1778 = vsub.f32 %v378, %v1777
        %v1779 = vand.u32 %v1778, 4294901760
        %1780 = vmatpush.msra.mxu0 %v1779
        %v1781 = vand.u32 %v377, 4294901760
        %v1782 = vsub.f32 %v377, %v1781
        %v1783 = vand.u32 %v1782, 4294901760
        %1784 = vmatpush.msra.mxu0 %v1783
        %v1785 = vand.u32 %v376, 4294901760
        %v1786 = vsub.f32 %v376, %v1785
        %v1787 = vand.u32 %v1786, 4294901760
        %1788 = vmatpush.msra.mxu0 %v1787
        %v1789 = vand.u32 %v375, 4294901760
        %v1790 = vsub.f32 %v375, %v1789
        %v1791 = vand.u32 %v1790, 4294901760
        %1792 = vmatpush.msra.mxu0 %v1791
        %v1793 = vand.u32 %v374, 4294901760
        %v1794 = vsub.f32 %v374, %v1793
        %v1795 = vand.u32 %v1794, 4294901760
        %1796 = vmatpush.msra.mxu0 %v1795
        %v1797 = vand.u32 %v472, 4294901760
        %1798 = vmatmul.f32.gmra.mxu0 %v1797
        %v1799 = vpop.f32.mrf.mxu0
        %v1800 = vadd.f32 %v1731, %v1799
        %1801 = vdwg.mxu0
        %v1802 = vand.u32 %v389, 4294901760
        %1803 = vmatpush.msra.mxu0 %v1802
        %v1804 = vand.u32 %v388, 4294901760
        %1805 = vmatpush.msra.mxu0 %v1804
        %v1806 = vand.u32 %v387, 4294901760
        %1807 = vmatpush.msra.mxu0 %v1806
        %v1808 = vand.u32 %v386, 4294901760
        %1809 = vmatpush.msra.mxu0 %v1808
        %v1810 = vand.u32 %v385, 4294901760
        %1811 = vmatpush.msra.mxu0 %v1810
        %v1812 = vand.u32 %v384, 4294901760
        %1813 = vmatpush.msra.mxu0 %v1812
        %v1814 = vand.u32 %v383, 4294901760
        %1815 = vmatpush.msra.mxu0 %v1814
        %v1816 = vand.u32 %v382, 4294901760
        %1817 = vmatpush.msra.mxu0 %v1816
        %v1818 = vand.u32 %v381, 4294901760
        %1819 = vmatpush.msra.mxu0 %v1818
        %v1820 = vand.u32 %v380, 4294901760
        %1821 = vmatpush.msra.mxu0 %v1820
        %v1822 = vand.u32 %v379, 4294901760
        %1823 = vmatpush.msra.mxu0 %v1822
        %v1824 = vand.u32 %v378, 4294901760
        %1825 = vmatpush.msra.mxu0 %v1824
        %v1826 = vand.u32 %v377, 4294901760
        %1827 = vmatpush.msra.mxu0 %v1826
        %v1828 = vand.u32 %v376, 4294901760
        %1829 = vmatpush.msra.mxu0 %v1828
        %v1830 = vand.u32 %v375, 4294901760
        %1831 = vmatpush.msra.mxu0 %v1830
        %v1832 = vand.u32 %v374, 4294901760
        %1833 = vmatpush.msra.mxu0 %v1832
        %v1834 = vand.u32 %v472, 4294901760
        %1835 = vmatmul.f32.gmra.mxu0 %v1834
        %v1836 = vpop.f32.mrf.mxu0
        %v1837 = vadd.f32 %v1800, %v1836
        %1838 = vdwg.mxu0
        %v1839 = vld [vmem:[%s3] sm:$0xff]
        %v1840 = vld [vmem:[%s3 + $0x8] sm:$0xff]
        %v1841 = vperm.slane %v390, 2
        %vm1842 = vcmask 130048
        %v1844 = vsel %vm1842, %v1155, 0
        %1846 = vmatpush.msra.mxu0 0.0
        %1847 = vmatpush.msra.mxu0 0.0
        %1848 = vmatpush.msra.mxu0 0.0
        %1849 = vmatpush.msra.mxu0 0.0
        %1850 = vmatpush.msra.mxu0 0.0
        %1851 = vmatpush.msra.mxu0 0.0
        %1852 = vmatpush.msra.mxu0 0.0
        %1853 = vmatpush.msra.mxu0 0.0
        %1854 = vmatpush.msra.mxu0 0.0
        %1855 = vmatpush.msra.mxu0 0.0
        %1856 = vmatpush.msra.mxu0 0.0
        %1857 = vmatpush.msra.mxu0 0.0
        %1858 = vmatpush.msra.mxu0 0.0
        %1859 = vmatpush.msra.mxu0 0.0
        %v1860 = vand.u32 %v1840, 4294901760
        %1861 = vmatpush.msra.mxu0 %v1860
        %v1862 = vand.u32 %v1839, 4294901760
        %1863 = vmatpush.msra.mxu0 %v1862
        %v1864 = vand.u32 %v1844, 4294901760
        %v1865 = vsub.f32 %v1844, %v1864
        %v1866 = vand.u32 %v1865, 4294901760
        %v1867 = vsub.f32 %v1865, %v1866
        %v1868 = vand.u32 %v1867, 4294901760
        %1869 = vmatmul.f32.gmra.mxu0 %v1868
        %v1870 = vpop.f32.mrf.mxu0
        %v1871 = vadd.f32 %v1841, %v1870
        %1872 = vdwg.mxu0
        %1873 = vmatpush.msra.mxu0 0.0
        %1874 = vmatpush.msra.mxu0 0.0
        %1875 = vmatpush.msra.mxu0 0.0
        %1876 = vmatpush.msra.mxu0 0.0
        %1877 = vmatpush.msra.mxu0 0.0
        %1878 = vmatpush.msra.mxu0 0.0
        %1879 = vmatpush.msra.mxu0 0.0
        %1880 = vmatpush.msra.mxu0 0.0
        %1881 = vmatpush.msra.mxu0 0.0
        %1882 = vmatpush.msra.mxu0 0.0
        %1883 = vmatpush.msra.mxu0 0.0
        %1884 = vmatpush.msra.mxu0 0.0
        %1885 = vmatpush.msra.mxu0 0.0
        %1886 = vmatpush.msra.mxu0 0.0
        %v1887 = vand.u32 %v1840, 4294901760
        %v1888 = vsub.f32 %v1840, %v1887
        %v1889 = vand.u32 %v1888, 4294901760
        %v1890 = vsub.f32 %v1888, %v1889
        %v1891 = vand.u32 %v1890, 4294901760
        %1892 = vmatpush.msra.mxu0 %v1891
        %v1893 = vand.u32 %v1839, 4294901760
        %v1894 = vsub.f32 %v1839, %v1893
        %v1895 = vand.u32 %v1894, 4294901760
        %v1896 = vsub.f32 %v1894, %v1895
        %v1897 = vand.u32 %v1896, 4294901760
        %1898 = vmatpush.msra.mxu0 %v1897
        %v1899 = vand.u32 %v1844, 4294901760
        %1900 = vmatmul.f32.gmra.mxu0 %v1899
        %v1901 = vpop.f32.mrf.mxu0
        %v1902 = vadd.f32 %v1871, %v1901
        %1903 = vdwg.mxu0
        %1904 = vmatpush.msra.mxu0 0.0
        %1905 = vmatpush.msra.mxu0 0.0
        %1906 = vmatpush.msra.mxu0 0.0
        %1907 = vmatpush.msra.mxu0 0.0
        %1908 = vmatpush.msra.mxu0 0.0
        %1909 = vmatpush.msra.mxu0 0.0
        %1910 = vmatpush.msra.mxu0 0.0
        %1911 = vmatpush.msra.mxu0 0.0
        %1912 = vmatpush.msra.mxu0 0.0
        %1913 = vmatpush.msra.mxu0 0.0
        %1914 = vmatpush.msra.mxu0 0.0
        %1915 = vmatpush.msra.mxu0 0.0
        %1916 = vmatpush.msra.mxu0 0.0
        %1917 = vmatpush.msra.mxu0 0.0
        %v1918 = vand.u32 %v1840, 4294901760
        %v1919 = vsub.f32 %v1840, %v1918
        %1920 = vmatpush.msra.mxu0 %v1919
        %v1921 = vand.u32 %v1839, 4294901760
        %v1922 = vsub.f32 %v1839, %v1921
        %1923 = vmatpush.msra.mxu0 %v1922
        %v1924 = vand.u32 %v1844, 4294901760
        %v1925 = vsub.f32 %v1844, %v1924
        %1926 = vmatmul.f32.gmra.mxu0 %v1925
        %v1927 = vpop.f32.mrf.mxu0
        %v1928 = vadd.f32 %v1902, %v1927
        %1929 = vdwg.mxu0
        %1930 = vmatpush.msra.mxu0 0.0
        %1931 = vmatpush.msra.mxu0 0.0
        %1932 = vmatpush.msra.mxu0 0.0
        %1933 = vmatpush.msra.mxu0 0.0
        %1934 = vmatpush.msra.mxu0 0.0
        %1935 = vmatpush.msra.mxu0 0.0
        %1936 = vmatpush.msra.mxu0 0.0
        %1937 = vmatpush.msra.mxu0 0.0
        %1938 = vmatpush.msra.mxu0 0.0
        %1939 = vmatpush.msra.mxu0 0.0
        %1940 = vmatpush.msra.mxu0 0.0
        %1941 = vmatpush.msra.mxu0 0.0
        %1942 = vmatpush.msra.mxu0 0.0
        %1943 = vmatpush.msra.mxu0 0.0
        %v1944 = vand.u32 %v1840, 4294901760
        %1945 = vmatpush.msra.mxu0 %v1944
        %v1946 = vand.u32 %v1839, 4294901760
        %1947 = vmatpush.msra.mxu0 %v1946
        %v1948 = vand.u32 %v1844, 4294901760
        %v1949 = vsub.f32 %v1844, %v1948
        %v1950 = vand.u32 %v1949, 4294901760
        %1951 = vmatmul.f32.gmra.mxu0 %v1950
        %v1952 = vpop.f32.mrf.mxu0
        %v1953 = vadd.f32 %v1928, %v1952
        %1954 = vdwg.mxu0
        %1955 = vmatpush.msra.mxu0 0.0
        %1956 = vmatpush.msra.mxu0 0.0
        %1957 = vmatpush.msra.mxu0 0.0
        %1958 = vmatpush.msra.mxu0 0.0
        %1959 = vmatpush.msra.mxu0 0.0
        %1960 = vmatpush.msra.mxu0 0.0
        %1961 = vmatpush.msra.mxu0 0.0
        %1962 = vmatpush.msra.mxu0 0.0
        %1963 = vmatpush.msra.mxu0 0.0
        %1964 = vmatpush.msra.mxu0 0.0
        %1965 = vmatpush.msra.mxu0 0.0
        %1966 = vmatpush.msra.mxu0 0.0
        %1967 = vmatpush.msra.mxu0 0.0
        %1968 = vmatpush.msra.mxu0 0.0
        %v1969 = vand.u32 %v1840, 4294901760
        %v1970 = vsub.f32 %v1840, %v1969
        %v1971 = vand.u32 %v1970, 4294901760
        %1972 = vmatpush.msra.mxu0 %v1971
        %v1973 = vand.u32 %v1839, 4294901760
        %v1974 = vsub.f32 %v1839, %v1973
        %v1975 = vand.u32 %v1974, 4294901760
        %1976 = vmatpush.msra.mxu0 %v1975
        %v1977 = vand.u32 %v1844, 4294901760
        %1978 = vmatmul.f32.gmra.mxu0 %v1977
        %v1979 = vpop.f32.mrf.mxu0
        %v1980 = vadd.f32 %v1953, %v1979
        %1981 = vdwg.mxu0
        %1982 = vmatpush.msra.mxu0 0.0
        %1983 = vmatpush.msra.mxu0 0.0
        %1984 = vmatpush.msra.mxu0 0.0
        %1985 = vmatpush.msra.mxu0 0.0
        %1986 = vmatpush.msra.mxu0 0.0
        %1987 = vmatpush.msra.mxu0 0.0
        %1988 = vmatpush.msra.mxu0 0.0
        %1989 = vmatpush.msra.mxu0 0.0
        %1990 = vmatpush.msra.mxu0 0.0
        %1991 = vmatpush.msra.mxu0 0.0
        %1992 = vmatpush.msra.mxu0 0.0
        %1993 = vmatpush.msra.mxu0 0.0
        %1994 = vmatpush.msra.mxu0 0.0
        %1995 = vmatpush.msra.mxu0 0.0
        %v1996 = vand.u32 %v1840, 4294901760
        %1997 = vmatpush.msra.mxu0 %v1996
        %v1998 = vand.u32 %v1839, 4294901760
        %1999 = vmatpush.msra.mxu0 %v1998
        %v2000 = vand.u32 %v1844, 4294901760
        %2001 = vmatmul.f32.gmra.mxu0 %v2000
        %v2002 = vpop.f32.mrf.mxu0
        %v2003 = vadd.f32 %v1980, %v2002
        %2004 = vdwg.mxu0
        %v2005 = vmax.f32 %v2003, 0.0
        %s2006 = scalar_lea.vmem %s3, 16
        %v2007 = vld [vmem:[%s2006] sm:$0xff]
        %v2008 = vld [vmem:[%s2006 + $0x8] sm:$0xff]
        %v2009 = vperm.slane %v390, 3
        %v2011 = vsel %vm1842, %v2005, 0
        %2013 = vmatpush.msra.mxu0 0.0
        %2014 = vmatpush.msra.mxu0 0.0
        %2015 = vmatpush.msra.mxu0 0.0
        %2016 = vmatpush.msra.mxu0 0.0
        %2017 = vmatpush.msra.mxu0 0.0
        %2018 = vmatpush.msra.mxu0 0.0
        %2019 = vmatpush.msra.mxu0 0.0
        %2020 = vmatpush.msra.mxu0 0.0
        %2021 = vmatpush.msra.mxu0 0.0
        %2022 = vmatpush.msra.mxu0 0.0
        %2023 = vmatpush.msra.mxu0 0.0
        %2024 = vmatpush.msra.mxu0 0.0
        %2025 = vmatpush.msra.mxu0 0.0
        %2026 = vmatpush.msra.mxu0 0.0
        %v2027 = vand.u32 %v2008, 4294901760
        %2028 = vmatpush.msra.mxu0 %v2027
        %v2029 = vand.u32 %v2007, 4294901760
        %2030 = vmatpush.msra.mxu0 %v2029
        %v2031 = vand.u32 %v2011, 4294901760
        %v2032 = vsub.f32 %v2011, %v2031
        %v2033 = vand.u32 %v2032, 4294901760
        %v2034 = vsub.f32 %v2032, %v2033
        %v2035 = vand.u32 %v2034, 4294901760
        %2036 = vmatmul.f32.gmra.mxu0 %v2035
        %v2037 = vpop.f32.mrf.mxu0
        %v2038 = vadd.f32 %v2009, %v2037
        %2039 = vdwg.mxu0
        %2040 = vmatpush.msra.mxu0 0.0
        %2041 = vmatpush.msra.mxu0 0.0
        %2042 = vmatpush.msra.mxu0 0.0
        %2043 = vmatpush.msra.mxu0 0.0
        %2044 = vmatpush.msra.mxu0 0.0
        %2045 = vmatpush.msra.mxu0 0.0
        %2046 = vmatpush.msra.mxu0 0.0
        %2047 = vmatpush.msra.mxu0 0.0
        %2048 = vmatpush.msra.mxu0 0.0
        %2049 = vmatpush.msra.mxu0 0.0
        %2050 = vmatpush.msra.mxu0 0.0
        %2051 = vmatpush.msra.mxu0 0.0
        %2052 = vmatpush.msra.mxu0 0.0
        %2053 = vmatpush.msra.mxu0 0.0
        %v2054 = vand.u32 %v2008, 4294901760
        %v2055 = vsub.f32 %v2008, %v2054
        %v2056 = vand.u32 %v2055, 4294901760
        %v2057 = vsub.f32 %v2055, %v2056
        %v2058 = vand.u32 %v2057, 4294901760
        %2059 = vmatpush.msra.mxu0 %v2058
        %v2060 = vand.u32 %v2007, 4294901760
        %v2061 = vsub.f32 %v2007, %v2060
        %v2062 = vand.u32 %v2061, 4294901760
        %v2063 = vsub.f32 %v2061, %v2062
        %v2064 = vand.u32 %v2063, 4294901760
        %2065 = vmatpush.msra.mxu0 %v2064
        %v2066 = vand.u32 %v2011, 4294901760
        %2067 = vmatmul.f32.gmra.mxu0 %v2066
        %v2068 = vpop.f32.mrf.mxu0
        %v2069 = vadd.f32 %v2038, %v2068
        %2070 = vdwg.mxu0
        %2071 = vmatpush.msra.mxu0 0.0
        %2072 = vmatpush.msra.mxu0 0.0
        %2073 = vmatpush.msra.mxu0 0.0
        %2074 = vmatpush.msra.mxu0 0.0
        %2075 = vmatpush.msra.mxu0 0.0
        %2076 = vmatpush.msra.mxu0 0.0
        %2077 = vmatpush.msra.mxu0 0.0
        %2078 = vmatpush.msra.mxu0 0.0
        %2079 = vmatpush.msra.mxu0 0.0
        %2080 = vmatpush.msra.mxu0 0.0
        %2081 = vmatpush.msra.mxu0 0.0
        %2082 = vmatpush.msra.mxu0 0.0
        %2083 = vmatpush.msra.mxu0 0.0
        %2084 = vmatpush.msra.mxu0 0.0
        %v2085 = vand.u32 %v2008, 4294901760
        %v2086 = vsub.f32 %v2008, %v2085
        %2087 = vmatpush.msra.mxu0 %v2086
        %v2088 = vand.u32 %v2007, 4294901760
        %v2089 = vsub.f32 %v2007, %v2088
        %2090 = vmatpush.msra.mxu0 %v2089
        %v2091 = vand.u32 %v2011, 4294901760
        %v2092 = vsub.f32 %v2011, %v2091
        %2093 = vmatmul.f32.gmra.mxu0 %v2092
        %v2094 = vpop.f32.mrf.mxu0
        %v2095 = vadd.f32 %v2069, %v2094
        %2096 = vdwg.mxu0
        %2097 = vmatpush.msra.mxu0 0.0
        %2098 = vmatpush.msra.mxu0 0.0
        %2099 = vmatpush.msra.mxu0 0.0
        %2100 = vmatpush.msra.mxu0 0.0
        %2101 = vmatpush.msra.mxu0 0.0
        %2102 = vmatpush.msra.mxu0 0.0
        %2103 = vmatpush.msra.mxu0 0.0
        %2104 = vmatpush.msra.mxu0 0.0
        %2105 = vmatpush.msra.mxu0 0.0
        %2106 = vmatpush.msra.mxu0 0.0
        %2107 = vmatpush.msra.mxu0 0.0
        %2108 = vmatpush.msra.mxu0 0.0
        %2109 = vmatpush.msra.mxu0 0.0
        %2110 = vmatpush.msra.mxu0 0.0
        %v2111 = vand.u32 %v2008, 4294901760
        %2112 = vmatpush.msra.mxu0 %v2111
        %v2113 = vand.u32 %v2007, 4294901760
        %2114 = vmatpush.msra.mxu0 %v2113
        %v2115 = vand.u32 %v2011, 4294901760
        %v2116 = vsub.f32 %v2011, %v2115
        %v2117 = vand.u32 %v2116, 4294901760
        %2118 = vmatmul.f32.gmra.mxu0 %v2117
        %v2119 = vpop.f32.mrf.mxu0
        %v2120 = vadd.f32 %v2095, %v2119
        %2121 = vdwg.mxu0
        %2122 = vmatpush.msra.mxu0 0.0
        %2123 = vmatpush.msra.mxu0 0.0
        %2124 = vmatpush.msra.mxu0 0.0
        %2125 = vmatpush.msra.mxu0 0.0
        %2126 = vmatpush.msra.mxu0 0.0
        %2127 = vmatpush.msra.mxu0 0.0
        %2128 = vmatpush.msra.mxu0 0.0
        %2129 = vmatpush.msra.mxu0 0.0
        %2130 = vmatpush.msra.mxu0 0.0
        %2131 = vmatpush.msra.mxu0 0.0
        %2132 = vmatpush.msra.mxu0 0.0
        %2133 = vmatpush.msra.mxu0 0.0
        %2134 = vmatpush.msra.mxu0 0.0
        %2135 = vmatpush.msra.mxu0 0.0
        %v2136 = vand.u32 %v2008, 4294901760
        %v2137 = vsub.f32 %v2008, %v2136
        %v2138 = vand.u32 %v2137, 4294901760
        %2139 = vmatpush.msra.mxu0 %v2138
        %v2140 = vand.u32 %v2007, 4294901760
        %v2141 = vsub.f32 %v2007, %v2140
        %v2142 = vand.u32 %v2141, 4294901760
        %2143 = vmatpush.msra.mxu0 %v2142
        %v2144 = vand.u32 %v2011, 4294901760
        %2145 = vmatmul.f32.gmra.mxu0 %v2144
        %v2146 = vpop.f32.mrf.mxu0
        %v2147 = vadd.f32 %v2120, %v2146
        %2148 = vdwg.mxu0
        %2149 = vmatpush.msra.mxu0 0.0
        %2150 = vmatpush.msra.mxu0 0.0
        %2151 = vmatpush.msra.mxu0 0.0
        %2152 = vmatpush.msra.mxu0 0.0
        %2153 = vmatpush.msra.mxu0 0.0
        %2154 = vmatpush.msra.mxu0 0.0
        %2155 = vmatpush.msra.mxu0 0.0
        %2156 = vmatpush.msra.mxu0 0.0
        %2157 = vmatpush.msra.mxu0 0.0
        %2158 = vmatpush.msra.mxu0 0.0
        %2159 = vmatpush.msra.mxu0 0.0
        %2160 = vmatpush.msra.mxu0 0.0
        %2161 = vmatpush.msra.mxu0 0.0
        %2162 = vmatpush.msra.mxu0 0.0
        %v2163 = vand.u32 %v2008, 4294901760
        %2164 = vmatpush.msra.mxu0 %v2163
        %v2165 = vand.u32 %v2007, 4294901760
        %2166 = vmatpush.msra.mxu0 %v2165
        %v2167 = vand.u32 %v2011, 4294901760
        %2168 = vmatmul.f32.gmra.mxu0 %v2167
        %v2169 = vpop.f32.mrf.mxu0
        %v2170 = vadd.f32 %v2147, %v2169
        %2171 = vdwg.mxu0
        %v2172 = vxor.u32 %v2170, 2147483648
        %v2173 = vmul.f32 %v2172, 1.442695
        %v2174 = vpow.pop %v2173
        %v2175 = vadd.f32 %v2174, 1.0
        %v2176 = vrcp.pop %v2175
        %v2177 = vmul.f32 %v2175, %v2176
        %v2178 = vsub.f32 1.0, %v2177
        %v2179 = vmul.f32 %v2176, %v2178
        %v2180 = vadd.f32 %v2176, %v2179
        %vm2181 = vweird.f32 %v2175
        %vm2182 = vweird.f32 %v2176
        %vm2183 = vmor %vm2181, %vm2182
        %v2184 = vsel %vm2183, %v2176, %v2180
        %v2185 = vand.u32 2147483647, %v2175
        %vm2186 = vcmp.eq.f32.partialorder %v2185, 8.507059e+37
        %v2187 = vand.u32 %v2175, 2147483648
        %v2188 = vor.u32 1.1754944e-38, %v2187
        %v2189 = vsel %vm2186, %v2188, %v2184
        %v2190 = vmul.f32 1.0, %v2189
        %v2191 = vld [vmem:[%s4] sm:$0xff]
        %v2192 = vld [vmem:[%s4 + $0x8] sm:$0xff]
        %v2193 = vperm.slane %v390, 4
        %v2195 = vsel %vm1842, %v1837, 0
        %2197 = vmatpush.msra.mxu0 0.0
        %2198 = vmatpush.msra.mxu0 0.0
        %2199 = vmatpush.msra.mxu0 0.0
        %2200 = vmatpush.msra.mxu0 0.0
        %2201 = vmatpush.msra.mxu0 0.0
        %2202 = vmatpush.msra.mxu0 0.0
        %2203 = vmatpush.msra.mxu0 0.0
        %2204 = vmatpush.msra.mxu0 0.0
        %2205 = vmatpush.msra.mxu0 0.0
        %2206 = vmatpush.msra.mxu0 0.0
        %2207 = vmatpush.msra.mxu0 0.0
        %2208 = vmatpush.msra.mxu0 0.0
        %2209 = vmatpush.msra.mxu0 0.0
        %2210 = vmatpush.msra.mxu0 0.0
        %v2211 = vand.u32 %v2192, 4294901760
        %2212 = vmatpush.msra.mxu0 %v2211
        %v2213 = vand.u32 %v2191, 4294901760
        %2214 = vmatpush.msra.mxu0 %v2213
        %v2215 = vand.u32 %v2195, 4294901760
        %v2216 = vsub.f32 %v2195, %v2215
        %v2217 = vand.u32 %v2216, 4294901760
        %v2218 = vsub.f32 %v2216, %v2217
        %v2219 = vand.u32 %v2218, 4294901760
        %2220 = vmatmul.f32.gmra.mxu0 %v2219
        %v2221 = vpop.f32.mrf.mxu0
        %v2222 = vadd.f32 %v2193, %v2221
        %2223 = vdwg.mxu0
        %2224 = vmatpush.msra.mxu0 0.0
        %2225 = vmatpush.msra.mxu0 0.0
        %2226 = vmatpush.msra.mxu0 0.0
        %2227 = vmatpush.msra.mxu0 0.0
        %2228 = vmatpush.msra.mxu0 0.0
        %2229 = vmatpush.msra.mxu0 0.0
        %2230 = vmatpush.msra.mxu0 0.0
        %2231 = vmatpush.msra.mxu0 0.0
        %2232 = vmatpush.msra.mxu0 0.0
        %2233 = vmatpush.msra.mxu0 0.0
        %2234 = vmatpush.msra.mxu0 0.0
        %2235 = vmatpush.msra.mxu0 0.0
        %2236 = vmatpush.msra.mxu0 0.0
        %2237 = vmatpush.msra.mxu0 0.0
        %v2238 = vand.u32 %v2192, 4294901760
        %v2239 = vsub.f32 %v2192, %v2238
        %v2240 = vand.u32 %v2239, 4294901760
        %v2241 = vsub.f32 %v2239, %v2240
        %v2242 = vand.u32 %v2241, 4294901760
        %2243 = vmatpush.msra.mxu0 %v2242
        %v2244 = vand.u32 %v2191, 4294901760
        %v2245 = vsub.f32 %v2191, %v2244
        %v2246 = vand.u32 %v2245, 4294901760
        %v2247 = vsub.f32 %v2245, %v2246
        %v2248 = vand.u32 %v2247, 4294901760
        %2249 = vmatpush.msra.mxu0 %v2248
        %v2250 = vand.u32 %v2195, 4294901760
        %2251 = vmatmul.f32.gmra.mxu0 %v2250
        %v2252 = vpop.f32.mrf.mxu0
        %v2253 = vadd.f32 %v2222, %v2252
        %2254 = vdwg.mxu0
        %2255 = vmatpush.msra.mxu0 0.0
        %2256 = vmatpush.msra.mxu0 0.0
        %2257 = vmatpush.msra.mxu0 0.0
        %2258 = vmatpush.msra.mxu0 0.0
        %2259 = vmatpush.msra.mxu0 0.0
        %2260 = vmatpush.msra.mxu0 0.0
        %2261 = vmatpush.msra.mxu0 0.0
        %2262 = vmatpush.msra.mxu0 0.0
        %2263 = vmatpush.msra.mxu0 0.0
        %2264 = vmatpush.msra.mxu0 0.0
        %2265 = vmatpush.msra.mxu0 0.0
        %2266 = vmatpush.msra.mxu0 0.0
        %2267 = vmatpush.msra.mxu0 0.0
        %2268 = vmatpush.msra.mxu0 0.0
        %v2269 = vand.u32 %v2192, 4294901760
        %v2270 = vsub.f32 %v2192, %v2269
        %2271 = vmatpush.msra.mxu0 %v2270
        %v2272 = vand.u32 %v2191, 4294901760
        %v2273 = vsub.f32 %v2191, %v2272
        %2274 = vmatpush.msra.mxu0 %v2273
        %v2275 = vand.u32 %v2195, 4294901760
        %v2276 = vsub.f32 %v2195, %v2275
        %2277 = vmatmul.f32.gmra.mxu0 %v2276
        %v2278 = vpop.f32.mrf.mxu0
        %v2279 = vadd.f32 %v2253, %v2278
        %2280 = vdwg.mxu0
        %2281 = vmatpush.msra.mxu0 0.0
        %2282 = vmatpush.msra.mxu0 0.0
        %2283 = vmatpush.msra.mxu0 0.0
        %2284 = vmatpush.msra.mxu0 0.0
        %2285 = vmatpush.msra.mxu0 0.0
        %2286 = vmatpush.msra.mxu0 0.0
        %2287 = vmatpush.msra.mxu0 0.0
        %2288 = vmatpush.msra.mxu0 0.0
        %2289 = vmatpush.msra.mxu0 0.0
        %2290 = vmatpush.msra.mxu0 0.0
        %2291 = vmatpush.msra.mxu0 0.0
        %2292 = vmatpush.msra.mxu0 0.0
        %2293 = vmatpush.msra.mxu0 0.0
        %2294 = vmatpush.msra.mxu0 0.0
        %v2295 = vand.u32 %v2192, 4294901760
        %2296 = vmatpush.msra.mxu0 %v2295
        %v2297 = vand.u32 %v2191, 4294901760
        %2298 = vmatpush.msra.mxu0 %v2297
        %v2299 = vand.u32 %v2195, 4294901760
        %v2300 = vsub.f32 %v2195, %v2299
        %v2301 = vand.u32 %v2300, 4294901760
        %2302 = vmatmul.f32.gmra.mxu0 %v2301
        %v2303 = vpop.f32.mrf.mxu0
        %v2304 = vadd.f32 %v2279, %v2303
        %2305 = vdwg.mxu0
        %2306 = vmatpush.msra.mxu0 0.0
        %2307 = vmatpush.msra.mxu0 0.0
        %2308 = vmatpush.msra.mxu0 0.0
        %2309 = vmatpush.msra.mxu0 0.0
        %2310 = vmatpush.msra.mxu0 0.0
        %2311 = vmatpush.msra.mxu0 0.0
        %2312 = vmatpush.msra.mxu0 0.0
        %2313 = vmatpush.msra.mxu0 0.0
        %2314 = vmatpush.msra.mxu0 0.0
        %2315 = vmatpush.msra.mxu0 0.0
        %2316 = vmatpush.msra.mxu0 0.0
        %2317 = vmatpush.msra.mxu0 0.0
        %2318 = vmatpush.msra.mxu0 0.0
        %2319 = vmatpush.msra.mxu0 0.0
        %v2320 = vand.u32 %v2192, 4294901760
        %v2321 = vsub.f32 %v2192, %v2320
        %v2322 = vand.u32 %v2321, 4294901760
        %2323 = vmatpush.msra.mxu0 %v2322
        %v2324 = vand.u32 %v2191, 4294901760
        %v2325 = vsub.f32 %v2191, %v2324
        %v2326 = vand.u32 %v2325, 4294901760
        %2327 = vmatpush.msra.mxu0 %v2326
        %v2328 = vand.u32 %v2195, 4294901760
        %2329 = vmatmul.f32.gmra.mxu0 %v2328
        %v2330 = vpop.f32.mrf.mxu0
        %v2331 = vadd.f32 %v2304, %v2330
        %2332 = vdwg.mxu0
        %2333 = vmatpush.msra.mxu0 0.0
        %2334 = vmatpush.msra.mxu0 0.0
        %2335 = vmatpush.msra.mxu0 0.0
        %2336 = vmatpush.msra.mxu0 0.0
        %2337 = vmatpush.msra.mxu0 0.0
        %2338 = vmatpush.msra.mxu0 0.0
        %2339 = vmatpush.msra.mxu0 0.0
        %2340 = vmatpush.msra.mxu0 0.0
        %2341 = vmatpush.msra.mxu0 0.0
        %2342 = vmatpush.msra.mxu0 0.0
        %2343 = vmatpush.msra.mxu0 0.0
        %2344 = vmatpush.msra.mxu0 0.0
        %2345 = vmatpush.msra.mxu0 0.0
        %2346 = vmatpush.msra.mxu0 0.0
        %v2347 = vand.u32 %v2192, 4294901760
        %2348 = vmatpush.msra.mxu0 %v2347
        %v2349 = vand.u32 %v2191, 4294901760
        %2350 = vmatpush.msra.mxu0 %v2349
        %v2351 = vand.u32 %v2195, 4294901760
        %2352 = vmatmul.f32.gmra.mxu0 %v2351
        %v2353 = vpop.f32.mrf.mxu0
        %v2354 = vadd.f32 %v2331, %v2353
        %2355 = vdwg.mxu0
        %v2356 = vmax.f32 %v2354, 0.0
        %s2357 = scalar_lea.vmem %s4, 16
        %v2358 = vld [vmem:[%s2357] sm:$0xff]
        %v2359 = vld [vmem:[%s2357 + $0x8] sm:$0xff]
        %v2360 = vperm.slane %v390, 5
        %v2362 = vsel %vm1842, %v2356, 0
        %2364 = vmatpush.msra.mxu0 0.0
        %2365 = vmatpush.msra.mxu0 0.0
        %2366 = vmatpush.msra.mxu0 0.0
        %2367 = vmatpush.msra.mxu0 0.0
        %2368 = vmatpush.msra.mxu0 0.0
        %2369 = vmatpush.msra.mxu0 0.0
        %2370 = vmatpush.msra.mxu0 0.0
        %2371 = vmatpush.msra.mxu0 0.0
        %2372 = vmatpush.msra.mxu0 0.0
        %2373 = vmatpush.msra.mxu0 0.0
        %2374 = vmatpush.msra.mxu0 0.0
        %2375 = vmatpush.msra.mxu0 0.0
        %2376 = vmatpush.msra.mxu0 0.0
        %2377 = vmatpush.msra.mxu0 0.0
        %v2378 = vand.u32 %v2359, 4294901760
        %2379 = vmatpush.msra.mxu0 %v2378
        %v2380 = vand.u32 %v2358, 4294901760
        %2381 = vmatpush.msra.mxu0 %v2380
        %v2382 = vand.u32 %v2362, 4294901760
        %v2383 = vsub.f32 %v2362, %v2382
        %v2384 = vand.u32 %v2383, 4294901760
        %v2385 = vsub.f32 %v2383, %v2384
        %v2386 = vand.u32 %v2385, 4294901760
        %2387 = vmatmul.f32.gmra.mxu0 %v2386
        %v2388 = vpop.f32.mrf.mxu0
        %v2389 = vadd.f32 %v2360, %v2388
        %2390 = vdwg.mxu0
        %2391 = vmatpush.msra.mxu0 0.0
        %2392 = vmatpush.msra.mxu0 0.0
        %2393 = vmatpush.msra.mxu0 0.0
        %2394 = vmatpush.msra.mxu0 0.0
        %2395 = vmatpush.msra.mxu0 0.0
        %2396 = vmatpush.msra.mxu0 0.0
        %2397 = vmatpush.msra.mxu0 0.0
        %2398 = vmatpush.msra.mxu0 0.0
        %2399 = vmatpush.msra.mxu0 0.0
        %2400 = vmatpush.msra.mxu0 0.0
        %2401 = vmatpush.msra.mxu0 0.0
        %2402 = vmatpush.msra.mxu0 0.0
        %2403 = vmatpush.msra.mxu0 0.0
        %2404 = vmatpush.msra.mxu0 0.0
        %v2405 = vand.u32 %v2359, 4294901760
        %v2406 = vsub.f32 %v2359, %v2405
        %v2407 = vand.u32 %v2406, 4294901760
        %v2408 = vsub.f32 %v2406, %v2407
        %v2409 = vand.u32 %v2408, 4294901760
        %2410 = vmatpush.msra.mxu0 %v2409
        %v2411 = vand.u32 %v2358, 4294901760
        %v2412 = vsub.f32 %v2358, %v2411
        %v2413 = vand.u32 %v2412, 4294901760
        %v2414 = vsub.f32 %v2412, %v2413
        %v2415 = vand.u32 %v2414, 4294901760
        %2416 = vmatpush.msra.mxu0 %v2415
        %v2417 = vand.u32 %v2362, 4294901760
        %2418 = vmatmul.f32.gmra.mxu0 %v2417
        %v2419 = vpop.f32.mrf.mxu0
        %v2420 = vadd.f32 %v2389, %v2419
        %2421 = vdwg.mxu0
        %2422 = vmatpush.msra.mxu0 0.0
        %2423 = vmatpush.msra.mxu0 0.0
        %2424 = vmatpush.msra.mxu0 0.0
        %2425 = vmatpush.msra.mxu0 0.0
        %2426 = vmatpush.msra.mxu0 0.0
        %2427 = vmatpush.msra.mxu0 0.0
        %2428 = vmatpush.msra.mxu0 0.0
        %2429 = vmatpush.msra.mxu0 0.0
        %2430 = vmatpush.msra.mxu0 0.0
        %2431 = vmatpush.msra.mxu0 0.0
        %2432 = vmatpush.msra.mxu0 0.0
        %2433 = vmatpush.msra.mxu0 0.0
        %2434 = vmatpush.msra.mxu0 0.0
        %2435 = vmatpush.msra.mxu0 0.0
        %v2436 = vand.u32 %v2359, 4294901760
        %v2437 = vsub.f32 %v2359, %v2436
        %2438 = vmatpush.msra.mxu0 %v2437
        %v2439 = vand.u32 %v2358, 4294901760
        %v2440 = vsub.f32 %v2358, %v2439
        %2441 = vmatpush.msra.mxu0 %v2440
        %v2442 = vand.u32 %v2362, 4294901760
        %v2443 = vsub.f32 %v2362, %v2442
        %2444 = vmatmul.f32.gmra.mxu0 %v2443
        %v2445 = vpop.f32.mrf.mxu0
        %v2446 = vadd.f32 %v2420, %v2445
        %2447 = vdwg.mxu0
        %2448 = vmatpush.msra.mxu0 0.0
        %2449 = vmatpush.msra.mxu0 0.0
        %2450 = vmatpush.msra.mxu0 0.0
        %2451 = vmatpush.msra.mxu0 0.0
        %2452 = vmatpush.msra.mxu0 0.0
        %2453 = vmatpush.msra.mxu0 0.0
        %2454 = vmatpush.msra.mxu0 0.0
        %2455 = vmatpush.msra.mxu0 0.0
        %2456 = vmatpush.msra.mxu0 0.0
        %2457 = vmatpush.msra.mxu0 0.0
        %2458 = vmatpush.msra.mxu0 0.0
        %2459 = vmatpush.msra.mxu0 0.0
        %2460 = vmatpush.msra.mxu0 0.0
        %2461 = vmatpush.msra.mxu0 0.0
        %v2462 = vand.u32 %v2359, 4294901760
        %2463 = vmatpush.msra.mxu0 %v2462
        %v2464 = vand.u32 %v2358, 4294901760
        %2465 = vmatpush.msra.mxu0 %v2464
        %v2466 = vand.u32 %v2362, 4294901760
        %v2467 = vsub.f32 %v2362, %v2466
        %v2468 = vand.u32 %v2467, 4294901760
        %2469 = vmatmul.f32.gmra.mxu0 %v2468
        %v2470 = vpop.f32.mrf.mxu0
        %v2471 = vadd.f32 %v2446, %v2470
        %2472 = vdwg.mxu0
        %2473 = vmatpush.msra.mxu0 0.0
        %2474 = vmatpush.msra.mxu0 0.0
        %2475 = vmatpush.msra.mxu0 0.0
        %2476 = vmatpush.msra.mxu0 0.0
        %2477 = vmatpush.msra.mxu0 0.0
        %2478 = vmatpush.msra.mxu0 0.0
        %2479 = vmatpush.msra.mxu0 0.0
        %2480 = vmatpush.msra.mxu0 0.0
        %2481 = vmatpush.msra.mxu0 0.0
        %2482 = vmatpush.msra.mxu0 0.0
        %2483 = vmatpush.msra.mxu0 0.0
        %2484 = vmatpush.msra.mxu0 0.0
        %2485 = vmatpush.msra.mxu0 0.0
        %2486 = vmatpush.msra.mxu0 0.0
        %v2487 = vand.u32 %v2359, 4294901760
        %v2488 = vsub.f32 %v2359, %v2487
        %v2489 = vand.u32 %v2488, 4294901760
        %2490 = vmatpush.msra.mxu0 %v2489
        %v2491 = vand.u32 %v2358, 4294901760
        %v2492 = vsub.f32 %v2358, %v2491
        %v2493 = vand.u32 %v2492, 4294901760
        %2494 = vmatpush.msra.mxu0 %v2493
        %v2495 = vand.u32 %v2362, 4294901760
        %2496 = vmatmul.f32.gmra.mxu0 %v2495
        %v2497 = vpop.f32.mrf.mxu0
        %v2498 = vadd.f32 %v2471, %v2497
        %2499 = vdwg.mxu0
        %2500 = vmatpush.msra.mxu0 0.0
        %2501 = vmatpush.msra.mxu0 0.0
        %2502 = vmatpush.msra.mxu0 0.0
        %2503 = vmatpush.msra.mxu0 0.0
        %2504 = vmatpush.msra.mxu0 0.0
        %2505 = vmatpush.msra.mxu0 0.0
        %2506 = vmatpush.msra.mxu0 0.0
        %2507 = vmatpush.msra.mxu0 0.0
        %2508 = vmatpush.msra.mxu0 0.0
        %2509 = vmatpush.msra.mxu0 0.0
        %2510 = vmatpush.msra.mxu0 0.0
        %2511 = vmatpush.msra.mxu0 0.0
        %2512 = vmatpush.msra.mxu0 0.0
        %2513 = vmatpush.msra.mxu0 0.0
        %v2514 = vand.u32 %v2359, 4294901760
        %2515 = vmatpush.msra.mxu0 %v2514
        %v2516 = vand.u32 %v2358, 4294901760
        %2517 = vmatpush.msra.mxu0 %v2516
        %v2518 = vand.u32 %v2362, 4294901760
        %2519 = vmatmul.f32.gmra.mxu0 %v2518
        %v2520 = vpop.f32.mrf.mxu0
        %v2521 = vadd.f32 %v2498, %v2520
        %2522 = vdwg.mxu0
        %v2523 = vxor.u32 %v2521, 2147483648
        %v2524 = vmul.f32 %v2523, 1.442695
        %v2525 = vpow.pop %v2524
        %v2526 = vadd.f32 %v2525, 1.0
        %v2527 = vrcp.pop %v2526
        %v2528 = vmul.f32 %v2526, %v2527
        %v2529 = vsub.f32 1.0, %v2528
        %v2530 = vmul.f32 %v2527, %v2529
        %v2531 = vadd.f32 %v2527, %v2530
        %vm2532 = vweird.f32 %v2526
        %vm2533 = vweird.f32 %v2527
        %vm2534 = vmor %vm2532, %vm2533
        %v2535 = vsel %vm2534, %v2527, %v2531
        %v2536 = vand.u32 2147483647, %v2526
        %vm2537 = vcmp.eq.f32.partialorder %v2536, 8.507059e+37
        %v2538 = vand.u32 %v2526, 2147483648
        %v2539 = vor.u32 1.1754944e-38, %v2538
        %v2540 = vsel %vm2537, %v2539, %v2535
        %v2541 = vmul.f32 1.0, %v2540
        %v2542 = vld [vmem:[%s5] sm:$0xff]
        %v2543 = vld [vmem:[%s5 + $0x8] sm:$0xff]
        %v2544 = vld [vmem:[%s5 + $0x10] sm:$0xff]
        %v2545 = vld [vmem:[%s5 + $0x18] sm:$0xff]
        %v2546 = vperm.slane %v390, 0
        %v2555 = vlaneseq
        %v2556 = vand.u32 %v2555, 127
        %v2557 = vperm.slane %v458, %v2556
        %v2558 = vadd.s32 %v2556, 4294967288
        %v2559 = vperm.slane %v459, %v2558
        %vm2560 = vcmask 130112
        %v2561 = vsel %vm2560, %v2559, %v2557
        %v2562 = vadd.s32 %v2556, 4294967280
        %v2563 = vperm.slane %v460, %v2562
        %vm2564 = vcmask 195712
        %v2565 = vsel %vm2564, %v2563, %v2561
        %v2566 = vadd.s32 %v2556, 4294967272
        %v2567 = vperm.slane %v461, %v2566
        %vm2568 = vcmask 261312
        %v2569 = vsel %vm2568, %v2567, %v2565
        %v2570 = vperm.slane %v462, %v2556
        %v2571 = vperm.slane %v463, %v2558
        %v2572 = vsel %vm2560, %v2571, %v2570
        %v2573 = vperm.slane %v464, %v2562
        %v2574 = vsel %vm2564, %v2573, %v2572
        %v2575 = vperm.slane %v465, %v2566
        %v2576 = vsel %vm2568, %v2575, %v2574
        %v2577 = vsel %vm470, %v2576, %v2569
        %vm2578 = vcmask 261120
        %v2579 = vsel %vm2578, %v2577, 0
        %2581 = vmatpush.msra.mxu0 0.0
        %2582 = vmatpush.msra.mxu0 0.0
        %2583 = vmatpush.msra.mxu0 0.0
        %2584 = vmatpush.msra.mxu0 0.0
        %2585 = vmatpush.msra.mxu0 0.0
        %2586 = vmatpush.msra.mxu0 0.0
        %2587 = vmatpush.msra.mxu0 0.0
        %2588 = vmatpush.msra.mxu0 0.0
        %2589 = vmatpush.msra.mxu0 0.0
        %2590 = vmatpush.msra.mxu0 0.0
        %2591 = vmatpush.msra.mxu0 0.0
        %2592 = vmatpush.msra.mxu0 0.0
        %v2593 = vand.u32 %v2545, 4294901760
        %2594 = vmatpush.msra.mxu0 %v2593
        %v2595 = vand.u32 %v2544, 4294901760
        %2596 = vmatpush.msra.mxu0 %v2595
        %v2597 = vand.u32 %v2543, 4294901760
        %2598 = vmatpush.msra.mxu0 %v2597
        %v2599 = vand.u32 %v2542, 4294901760
        %2600 = vmatpush.msra.mxu0 %v2599
        %v2601 = vand.u32 %v2579, 4294901760
        %v2602 = vsub.f32 %v2579, %v2601
        %v2603 = vand.u32 %v2602, 4294901760
        %v2604 = vsub.f32 %v2602, %v2603
        %v2605 = vand.u32 %v2604, 4294901760
        %2606 = vmatmul.f32.gmra.mxu0 %v2605
        %v2607 = vpop.f32.mrf.mxu0
        %v2608 = vadd.f32 %v2546, %v2607
        %2609 = vdwg.mxu0
        %2610 = vmatpush.msra.mxu0 0.0
        %2611 = vmatpush.msra.mxu0 0.0
        %2612 = vmatpush.msra.mxu0 0.0
        %2613 = vmatpush.msra.mxu0 0.0
        %2614 = vmatpush.msra.mxu0 0.0
        %2615 = vmatpush.msra.mxu0 0.0
        %2616 = vmatpush.msra.mxu0 0.0
        %2617 = vmatpush.msra.mxu0 0.0
        %2618 = vmatpush.msra.mxu0 0.0
        %2619 = vmatpush.msra.mxu0 0.0
        %2620 = vmatpush.msra.mxu0 0.0
        %2621 = vmatpush.msra.mxu0 0.0
        %v2622 = vand.u32 %v2545, 4294901760
        %v2623 = vsub.f32 %v2545, %v2622
        %v2624 = vand.u32 %v2623, 4294901760
        %v2625 = vsub.f32 %v2623, %v2624
        %v2626 = vand.u32 %v2625, 4294901760
        %2627 = vmatpush.msra.mxu0 %v2626
        %v2628 = vand.u32 %v2544, 4294901760
        %v2629 = vsub.f32 %v2544, %v2628
        %v2630 = vand.u32 %v2629, 4294901760
        %v2631 = vsub.f32 %v2629, %v2630
        %v2632 = vand.u32 %v2631, 4294901760
        %2633 = vmatpush.msra.mxu0 %v2632
        %v2634 = vand.u32 %v2543, 4294901760
        %v2635 = vsub.f32 %v2543, %v2634
        %v2636 = vand.u32 %v2635, 4294901760
        %v2637 = vsub.f32 %v2635, %v2636
        %v2638 = vand.u32 %v2637, 4294901760
        %2639 = vmatpush.msra.mxu0 %v2638
        %v2640 = vand.u32 %v2542, 4294901760
        %v2641 = vsub.f32 %v2542, %v2640
        %v2642 = vand.u32 %v2641, 4294901760
        %v2643 = vsub.f32 %v2641, %v2642
        %v2644 = vand.u32 %v2643, 4294901760
        %2645 = vmatpush.msra.mxu0 %v2644
        %v2646 = vand.u32 %v2579, 4294901760
        %2647 = vmatmul.f32.gmra.mxu0 %v2646
        %v2648 = vpop.f32.mrf.mxu0
        %v2649 = vadd.f32 %v2608, %v2648
        %2650 = vdwg.mxu0
        %2651 = vmatpush.msra.mxu0 0.0
        %2652 = vmatpush.msra.mxu0 0.0
        %2653 = vmatpush.msra.mxu0 0.0
        %2654 = vmatpush.msra.mxu0 0.0
        %2655 = vmatpush.msra.mxu0 0.0
        %2656 = vmatpush.msra.mxu0 0.0
        %2657 = vmatpush.msra.mxu0 0.0
        %2658 = vmatpush.msra.mxu0 0.0
        %2659 = vmatpush.msra.mxu0 0.0
        %2660 = vmatpush.msra.mxu0 0.0
        %2661 = vmatpush.msra.mxu0 0.0
        %2662 = vmatpush.msra.mxu0 0.0
        %v2663 = vand.u32 %v2545, 4294901760
        %v2664 = vsub.f32 %v2545, %v2663
        %2665 = vmatpush.msra.mxu0 %v2664
        %v2666 = vand.u32 %v2544, 4294901760
        %v2667 = vsub.f32 %v2544, %v2666
        %2668 = vmatpush.msra.mxu0 %v2667
        %v2669 = vand.u32 %v2543, 4294901760
        %v2670 = vsub.f32 %v2543, %v2669
        %2671 = vmatpush.msra.mxu0 %v2670
        %v2672 = vand.u32 %v2542, 4294901760
        %v2673 = vsub.f32 %v2542, %v2672
        %2674 = vmatpush.msra.mxu0 %v2673
        %v2675 = vand.u32 %v2579, 4294901760
        %v2676 = vsub.f32 %v2579, %v2675
        %2677 = vmatmul.f32.gmra.mxu0 %v2676
        %v2678 = vpop.f32.mrf.mxu0
        %v2679 = vadd.f32 %v2649, %v2678
        %2680 = vdwg.mxu0
        %2681 = vmatpush.msra.mxu0 0.0
        %2682 = vmatpush.msra.mxu0 0.0
        %2683 = vmatpush.msra.mxu0 0.0
        %2684 = vmatpush.msra.mxu0 0.0
        %2685 = vmatpush.msra.mxu0 0.0
        %2686 = vmatpush.msra.mxu0 0.0
        %2687 = vmatpush.msra.mxu0 0.0
        %2688 = vmatpush.msra.mxu0 0.0
        %2689 = vmatpush.msra.mxu0 0.0
        %2690 = vmatpush.msra.mxu0 0.0
        %2691 = vmatpush.msra.mxu0 0.0
        %2692 = vmatpush.msra.mxu0 0.0
        %v2693 = vand.u32 %v2545, 4294901760
        %2694 = vmatpush.msra.mxu0 %v2693
        %v2695 = vand.u32 %v2544, 4294901760
        %2696 = vmatpush.msra.mxu0 %v2695
        %v2697 = vand.u32 %v2543, 4294901760
        %2698 = vmatpush.msra.mxu0 %v2697
        %v2699 = vand.u32 %v2542, 4294901760
        %2700 = vmatpush.msra.mxu0 %v2699
        %v2701 = vand.u32 %v2579, 4294901760
        %v2702 = vsub.f32 %v2579, %v2701
        %v2703 = vand.u32 %v2702, 4294901760
        %2704 = vmatmul.f32.gmra.mxu0 %v2703
        %v2705 = vpop.f32.mrf.mxu0
        %v2706 = vadd.f32 %v2679, %v2705
        %2707 = vdwg.mxu0
        %2708 = vmatpush.msra.mxu0 0.0
        %2709 = vmatpush.msra.mxu0 0.0
        %2710 = vmatpush.msra.mxu0 0.0
        %2711 = vmatpush.msra.mxu0 0.0
        %2712 = vmatpush.msra.mxu0 0.0
        %2713 = vmatpush.msra.mxu0 0.0
        %2714 = vmatpush.msra.mxu0 0.0
        %2715 = vmatpush.msra.mxu0 0.0
        %2716 = vmatpush.msra.mxu0 0.0
        %2717 = vmatpush.msra.mxu0 0.0
        %2718 = vmatpush.msra.mxu0 0.0
        %2719 = vmatpush.msra.mxu0 0.0
        %v2720 = vand.u32 %v2545, 4294901760
        %v2721 = vsub.f32 %v2545, %v2720
        %v2722 = vand.u32 %v2721, 4294901760
        %2723 = vmatpush.msra.mxu0 %v2722
        %v2724 = vand.u32 %v2544, 4294901760
        %v2725 = vsub.f32 %v2544, %v2724
        %v2726 = vand.u32 %v2725, 4294901760
        %2727 = vmatpush.msra.mxu0 %v2726
        %v2728 = vand.u32 %v2543, 4294901760
        %v2729 = vsub.f32 %v2543, %v2728
        %v2730 = vand.u32 %v2729, 4294901760
        %2731 = vmatpush.msra.mxu0 %v2730
        %v2732 = vand.u32 %v2542, 4294901760
        %v2733 = vsub.f32 %v2542, %v2732
        %v2734 = vand.u32 %v2733, 4294901760
        %2735 = vmatpush.msra.mxu0 %v2734
        %v2736 = vand.u32 %v2579, 4294901760
        %2737 = vmatmul.f32.gmra.mxu0 %v2736
        %v2738 = vpop.f32.mrf.mxu0
        %v2739 = vadd.f32 %v2706, %v2738
        %2740 = vdwg.mxu0
        %2741 = vmatpush.msra.mxu0 0.0
        %2742 = vmatpush.msra.mxu0 0.0
        %2743 = vmatpush.msra.mxu0 0.0
        %2744 = vmatpush.msra.mxu0 0.0
        %2745 = vmatpush.msra.mxu0 0.0
        %2746 = vmatpush.msra.mxu0 0.0
        %2747 = vmatpush.msra.mxu0 0.0
        %2748 = vmatpush.msra.mxu0 0.0
        %2749 = vmatpush.msra.mxu0 0.0
        %2750 = vmatpush.msra.mxu0 0.0
        %2751 = vmatpush.msra.mxu0 0.0
        %2752 = vmatpush.msra.mxu0 0.0
        %v2753 = vand.u32 %v2545, 4294901760
        %2754 = vmatpush.msra.mxu0 %v2753
        %v2755 = vand.u32 %v2544, 4294901760
        %2756 = vmatpush.msra.mxu0 %v2755
        %v2757 = vand.u32 %v2543, 4294901760
        %2758 = vmatpush.msra.mxu0 %v2757
        %v2759 = vand.u32 %v2542, 4294901760
        %2760 = vmatpush.msra.mxu0 %v2759
        %v2761 = vand.u32 %v2579, 4294901760
        %2762 = vmatmul.f32.gmra.mxu0 %v2761
        %v2763 = vpop.f32.mrf.mxu0
        %v2764 = vadd.f32 %v2739, %v2763
        %2765 = vdwg.mxu0
        %v2766 = vmax.f32 %v2764, 0.0
        %v2767 = vld [vmem:[%s6] sm:$0xff]
        %v2768 = vperm.slane %v390, 1
        %vm2769 = vcmask 64512
        %v2771 = vsel %vm2769, %v2766, 0
        %2773 = vmatpush.msra.mxu0 0.0
        %2774 = vmatpush.msra.mxu0 0.0
        %2775 = vmatpush.msra.mxu0 0.0
        %2776 = vmatpush.msra.mxu0 0.0
        %2777 = vmatpush.msra.mxu0 0.0
        %2778 = vmatpush.msra.mxu0 0.0
        %2779 = vmatpush.msra.mxu0 0.0
        %2780 = vmatpush.msra.mxu0 0.0
        %2781 = vmatpush.msra.mxu0 0.0
        %2782 = vmatpush.msra.mxu0 0.0
        %2783 = vmatpush.msra.mxu0 0.0
        %2784 = vmatpush.msra.mxu0 0.0
        %2785 = vmatpush.msra.mxu0 0.0
        %2786 = vmatpush.msra.mxu0 0.0
        %2787 = vmatpush.msra.mxu0 0.0
        %v2788 = vand.u32 %v2767, 4294901760
        %2789 = vmatpush.msra.mxu0 %v2788
        %v2790 = vand.u32 %v2771, 4294901760
        %v2791 = vsub.f32 %v2771, %v2790
        %v2792 = vand.u32 %v2791, 4294901760
        %v2793 = vsub.f32 %v2791, %v2792
        %v2794 = vand.u32 %v2793, 4294901760
        %2795 = vmatmul.f32.gmra.mxu0 %v2794
        %v2796 = vpop.f32.mrf.mxu0
        %v2797 = vadd.f32 %v2768, %v2796
        %2798 = vdwg.mxu0
        %2799 = vmatpush.msra.mxu0 0.0
        %2800 = vmatpush.msra.mxu0 0.0
        %2801 = vmatpush.msra.mxu0 0.0
        %2802 = vmatpush.msra.mxu0 0.0
        %2803 = vmatpush.msra.mxu0 0.0
        %2804 = vmatpush.msra.mxu0 0.0
        %2805 = vmatpush.msra.mxu0 0.0
        %2806 = vmatpush.msra.mxu0 0.0
        %2807 = vmatpush.msra.mxu0 0.0
        %2808 = vmatpush.msra.mxu0 0.0
        %2809 = vmatpush.msra.mxu0 0.0
        %2810 = vmatpush.msra.mxu0 0.0
        %2811 = vmatpush.msra.mxu0 0.0
        %2812 = vmatpush.msra.mxu0 0.0
        %2813 = vmatpush.msra.mxu0 0.0
        %v2814 = vand.u32 %v2767, 4294901760
        %v2815 = vsub.f32 %v2767, %v2814
        %v2816 = vand.u32 %v2815, 4294901760
        %v2817 = vsub.f32 %v2815, %v2816
        %v2818 = vand.u32 %v2817, 4294901760
        %2819 = vmatpush.msra.mxu0 %v2818
        %v2820 = vand.u32 %v2771, 4294901760
        %2821 = vmatmul.f32.gmra.mxu0 %v2820
        %v2822 = vpop.f32.mrf.mxu0
        %v2823 = vadd.f32 %v2797, %v2822
        %2824 = vdwg.mxu0
        %2825 = vmatpush.msra.mxu0 0.0
        %2826 = vmatpush.msra.mxu0 0.0
        %2827 = vmatpush.msra.mxu0 0.0
        %2828 = vmatpush.msra.mxu0 0.0
        %2829 = vmatpush.msra.mxu0 0.0
        %2830 = vmatpush.msra.mxu0 0.0
        %2831 = vmatpush.msra.mxu0 0.0
        %2832 = vmatpush.msra.mxu0 0.0
        %2833 = vmatpush.msra.mxu0 0.0
        %2834 = vmatpush.msra.mxu0 0.0
        %2835 = vmatpush.msra.mxu0 0.0
        %2836 = vmatpush.msra.mxu0 0.0
        %2837 = vmatpush.msra.mxu0 0.0
        %2838 = vmatpush.msra.mxu0 0.0
        %2839 = vmatpush.msra.mxu0 0.0
        %v2840 = vand.u32 %v2767, 4294901760
        %v2841 = vsub.f32 %v2767, %v2840
        %2842 = vmatpush.msra.mxu0 %v2841
        %v2843 = vand.u32 %v2771, 4294901760
        %v2844 = vsub.f32 %v2771, %v2843
        %2845 = vmatmul.f32.gmra.mxu0 %v2844
        %v2846 = vpop.f32.mrf.mxu0
        %v2847 = vadd.f32 %v2823, %v2846
        %2848 = vdwg.mxu0
        %2849 = vmatpush.msra.mxu0 0.0
        %2850 = vmatpush.msra.mxu0 0.0
        %2851 = vmatpush.msra.mxu0 0.0
        %2852 = vmatpush.msra.mxu0 0.0
        %2853 = vmatpush.msra.mxu0 0.0
        %2854 = vmatpush.msra.mxu0 0.0
        %2855 = vmatpush.msra.mxu0 0.0
        %2856 = vmatpush.msra.mxu0 0.0
        %2857 = vmatpush.msra.mxu0 0.0
        %2858 = vmatpush.msra.mxu0 0.0
        %2859 = vmatpush.msra.mxu0 0.0
        %2860 = vmatpush.msra.mxu0 0.0
        %2861 = vmatpush.msra.mxu0 0.0
        %2862 = vmatpush.msra.mxu0 0.0
        %2863 = vmatpush.msra.mxu0 0.0
        %v2864 = vand.u32 %v2767, 4294901760
        %2865 = vmatpush.msra.mxu0 %v2864
        %v2866 = vand.u32 %v2771, 4294901760
        %v2867 = vsub.f32 %v2771, %v2866
        %v2868 = vand.u32 %v2867, 4294901760
        %2869 = vmatmul.f32.gmra.mxu0 %v2868
        %v2870 = vpop.f32.mrf.mxu0
        %v2871 = vadd.f32 %v2847, %v2870
        %2872 = vdwg.mxu0
        %2873 = vmatpush.msra.mxu0 0.0
        %2874 = vmatpush.msra.mxu0 0.0
        %2875 = vmatpush.msra.mxu0 0.0
        %2876 = vmatpush.msra.mxu0 0.0
        %2877 = vmatpush.msra.mxu0 0.0
        %2878 = vmatpush.msra.mxu0 0.0
        %2879 = vmatpush.msra.mxu0 0.0
        %2880 = vmatpush.msra.mxu0 0.0
        %2881 = vmatpush.msra.mxu0 0.0
        %2882 = vmatpush.msra.mxu0 0.0
        %2883 = vmatpush.msra.mxu0 0.0
        %2884 = vmatpush.msra.mxu0 0.0
        %2885 = vmatpush.msra.mxu0 0.0
        %2886 = vmatpush.msra.mxu0 0.0
        %2887 = vmatpush.msra.mxu0 0.0
        %v2888 = vand.u32 %v2767, 4294901760
        %v2889 = vsub.f32 %v2767, %v2888
        %v2890 = vand.u32 %v2889, 4294901760
        %2891 = vmatpush.msra.mxu0 %v2890
        %v2892 = vand.u32 %v2771, 4294901760
        %2893 = vmatmul.f32.gmra.mxu0 %v2892
        %v2894 = vpop.f32.mrf.mxu0
        %v2895 = vadd.f32 %v2871, %v2894
        %2896 = vdwg.mxu0
        %2897 = vmatpush.msra.mxu0 0.0
        %2898 = vmatpush.msra.mxu0 0.0
        %2899 = vmatpush.msra.mxu0 0.0
        %2900 = vmatpush.msra.mxu0 0.0
        %2901 = vmatpush.msra.mxu0 0.0
        %2902 = vmatpush.msra.mxu0 0.0
        %2903 = vmatpush.msra.mxu0 0.0
        %2904 = vmatpush.msra.mxu0 0.0
        %2905 = vmatpush.msra.mxu0 0.0
        %2906 = vmatpush.msra.mxu0 0.0
        %2907 = vmatpush.msra.mxu0 0.0
        %2908 = vmatpush.msra.mxu0 0.0
        %2909 = vmatpush.msra.mxu0 0.0
        %2910 = vmatpush.msra.mxu0 0.0
        %2911 = vmatpush.msra.mxu0 0.0
        %v2912 = vand.u32 %v2767, 4294901760
        %2913 = vmatpush.msra.mxu0 %v2912
        %v2914 = vand.u32 %v2771, 4294901760
        %2915 = vmatmul.f32.gmra.mxu0 %v2914
        %v2916 = vpop.f32.mrf.mxu0
        %v2917 = vadd.f32 %v2895, %v2916
        %2918 = vdwg.mxu0
        %v2919 = vxor.u32 %v2917, 2147483648
        %v2920 = vmul.f32 %v2919, 1.442695
        %v2921 = vpow.pop %v2920
        %v2922 = vadd.f32 %v2921, 1.0
        %v2923 = vrcp.pop %v2922
        %v2924 = vmul.f32 %v2922, %v2923
        %v2925 = vsub.f32 1.0, %v2924
        %v2926 = vmul.f32 %v2923, %v2925
        %v2927 = vadd.f32 %v2923, %v2926
        %vm2928 = vweird.f32 %v2922
        %vm2929 = vweird.f32 %v2923
        %vm2930 = vmor %vm2928, %vm2929
        %v2931 = vsel %vm2930, %v2923, %v2927
        %v2932 = vand.u32 2147483647, %v2922
        %vm2933 = vcmp.eq.f32.partialorder %v2932, 8.507059e+37
        %v2934 = vand.u32 %v2922, 2147483648
        %v2935 = vor.u32 1.1754944e-38, %v2934
        %v2936 = vsel %vm2933, %v2935, %v2931
        %v2937 = vmul.f32 1.0, %v2936
        %v2939 = vsel %vm1842, %v2190, 0
        %v2942 = vsel %vm1842, %v326, 0
        %v2945 = vsel %vm1842, %v327, 0
        %v2948 = vsel %vm1842, %v328, 0
        %v2951 = vsel %vm1842, %v329, 0
        %v2954 = vsel %vm1842, %v330, 0
        %v2957 = vsel %vm1842, %v331, 0
        %v2960 = vsel %vm1842, %v332, 0
        %v2963 = vsel %vm1842, %v333, 0
        %v2966 = vsel %vm1842, %v334, 0
        %v2969 = vsel %vm1842, %v335, 0
        %v2972 = vsel %vm1842, %v336, 0
        %v2975 = vsel %vm1842, %v337, 0
        %v2978 = vsel %vm1842, %v338, 0
        %v2981 = vsel %vm1842, %v339, 0
        %v2984 = vsel %vm1842, %v340, 0
        %v2987 = vsel %vm1842, %v341, 0
        %v2990 = vsel %vm1842, %v342, 0
        %v2993 = vsel %vm1842, %v343, 0
        %v2996 = vsel %vm1842, %v344, 0
        %v2999 = vsel %vm1842, %v345, 0
        %v3002 = vsel %vm1842, %v346, 0
        %v3005 = vsel %vm1842, %v347, 0
        %v3008 = vsel %vm1842, %v348, 0
        %v3011 = vsel %vm1842, %v349, 0
        %v3014 = vsel %vm1842, %v350, 0
        %v3017 = vsel %vm1842, %v351, 0
        %v3020 = vsel %vm1842, %v352, 0
        %v3023 = vsel %vm1842, %v353, 0
        %v3026 = vsel %vm1842, %v354, 0
        %v3029 = vsel %vm1842, %v355, 0
        %v3032 = vsel %vm1842, %v356, 0
        %v3035 = vsel %vm1842, %v357, 0
        %v3037 = vand.u32 %v2987, 4294901760
        %3038 = vmatpush.xpose.msra.mxu0 %v3037
        %v3039 = vand.u32 %v2984, 4294901760
        %3040 = vmatpush.xpose.msra.mxu0 %v3039
        %v3041 = vand.u32 %v2981, 4294901760
        %3042 = vmatpush.xpose.msra.mxu0 %v3041
        %v3043 = vand.u32 %v2978, 4294901760
        %3044 = vmatpush.xpose.msra.mxu0 %v3043
        %v3045 = vand.u32 %v2975, 4294901760
        %3046 = vmatpush.xpose.msra.mxu0 %v3045
        %v3047 = vand.u32 %v2972, 4294901760
        %3048 = vmatpush.xpose.msra.mxu0 %v3047
        %v3049 = vand.u32 %v2969, 4294901760
        %3050 = vmatpush.xpose.msra.mxu0 %v3049
        %v3051 = vand.u32 %v2966, 4294901760
        %3052 = vmatpush.xpose.msra.mxu0 %v3051
        %v3053 = vand.u32 %v2963, 4294901760
        %3054 = vmatpush.xpose.msra.mxu0 %v3053
        %v3055 = vand.u32 %v2960, 4294901760
        %3056 = vmatpush.xpose.msra.mxu0 %v3055
        %v3057 = vand.u32 %v2957, 4294901760
        %3058 = vmatpush.xpose.msra.mxu0 %v3057
        %v3059 = vand.u32 %v2954, 4294901760
        %3060 = vmatpush.xpose.msra.mxu0 %v3059
        %v3061 = vand.u32 %v2951, 4294901760
        %3062 = vmatpush.xpose.msra.mxu0 %v3061
        %v3063 = vand.u32 %v2948, 4294901760
        %3064 = vmatpush.xpose.msra.mxu0 %v3063
        %v3065 = vand.u32 %v2945, 4294901760
        %3066 = vmatpush.xpose.msra.mxu0 %v3065
        %v3067 = vand.u32 %v2942, 4294901760
        %3068 = vmatpush.xpose.msra.mxu0 %v3067
        %v3069 = vand.u32 %v2939, 4294901760
        %v3070 = vsub.f32 %v2939, %v3069
        %v3071 = vand.u32 %v3070, 4294901760
        %v3072 = vsub.f32 %v3070, %v3071
        %v3073 = vand.u32 %v3072, 4294901760
        %3074 = vmatmul.f32.gmra.mxu0 %v3073
        %v3075 = vpop.f32.mrf.mxu0
        %v3076 = vadd.f32 0.0, %v3075
        %3077 = vdwg.mxu0
        %v3078 = vand.u32 %v2987, 4294901760
        %v3079 = vsub.f32 %v2987, %v3078
        %v3080 = vand.u32 %v3079, 4294901760
        %v3081 = vsub.f32 %v3079, %v3080
        %v3082 = vand.u32 %v3081, 4294901760
        %3083 = vmatpush.xpose.msra.mxu0 %v3082
        %v3084 = vand.u32 %v2984, 4294901760
        %v3085 = vsub.f32 %v2984, %v3084
        %v3086 = vand.u32 %v3085, 4294901760
        %v3087 = vsub.f32 %v3085, %v3086
        %v3088 = vand.u32 %v3087, 4294901760
        %3089 = vmatpush.xpose.msra.mxu0 %v3088
        %v3090 = vand.u32 %v2981, 4294901760
        %v3091 = vsub.f32 %v2981, %v3090
        %v3092 = vand.u32 %v3091, 4294901760
        %v3093 = vsub.f32 %v3091, %v3092
        %v3094 = vand.u32 %v3093, 4294901760
        %3095 = vmatpush.xpose.msra.mxu0 %v3094
        %v3096 = vand.u32 %v2978, 4294901760
        %v3097 = vsub.f32 %v2978, %v3096
        %v3098 = vand.u32 %v3097, 4294901760
        %v3099 = vsub.f32 %v3097, %v3098
        %v3100 = vand.u32 %v3099, 4294901760
        %3101 = vmatpush.xpose.msra.mxu0 %v3100
        %v3102 = vand.u32 %v2975, 4294901760
        %v3103 = vsub.f32 %v2975, %v3102
        %v3104 = vand.u32 %v3103, 4294901760
        %v3105 = vsub.f32 %v3103, %v3104
        %v3106 = vand.u32 %v3105, 4294901760
        %3107 = vmatpush.xpose.msra.mxu0 %v3106
        %v3108 = vand.u32 %v2972, 4294901760
        %v3109 = vsub.f32 %v2972, %v3108
        %v3110 = vand.u32 %v3109, 4294901760
        %v3111 = vsub.f32 %v3109, %v3110
        %v3112 = vand.u32 %v3111, 4294901760
        %3113 = vmatpush.xpose.msra.mxu0 %v3112
        %v3114 = vand.u32 %v2969, 4294901760
        %v3115 = vsub.f32 %v2969, %v3114
        %v3116 = vand.u32 %v3115, 4294901760
        %v3117 = vsub.f32 %v3115, %v3116
        %v3118 = vand.u32 %v3117, 4294901760
        %3119 = vmatpush.xpose.msra.mxu0 %v3118
        %v3120 = vand.u32 %v2966, 4294901760
        %v3121 = vsub.f32 %v2966, %v3120
        %v3122 = vand.u32 %v3121, 4294901760
        %v3123 = vsub.f32 %v3121, %v3122
        %v3124 = vand.u32 %v3123, 4294901760
        %3125 = vmatpush.xpose.msra.mxu0 %v3124
        %v3126 = vand.u32 %v2963, 4294901760
        %v3127 = vsub.f32 %v2963, %v3126
        %v3128 = vand.u32 %v3127, 4294901760
        %v3129 = vsub.f32 %v3127, %v3128
        %v3130 = vand.u32 %v3129, 4294901760
        %3131 = vmatpush.xpose.msra.mxu0 %v3130
        %v3132 = vand.u32 %v2960, 4294901760
        %v3133 = vsub.f32 %v2960, %v3132
        %v3134 = vand.u32 %v3133, 4294901760
        %v3135 = vsub.f32 %v3133, %v3134
        %v3136 = vand.u32 %v3135, 4294901760
        %3137 = vmatpush.xpose.msra.mxu0 %v3136
        %v3138 = vand.u32 %v2957, 4294901760
        %v3139 = vsub.f32 %v2957, %v3138
        %v3140 = vand.u32 %v3139, 4294901760
        %v3141 = vsub.f32 %v3139, %v3140
        %v3142 = vand.u32 %v3141, 4294901760
        %3143 = vmatpush.xpose.msra.mxu0 %v3142
        %v3144 = vand.u32 %v2954, 4294901760
        %v3145 = vsub.f32 %v2954, %v3144
        %v3146 = vand.u32 %v3145, 4294901760
        %v3147 = vsub.f32 %v3145, %v3146
        %v3148 = vand.u32 %v3147, 4294901760
        %3149 = vmatpush.xpose.msra.mxu0 %v3148
        %v3150 = vand.u32 %v2951, 4294901760
        %v3151 = vsub.f32 %v2951, %v3150
        %v3152 = vand.u32 %v3151, 4294901760
        %v3153 = vsub.f32 %v3151, %v3152
        %v3154 = vand.u32 %v3153, 4294901760
        %3155 = vmatpush.xpose.msra.mxu0 %v3154
        %v3156 = vand.u32 %v2948, 4294901760
        %v3157 = vsub.f32 %v2948, %v3156
        %v3158 = vand.u32 %v3157, 4294901760
        %v3159 = vsub.f32 %v3157, %v3158
        %v3160 = vand.u32 %v3159, 4294901760
        %3161 = vmatpush.xpose.msra.mxu0 %v3160
        %v3162 = vand.u32 %v2945, 4294901760
        %v3163 = vsub.f32 %v2945, %v3162
        %v3164 = vand.u32 %v3163, 4294901760
        %v3165 = vsub.f32 %v3163, %v3164
        %v3166 = vand.u32 %v3165, 4294901760
        %3167 = vmatpush.xpose.msra.mxu0 %v3166
        %v3168 = vand.u32 %v2942, 4294901760
        %v3169 = vsub.f32 %v2942, %v3168
        %v3170 = vand.u32 %v3169, 4294901760
        %v3171 = vsub.f32 %v3169, %v3170
        %v3172 = vand.u32 %v3171, 4294901760
        %3173 = vmatpush.xpose.msra.mxu0 %v3172
        %v3174 = vand.u32 %v2939, 4294901760
        %3175 = vmatmul.f32.gmra.mxu0 %v3174
        %v3176 = vpop.f32.mrf.mxu0
        %v3177 = vadd.f32 %v3076, %v3176
        %3178 = vdwg.mxu0
        %v3179 = vand.u32 %v2987, 4294901760
        %v3180 = vsub.f32 %v2987, %v3179
        %3181 = vmatpush.xpose.msra.mxu0 %v3180
        %v3182 = vand.u32 %v2984, 4294901760
        %v3183 = vsub.f32 %v2984, %v3182
        %3184 = vmatpush.xpose.msra.mxu0 %v3183
        %v3185 = vand.u32 %v2981, 4294901760
        %v3186 = vsub.f32 %v2981, %v3185
        %3187 = vmatpush.xpose.msra.mxu0 %v3186
        %v3188 = vand.u32 %v2978, 4294901760
        %v3189 = vsub.f32 %v2978, %v3188
        %3190 = vmatpush.xpose.msra.mxu0 %v3189
        %v3191 = vand.u32 %v2975, 4294901760
        %v3192 = vsub.f32 %v2975, %v3191
        %3193 = vmatpush.xpose.msra.mxu0 %v3192
        %v3194 = vand.u32 %v2972, 4294901760
        %v3195 = vsub.f32 %v2972, %v3194
        %3196 = vmatpush.xpose.msra.mxu0 %v3195
        %v3197 = vand.u32 %v2969, 4294901760
        %v3198 = vsub.f32 %v2969, %v3197
        %3199 = vmatpush.xpose.msra.mxu0 %v3198
        %v3200 = vand.u32 %v2966, 4294901760
        %v3201 = vsub.f32 %v2966, %v3200
        %3202 = vmatpush.xpose.msra.mxu0 %v3201
        %v3203 = vand.u32 %v2963, 4294901760
        %v3204 = vsub.f32 %v2963, %v3203
        %3205 = vmatpush.xpose.msra.mxu0 %v3204
        %v3206 = vand.u32 %v2960, 4294901760
        %v3207 = vsub.f32 %v2960, %v3206
        %3208 = vmatpush.xpose.msra.mxu0 %v3207
        %v3209 = vand.u32 %v2957, 4294901760
        %v3210 = vsub.f32 %v2957, %v3209
        %3211 = vmatpush.xpose.msra.mxu0 %v3210
        %v3212 = vand.u32 %v2954, 4294901760
        %v3213 = vsub.f32 %v2954, %v3212
        %3214 = vmatpush.xpose.msra.mxu0 %v3213
        %v3215 = vand.u32 %v2951, 4294901760
        %v3216 = vsub.f32 %v2951, %v3215
        %3217 = vmatpush.xpose.msra.mxu0 %v3216
        %v3218 = vand.u32 %v2948, 4294901760
        %v3219 = vsub.f32 %v2948, %v3218
        %3220 = vmatpush.xpose.msra.mxu0 %v3219
        %v3221 = vand.u32 %v2945, 4294901760
        %v3222 = vsub.f32 %v2945, %v3221
        %3223 = vmatpush.xpose.msra.mxu0 %v3222
        %v3224 = vand.u32 %v2942, 4294901760
        %v3225 = vsub.f32 %v2942, %v3224
        %3226 = vmatpush.xpose.msra.mxu0 %v3225
        %v3227 = vand.u32 %v2939, 4294901760
        %v3228 = vsub.f32 %v2939, %v3227
        %3229 = vmatmul.f32.gmra.mxu0 %v3228
        %v3230 = vpop.f32.mrf.mxu0
        %v3231 = vadd.f32 %v3177, %v3230
        %3232 = vdwg.mxu0
        %v3233 = vand.u32 %v2987, 4294901760
        %3234 = vmatpush.xpose.msra.mxu0 %v3233
        %v3235 = vand.u32 %v2984, 4294901760
        %3236 = vmatpush.xpose.msra.mxu0 %v3235
        %v3237 = vand.u32 %v2981, 4294901760
        %3238 = vmatpush.xpose.msra.mxu0 %v3237
        %v3239 = vand.u32 %v2978, 4294901760
        %3240 = vmatpush.xpose.msra.mxu0 %v3239
        %v3241 = vand.u32 %v2975, 4294901760
        %3242 = vmatpush.xpose.msra.mxu0 %v3241
        %v3243 = vand.u32 %v2972, 4294901760
        %3244 = vmatpush.xpose.msra.mxu0 %v3243
        %v3245 = vand.u32 %v2969, 4294901760
        %3246 = vmatpush.xpose.msra.mxu0 %v3245
        %v3247 = vand.u32 %v2966, 4294901760
        %3248 = vmatpush.xpose.msra.mxu0 %v3247
        %v3249 = vand.u32 %v2963, 4294901760
        %3250 = vmatpush.xpose.msra.mxu0 %v3249
        %v3251 = vand.u32 %v2960, 4294901760
        %3252 = vmatpush.xpose.msra.mxu0 %v3251
        %v3253 = vand.u32 %v2957, 4294901760
        %3254 = vmatpush.xpose.msra.mxu0 %v3253
        %v3255 = vand.u32 %v2954, 4294901760
        %3256 = vmatpush.xpose.msra.mxu0 %v3255
        %v3257 = vand.u32 %v2951, 4294901760
        %3258 = vmatpush.xpose.msra.mxu0 %v3257
        %v3259 = vand.u32 %v2948, 4294901760
        %3260 = vmatpush.xpose.msra.mxu0 %v3259
        %v3261 = vand.u32 %v2945, 4294901760
        %3262 = vmatpush.xpose.msra.mxu0 %v3261
        %v3263 = vand.u32 %v2942, 4294901760
        %3264 = vmatpush.xpose.msra.mxu0 %v3263
        %v3265 = vand.u32 %v2939, 4294901760
        %v3266 = vsub.f32 %v2939, %v3265
        %v3267 = vand.u32 %v3266, 4294901760
        %3268 = vmatmul.f32.gmra.mxu0 %v3267
        %v3269 = vpop.f32.mrf.mxu0
        %v3270 = vadd.f32 %v3231, %v3269
        %3271 = vdwg.mxu0
        %v3272 = vand.u32 %v2987, 4294901760
        %v3273 = vsub.f32 %v2987, %v3272
        %v3274 = vand.u32 %v3273, 4294901760
        %3275 = vmatpush.xpose.msra.mxu0 %v3274
        %v3276 = vand.u32 %v2984, 4294901760
        %v3277 = vsub.f32 %v2984, %v3276
        %v3278 = vand.u32 %v3277, 4294901760
        %3279 = vmatpush.xpose.msra.mxu0 %v3278
        %v3280 = vand.u32 %v2981, 4294901760
        %v3281 = vsub.f32 %v2981, %v3280
        %v3282 = vand.u32 %v3281, 4294901760
        %3283 = vmatpush.xpose.msra.mxu0 %v3282
        %v3284 = vand.u32 %v2978, 4294901760
        %v3285 = vsub.f32 %v2978, %v3284
        %v3286 = vand.u32 %v3285, 4294901760
        %3287 = vmatpush.xpose.msra.mxu0 %v3286
        %v3288 = vand.u32 %v2975, 4294901760
        %v3289 = vsub.f32 %v2975, %v3288
        %v3290 = vand.u32 %v3289, 4294901760
        %3291 = vmatpush.xpose.msra.mxu0 %v3290
        %v3292 = vand.u32 %v2972, 4294901760
        %v3293 = vsub.f32 %v2972, %v3292
        %v3294 = vand.u32 %v3293, 4294901760
        %3295 = vmatpush.xpose.msra.mxu0 %v3294
        %v3296 = vand.u32 %v2969, 4294901760
        %v3297 = vsub.f32 %v2969, %v3296
        %v3298 = vand.u32 %v3297, 4294901760
        %3299 = vmatpush.xpose.msra.mxu0 %v3298
        %v3300 = vand.u32 %v2966, 4294901760
        %v3301 = vsub.f32 %v2966, %v3300
        %v3302 = vand.u32 %v3301, 4294901760
        %3303 = vmatpush.xpose.msra.mxu0 %v3302
        %v3304 = vand.u32 %v2963, 4294901760
        %v3305 = vsub.f32 %v2963, %v3304
        %v3306 = vand.u32 %v3305, 4294901760
        %3307 = vmatpush.xpose.msra.mxu0 %v3306
        %v3308 = vand.u32 %v2960, 4294901760
        %v3309 = vsub.f32 %v2960, %v3308
        %v3310 = vand.u32 %v3309, 4294901760
        %3311 = vmatpush.xpose.msra.mxu0 %v3310
        %v3312 = vand.u32 %v2957, 4294901760
        %v3313 = vsub.f32 %v2957, %v3312
        %v3314 = vand.u32 %v3313, 4294901760
        %3315 = vmatpush.xpose.msra.mxu0 %v3314
        %v3316 = vand.u32 %v2954, 4294901760
        %v3317 = vsub.f32 %v2954, %v3316
        %v3318 = vand.u32 %v3317, 4294901760
        %3319 = vmatpush.xpose.msra.mxu0 %v3318
        %v3320 = vand.u32 %v2951, 4294901760
        %v3321 = vsub.f32 %v2951, %v3320
        %v3322 = vand.u32 %v3321, 4294901760
        %3323 = vmatpush.xpose.msra.mxu0 %v3322
        %v3324 = vand.u32 %v2948, 4294901760
        %v3325 = vsub.f32 %v2948, %v3324
        %v3326 = vand.u32 %v3325, 4294901760
        %3327 = vmatpush.xpose.msra.mxu0 %v3326
        %v3328 = vand.u32 %v2945, 4294901760
        %v3329 = vsub.f32 %v2945, %v3328
        %v3330 = vand.u32 %v3329, 4294901760
        %3331 = vmatpush.xpose.msra.mxu0 %v3330
        %v3332 = vand.u32 %v2942, 4294901760
        %v3333 = vsub.f32 %v2942, %v3332
        %v3334 = vand.u32 %v3333, 4294901760
        %3335 = vmatpush.xpose.msra.mxu0 %v3334
        %v3336 = vand.u32 %v2939, 4294901760
        %3337 = vmatmul.f32.gmra.mxu0 %v3336
        %v3338 = vpop.f32.mrf.mxu0
        %v3339 = vadd.f32 %v3270, %v3338
        %3340 = vdwg.mxu0
        %v3341 = vand.u32 %v2987, 4294901760
        %3342 = vmatpush.xpose.msra.mxu0 %v3341
        %v3343 = vand.u32 %v2984, 4294901760
        %3344 = vmatpush.xpose.msra.mxu0 %v3343
        %v3345 = vand.u32 %v2981, 4294901760
        %3346 = vmatpush.xpose.msra.mxu0 %v3345
        %v3347 = vand.u32 %v2978, 4294901760
        %3348 = vmatpush.xpose.msra.mxu0 %v3347
        %v3349 = vand.u32 %v2975, 4294901760
        %3350 = vmatpush.xpose.msra.mxu0 %v3349
        %v3351 = vand.u32 %v2972, 4294901760
        %3352 = vmatpush.xpose.msra.mxu0 %v3351
        %v3353 = vand.u32 %v2969, 4294901760
        %3354 = vmatpush.xpose.msra.mxu0 %v3353
        %v3355 = vand.u32 %v2966, 4294901760
        %3356 = vmatpush.xpose.msra.mxu0 %v3355
        %v3357 = vand.u32 %v2963, 4294901760
        %3358 = vmatpush.xpose.msra.mxu0 %v3357
        %v3359 = vand.u32 %v2960, 4294901760
        %3360 = vmatpush.xpose.msra.mxu0 %v3359
        %v3361 = vand.u32 %v2957, 4294901760
        %3362 = vmatpush.xpose.msra.mxu0 %v3361
        %v3363 = vand.u32 %v2954, 4294901760
        %3364 = vmatpush.xpose.msra.mxu0 %v3363
        %v3365 = vand.u32 %v2951, 4294901760
        %3366 = vmatpush.xpose.msra.mxu0 %v3365
        %v3367 = vand.u32 %v2948, 4294901760
        %3368 = vmatpush.xpose.msra.mxu0 %v3367
        %v3369 = vand.u32 %v2945, 4294901760
        %3370 = vmatpush.xpose.msra.mxu0 %v3369
        %v3371 = vand.u32 %v2942, 4294901760
        %3372 = vmatpush.xpose.msra.mxu0 %v3371
        %v3373 = vand.u32 %v2939, 4294901760
        %3374 = vmatmul.f32.gmra.mxu0 %v3373
        %v3375 = vpop.f32.mrf.mxu0
        %v3376 = vadd.f32 %v3339, %v3375
        %3377 = vdwg.mxu0
        %v3378 = vand.u32 %v3035, 4294901760
        %3379 = vmatpush.xpose.msra.mxu0 %v3378
        %v3380 = vand.u32 %v3032, 4294901760
        %3381 = vmatpush.xpose.msra.mxu0 %v3380
        %v3382 = vand.u32 %v3029, 4294901760
        %3383 = vmatpush.xpose.msra.mxu0 %v3382
        %v3384 = vand.u32 %v3026, 4294901760
        %3385 = vmatpush.xpose.msra.mxu0 %v3384
        %v3386 = vand.u32 %v3023, 4294901760
        %3387 = vmatpush.xpose.msra.mxu0 %v3386
        %v3388 = vand.u32 %v3020, 4294901760
        %3389 = vmatpush.xpose.msra.mxu0 %v3388
        %v3390 = vand.u32 %v3017, 4294901760
        %3391 = vmatpush.xpose.msra.mxu0 %v3390
        %v3392 = vand.u32 %v3014, 4294901760
        %3393 = vmatpush.xpose.msra.mxu0 %v3392
        %v3394 = vand.u32 %v3011, 4294901760
        %3395 = vmatpush.xpose.msra.mxu0 %v3394
        %v3396 = vand.u32 %v3008, 4294901760
        %3397 = vmatpush.xpose.msra.mxu0 %v3396
        %v3398 = vand.u32 %v3005, 4294901760
        %3399 = vmatpush.xpose.msra.mxu0 %v3398
        %v3400 = vand.u32 %v3002, 4294901760
        %3401 = vmatpush.xpose.msra.mxu0 %v3400
        %v3402 = vand.u32 %v2999, 4294901760
        %3403 = vmatpush.xpose.msra.mxu0 %v3402
        %v3404 = vand.u32 %v2996, 4294901760
        %3405 = vmatpush.xpose.msra.mxu0 %v3404
        %v3406 = vand.u32 %v2993, 4294901760
        %3407 = vmatpush.xpose.msra.mxu0 %v3406
        %v3408 = vand.u32 %v2990, 4294901760
        %3409 = vmatpush.xpose.msra.mxu0 %v3408
        %v3410 = vand.u32 %v2939, 4294901760
        %v3411 = vsub.f32 %v2939, %v3410
        %v3412 = vand.u32 %v3411, 4294901760
        %v3413 = vsub.f32 %v3411, %v3412
        %v3414 = vand.u32 %v3413, 4294901760
        %3415 = vmatmul.f32.gmra.mxu0 %v3414
        %v3416 = vpop.f32.mrf.mxu0
        %v3417 = vadd.f32 0.0, %v3416
        %3418 = vdwg.mxu0
        %v3419 = vand.u32 %v3035, 4294901760
        %v3420 = vsub.f32 %v3035, %v3419
        %v3421 = vand.u32 %v3420, 4294901760
        %v3422 = vsub.f32 %v3420, %v3421
        %v3423 = vand.u32 %v3422, 4294901760
        %3424 = vmatpush.xpose.msra.mxu0 %v3423
        %v3425 = vand.u32 %v3032, 4294901760
        %v3426 = vsub.f32 %v3032, %v3425
        %v3427 = vand.u32 %v3426, 4294901760
        %v3428 = vsub.f32 %v3426, %v3427
        %v3429 = vand.u32 %v3428, 4294901760
        %3430 = vmatpush.xpose.msra.mxu0 %v3429
        %v3431 = vand.u32 %v3029, 4294901760
        %v3432 = vsub.f32 %v3029, %v3431
        %v3433 = vand.u32 %v3432, 4294901760
        %v3434 = vsub.f32 %v3432, %v3433
        %v3435 = vand.u32 %v3434, 4294901760
        %3436 = vmatpush.xpose.msra.mxu0 %v3435
        %v3437 = vand.u32 %v3026, 4294901760
        %v3438 = vsub.f32 %v3026, %v3437
        %v3439 = vand.u32 %v3438, 4294901760
        %v3440 = vsub.f32 %v3438, %v3439
        %v3441 = vand.u32 %v3440, 4294901760
        %3442 = vmatpush.xpose.msra.mxu0 %v3441
        %v3443 = vand.u32 %v3023, 4294901760
        %v3444 = vsub.f32 %v3023, %v3443
        %v3445 = vand.u32 %v3444, 4294901760
        %v3446 = vsub.f32 %v3444, %v3445
        %v3447 = vand.u32 %v3446, 4294901760
        %3448 = vmatpush.xpose.msra.mxu0 %v3447
        %v3449 = vand.u32 %v3020, 4294901760
        %v3450 = vsub.f32 %v3020, %v3449
        %v3451 = vand.u32 %v3450, 4294901760
        %v3452 = vsub.f32 %v3450, %v3451
        %v3453 = vand.u32 %v3452, 4294901760
        %3454 = vmatpush.xpose.msra.mxu0 %v3453
        %v3455 = vand.u32 %v3017, 4294901760
        %v3456 = vsub.f32 %v3017, %v3455
        %v3457 = vand.u32 %v3456, 4294901760
        %v3458 = vsub.f32 %v3456, %v3457
        %v3459 = vand.u32 %v3458, 4294901760
        %3460 = vmatpush.xpose.msra.mxu0 %v3459
        %v3461 = vand.u32 %v3014, 4294901760
        %v3462 = vsub.f32 %v3014, %v3461
        %v3463 = vand.u32 %v3462, 4294901760
        %v3464 = vsub.f32 %v3462, %v3463
        %v3465 = vand.u32 %v3464, 4294901760
        %3466 = vmatpush.xpose.msra.mxu0 %v3465
        %v3467 = vand.u32 %v3011, 4294901760
        %v3468 = vsub.f32 %v3011, %v3467
        %v3469 = vand.u32 %v3468, 4294901760
        %v3470 = vsub.f32 %v3468, %v3469
        %v3471 = vand.u32 %v3470, 4294901760
        %3472 = vmatpush.xpose.msra.mxu0 %v3471
        %v3473 = vand.u32 %v3008, 4294901760
        %v3474 = vsub.f32 %v3008, %v3473
        %v3475 = vand.u32 %v3474, 4294901760
        %v3476 = vsub.f32 %v3474, %v3475
        %v3477 = vand.u32 %v3476, 4294901760
        %3478 = vmatpush.xpose.msra.mxu0 %v3477
        %v3479 = vand.u32 %v3005, 4294901760
        %v3480 = vsub.f32 %v3005, %v3479
        %v3481 = vand.u32 %v3480, 4294901760
        %v3482 = vsub.f32 %v3480, %v3481
        %v3483 = vand.u32 %v3482, 4294901760
        %3484 = vmatpush.xpose.msra.mxu0 %v3483
        %v3485 = vand.u32 %v3002, 4294901760
        %v3486 = vsub.f32 %v3002, %v3485
        %v3487 = vand.u32 %v3486, 4294901760
        %v3488 = vsub.f32 %v3486, %v3487
        %v3489 = vand.u32 %v3488, 4294901760
        %3490 = vmatpush.xpose.msra.mxu0 %v3489
        %v3491 = vand.u32 %v2999, 4294901760
        %v3492 = vsub.f32 %v2999, %v3491
        %v3493 = vand.u32 %v3492, 4294901760
        %v3494 = vsub.f32 %v3492, %v3493
        %v3495 = vand.u32 %v3494, 4294901760
        %3496 = vmatpush.xpose.msra.mxu0 %v3495
        %v3497 = vand.u32 %v2996, 4294901760
        %v3498 = vsub.f32 %v2996, %v3497
        %v3499 = vand.u32 %v3498, 4294901760
        %v3500 = vsub.f32 %v3498, %v3499
        %v3501 = vand.u32 %v3500, 4294901760
        %3502 = vmatpush.xpose.msra.mxu0 %v3501
        %v3503 = vand.u32 %v2993, 4294901760
        %v3504 = vsub.f32 %v2993, %v3503
        %v3505 = vand.u32 %v3504, 4294901760
        %v3506 = vsub.f32 %v3504, %v3505
        %v3507 = vand.u32 %v3506, 4294901760
        %3508 = vmatpush.xpose.msra.mxu0 %v3507
        %v3509 = vand.u32 %v2990, 4294901760
        %v3510 = vsub.f32 %v2990, %v3509
        %v3511 = vand.u32 %v3510, 4294901760
        %v3512 = vsub.f32 %v3510, %v3511
        %v3513 = vand.u32 %v3512, 4294901760
        %3514 = vmatpush.xpose.msra.mxu0 %v3513
        %v3515 = vand.u32 %v2939, 4294901760
        %3516 = vmatmul.f32.gmra.mxu0 %v3515
        %v3517 = vpop.f32.mrf.mxu0
        %v3518 = vadd.f32 %v3417, %v3517
        %3519 = vdwg.mxu0
        %v3520 = vand.u32 %v3035, 4294901760
        %v3521 = vsub.f32 %v3035, %v3520
        %3522 = vmatpush.xpose.msra.mxu0 %v3521
        %v3523 = vand.u32 %v3032, 4294901760
        %v3524 = vsub.f32 %v3032, %v3523
        %3525 = vmatpush.xpose.msra.mxu0 %v3524
        %v3526 = vand.u32 %v3029, 4294901760
        %v3527 = vsub.f32 %v3029, %v3526
        %3528 = vmatpush.xpose.msra.mxu0 %v3527
        %v3529 = vand.u32 %v3026, 4294901760
        %v3530 = vsub.f32 %v3026, %v3529
        %3531 = vmatpush.xpose.msra.mxu0 %v3530
        %v3532 = vand.u32 %v3023, 4294901760
        %v3533 = vsub.f32 %v3023, %v3532
        %3534 = vmatpush.xpose.msra.mxu0 %v3533
        %v3535 = vand.u32 %v3020, 4294901760
        %v3536 = vsub.f32 %v3020, %v3535
        %3537 = vmatpush.xpose.msra.mxu0 %v3536
        %v3538 = vand.u32 %v3017, 4294901760
        %v3539 = vsub.f32 %v3017, %v3538
        %3540 = vmatpush.xpose.msra.mxu0 %v3539
        %v3541 = vand.u32 %v3014, 4294901760
        %v3542 = vsub.f32 %v3014, %v3541
        %3543 = vmatpush.xpose.msra.mxu0 %v3542
        %v3544 = vand.u32 %v3011, 4294901760
        %v3545 = vsub.f32 %v3011, %v3544
        %3546 = vmatpush.xpose.msra.mxu0 %v3545
        %v3547 = vand.u32 %v3008, 4294901760
        %v3548 = vsub.f32 %v3008, %v3547
        %3549 = vmatpush.xpose.msra.mxu0 %v3548
        %v3550 = vand.u32 %v3005, 4294901760
        %v3551 = vsub.f32 %v3005, %v3550
        %3552 = vmatpush.xpose.msra.mxu0 %v3551
        %v3553 = vand.u32 %v3002, 4294901760
        %v3554 = vsub.f32 %v3002, %v3553
        %3555 = vmatpush.xpose.msra.mxu0 %v3554
        %v3556 = vand.u32 %v2999, 4294901760
        %v3557 = vsub.f32 %v2999, %v3556
        %3558 = vmatpush.xpose.msra.mxu0 %v3557
        %v3559 = vand.u32 %v2996, 4294901760
        %v3560 = vsub.f32 %v2996, %v3559
        %3561 = vmatpush.xpose.msra.mxu0 %v3560
        %v3562 = vand.u32 %v2993, 4294901760
        %v3563 = vsub.f32 %v2993, %v3562
        %3564 = vmatpush.xpose.msra.mxu0 %v3563
        %v3565 = vand.u32 %v2990, 4294901760
        %v3566 = vsub.f32 %v2990, %v3565
        %3567 = vmatpush.xpose.msra.mxu0 %v3566
        %v3568 = vand.u32 %v2939, 4294901760
        %v3569 = vsub.f32 %v2939, %v3568
        %3570 = vmatmul.f32.gmra.mxu0 %v3569
        %v3571 = vpop.f32.mrf.mxu0
        %v3572 = vadd.f32 %v3518, %v3571
        %3573 = vdwg.mxu0
        %v3574 = vand.u32 %v3035, 4294901760
        %3575 = vmatpush.xpose.msra.mxu0 %v3574
        %v3576 = vand.u32 %v3032, 4294901760
        %3577 = vmatpush.xpose.msra.mxu0 %v3576
        %v3578 = vand.u32 %v3029, 4294901760
        %3579 = vmatpush.xpose.msra.mxu0 %v3578
        %v3580 = vand.u32 %v3026, 4294901760
        %3581 = vmatpush.xpose.msra.mxu0 %v3580
        %v3582 = vand.u32 %v3023, 4294901760
        %3583 = vmatpush.xpose.msra.mxu0 %v3582
        %v3584 = vand.u32 %v3020, 4294901760
        %3585 = vmatpush.xpose.msra.mxu0 %v3584
        %v3586 = vand.u32 %v3017, 4294901760
        %3587 = vmatpush.xpose.msra.mxu0 %v3586
        %v3588 = vand.u32 %v3014, 4294901760
        %3589 = vmatpush.xpose.msra.mxu0 %v3588
        %v3590 = vand.u32 %v3011, 4294901760
        %3591 = vmatpush.xpose.msra.mxu0 %v3590
        %v3592 = vand.u32 %v3008, 4294901760
        %3593 = vmatpush.xpose.msra.mxu0 %v3592
        %v3594 = vand.u32 %v3005, 4294901760
        %3595 = vmatpush.xpose.msra.mxu0 %v3594
        %v3596 = vand.u32 %v3002, 4294901760
        %3597 = vmatpush.xpose.msra.mxu0 %v3596
        %v3598 = vand.u32 %v2999, 4294901760
        %3599 = vmatpush.xpose.msra.mxu0 %v3598
        %v3600 = vand.u32 %v2996, 4294901760
        %3601 = vmatpush.xpose.msra.mxu0 %v3600
        %v3602 = vand.u32 %v2993, 4294901760
        %3603 = vmatpush.xpose.msra.mxu0 %v3602
        %v3604 = vand.u32 %v2990, 4294901760
        %3605 = vmatpush.xpose.msra.mxu0 %v3604
        %v3606 = vand.u32 %v2939, 4294901760
        %v3607 = vsub.f32 %v2939, %v3606
        %v3608 = vand.u32 %v3607, 4294901760
        %3609 = vmatmul.f32.gmra.mxu0 %v3608
        %v3610 = vpop.f32.mrf.mxu0
        %v3611 = vadd.f32 %v3572, %v3610
        %3612 = vdwg.mxu0
        %v3613 = vand.u32 %v3035, 4294901760
        %v3614 = vsub.f32 %v3035, %v3613
        %v3615 = vand.u32 %v3614, 4294901760
        %3616 = vmatpush.xpose.msra.mxu0 %v3615
        %v3617 = vand.u32 %v3032, 4294901760
        %v3618 = vsub.f32 %v3032, %v3617
        %v3619 = vand.u32 %v3618, 4294901760
        %3620 = vmatpush.xpose.msra.mxu0 %v3619
        %v3621 = vand.u32 %v3029, 4294901760
        %v3622 = vsub.f32 %v3029, %v3621
        %v3623 = vand.u32 %v3622, 4294901760
        %3624 = vmatpush.xpose.msra.mxu0 %v3623
        %v3625 = vand.u32 %v3026, 4294901760
        %v3626 = vsub.f32 %v3026, %v3625
        %v3627 = vand.u32 %v3626, 4294901760
        %3628 = vmatpush.xpose.msra.mxu0 %v3627
        %v3629 = vand.u32 %v3023, 4294901760
        %v3630 = vsub.f32 %v3023, %v3629
        %v3631 = vand.u32 %v3630, 4294901760
        %3632 = vmatpush.xpose.msra.mxu0 %v3631
        %v3633 = vand.u32 %v3020, 4294901760
        %v3634 = vsub.f32 %v3020, %v3633
        %v3635 = vand.u32 %v3634, 4294901760
        %3636 = vmatpush.xpose.msra.mxu0 %v3635
        %v3637 = vand.u32 %v3017, 4294901760
        %v3638 = vsub.f32 %v3017, %v3637
        %v3639 = vand.u32 %v3638, 4294901760
        %3640 = vmatpush.xpose.msra.mxu0 %v3639
        %v3641 = vand.u32 %v3014, 4294901760
        %v3642 = vsub.f32 %v3014, %v3641
        %v3643 = vand.u32 %v3642, 4294901760
        %3644 = vmatpush.xpose.msra.mxu0 %v3643
        %v3645 = vand.u32 %v3011, 4294901760
        %v3646 = vsub.f32 %v3011, %v3645
        %v3647 = vand.u32 %v3646, 4294901760
        %3648 = vmatpush.xpose.msra.mxu0 %v3647
        %v3649 = vand.u32 %v3008, 4294901760
        %v3650 = vsub.f32 %v3008, %v3649
        %v3651 = vand.u32 %v3650, 4294901760
        %3652 = vmatpush.xpose.msra.mxu0 %v3651
        %v3653 = vand.u32 %v3005, 4294901760
        %v3654 = vsub.f32 %v3005, %v3653
        %v3655 = vand.u32 %v3654, 4294901760
        %3656 = vmatpush.xpose.msra.mxu0 %v3655
        %v3657 = vand.u32 %v3002, 4294901760
        %v3658 = vsub.f32 %v3002, %v3657
        %v3659 = vand.u32 %v3658, 4294901760
        %3660 = vmatpush.xpose.msra.mxu0 %v3659
        %v3661 = vand.u32 %v2999, 4294901760
        %v3662 = vsub.f32 %v2999, %v3661
        %v3663 = vand.u32 %v3662, 4294901760
        %3664 = vmatpush.xpose.msra.mxu0 %v3663
        %v3665 = vand.u32 %v2996, 4294901760
        %v3666 = vsub.f32 %v2996, %v3665
        %v3667 = vand.u32 %v3666, 4294901760
        %3668 = vmatpush.xpose.msra.mxu0 %v3667
        %v3669 = vand.u32 %v2993, 4294901760
        %v3670 = vsub.f32 %v2993, %v3669
        %v3671 = vand.u32 %v3670, 4294901760
        %3672 = vmatpush.xpose.msra.mxu0 %v3671
        %v3673 = vand.u32 %v2990, 4294901760
        %v3674 = vsub.f32 %v2990, %v3673
        %v3675 = vand.u32 %v3674, 4294901760
        %3676 = vmatpush.xpose.msra.mxu0 %v3675
        %v3677 = vand.u32 %v2939, 4294901760
        %3678 = vmatmul.f32.gmra.mxu0 %v3677
        %v3679 = vpop.f32.mrf.mxu0
        %v3680 = vadd.f32 %v3611, %v3679
        %3681 = vdwg.mxu0
        %v3682 = vand.u32 %v3035, 4294901760
        %3683 = vmatpush.xpose.msra.mxu0 %v3682
        %v3684 = vand.u32 %v3032, 4294901760
        %3685 = vmatpush.xpose.msra.mxu0 %v3684
        %v3686 = vand.u32 %v3029, 4294901760
        %3687 = vmatpush.xpose.msra.mxu0 %v3686
        %v3688 = vand.u32 %v3026, 4294901760
        %3689 = vmatpush.xpose.msra.mxu0 %v3688
        %v3690 = vand.u32 %v3023, 4294901760
        %3691 = vmatpush.xpose.msra.mxu0 %v3690
        %v3692 = vand.u32 %v3020, 4294901760
        %3693 = vmatpush.xpose.msra.mxu0 %v3692
        %v3694 = vand.u32 %v3017, 4294901760
        %3695 = vmatpush.xpose.msra.mxu0 %v3694
        %v3696 = vand.u32 %v3014, 4294901760
        %3697 = vmatpush.xpose.msra.mxu0 %v3696
        %v3698 = vand.u32 %v3011, 4294901760
        %3699 = vmatpush.xpose.msra.mxu0 %v3698
        %v3700 = vand.u32 %v3008, 4294901760
        %3701 = vmatpush.xpose.msra.mxu0 %v3700
        %v3702 = vand.u32 %v3005, 4294901760
        %3703 = vmatpush.xpose.msra.mxu0 %v3702
        %v3704 = vand.u32 %v3002, 4294901760
        %3705 = vmatpush.xpose.msra.mxu0 %v3704
        %v3706 = vand.u32 %v2999, 4294901760
        %3707 = vmatpush.xpose.msra.mxu0 %v3706
        %v3708 = vand.u32 %v2996, 4294901760
        %3709 = vmatpush.xpose.msra.mxu0 %v3708
        %v3710 = vand.u32 %v2993, 4294901760
        %3711 = vmatpush.xpose.msra.mxu0 %v3710
        %v3712 = vand.u32 %v2990, 4294901760
        %3713 = vmatpush.xpose.msra.mxu0 %v3712
        %v3714 = vand.u32 %v2939, 4294901760
        %3715 = vmatmul.f32.gmra.mxu0 %v3714
        %v3716 = vpop.f32.mrf.mxu0
        %v3717 = vadd.f32 %v3680, %v3716
        %3718 = vdwg.mxu0
        %v3720 = vsel %vm1842, %v2541, 0
        %v3723 = vsel %vm1842, %v358, 0
        %v3726 = vsel %vm1842, %v359, 0
        %v3729 = vsel %vm1842, %v360, 0
        %v3732 = vsel %vm1842, %v361, 0
        %v3735 = vsel %vm1842, %v362, 0
        %v3738 = vsel %vm1842, %v363, 0
        %v3741 = vsel %vm1842, %v364, 0
        %v3744 = vsel %vm1842, %v365, 0
        %v3747 = vsel %vm1842, %v366, 0
        %v3750 = vsel %vm1842, %v367, 0
        %v3753 = vsel %vm1842, %v368, 0
        %v3756 = vsel %vm1842, %v369, 0
        %v3759 = vsel %vm1842, %v370, 0
        %v3762 = vsel %vm1842, %v371, 0
        %v3765 = vsel %vm1842, %v372, 0
        %v3768 = vsel %vm1842, %v373, 0
        %v3771 = vsel %vm1842, %v374, 0
        %v3774 = vsel %vm1842, %v375, 0
        %v3777 = vsel %vm1842, %v376, 0
        %v3780 = vsel %vm1842, %v377, 0
        %v3783 = vsel %vm1842, %v378, 0
        %v3786 = vsel %vm1842, %v379, 0
        %v3789 = vsel %vm1842, %v380, 0
        %v3792 = vsel %vm1842, %v381, 0
        %v3795 = vsel %vm1842, %v382, 0
        %v3798 = vsel %vm1842, %v383, 0
        %v3801 = vsel %vm1842, %v384, 0
        %v3804 = vsel %vm1842, %v385, 0
        %v3807 = vsel %vm1842, %v386, 0
        %v3810 = vsel %vm1842, %v387, 0
        %v3813 = vsel %vm1842, %v388, 0
        %v3816 = vsel %vm1842, %v389, 0
        %v3818 = vand.u32 %v3768, 4294901760
        %3819 = vmatpush.xpose.msra.mxu0 %v3818
        %v3820 = vand.u32 %v3765, 4294901760
        %3821 = vmatpush.xpose.msra.mxu0 %v3820
        %v3822 = vand.u32 %v3762, 4294901760
        %3823 = vmatpush.xpose.msra.mxu0 %v3822
        %v3824 = vand.u32 %v3759, 4294901760
        %3825 = vmatpush.xpose.msra.mxu0 %v3824
        %v3826 = vand.u32 %v3756, 4294901760
        %3827 = vmatpush.xpose.msra.mxu0 %v3826
        %v3828 = vand.u32 %v3753, 4294901760
        %3829 = vmatpush.xpose.msra.mxu0 %v3828
        %v3830 = vand.u32 %v3750, 4294901760
        %3831 = vmatpush.xpose.msra.mxu0 %v3830
        %v3832 = vand.u32 %v3747, 4294901760
        %3833 = vmatpush.xpose.msra.mxu0 %v3832
        %v3834 = vand.u32 %v3744, 4294901760
        %3835 = vmatpush.xpose.msra.mxu0 %v3834
        %v3836 = vand.u32 %v3741, 4294901760
        %3837 = vmatpush.xpose.msra.mxu0 %v3836
        %v3838 = vand.u32 %v3738, 4294901760
        %3839 = vmatpush.xpose.msra.mxu0 %v3838
        %v3840 = vand.u32 %v3735, 4294901760
        %3841 = vmatpush.xpose.msra.mxu0 %v3840
        %v3842 = vand.u32 %v3732, 4294901760
        %3843 = vmatpush.xpose.msra.mxu0 %v3842
        %v3844 = vand.u32 %v3729, 4294901760
        %3845 = vmatpush.xpose.msra.mxu0 %v3844
        %v3846 = vand.u32 %v3726, 4294901760
        %3847 = vmatpush.xpose.msra.mxu0 %v3846
        %v3848 = vand.u32 %v3723, 4294901760
        %3849 = vmatpush.xpose.msra.mxu0 %v3848
        %v3850 = vand.u32 %v3720, 4294901760
        %v3851 = vsub.f32 %v3720, %v3850
        %v3852 = vand.u32 %v3851, 4294901760
        %v3853 = vsub.f32 %v3851, %v3852
        %v3854 = vand.u32 %v3853, 4294901760
        %3855 = vmatmul.f32.gmra.mxu0 %v3854
        %v3856 = vpop.f32.mrf.mxu0
        %v3857 = vadd.f32 0.0, %v3856
        %3858 = vdwg.mxu0
        %v3859 = vand.u32 %v3768, 4294901760
        %v3860 = vsub.f32 %v3768, %v3859
        %v3861 = vand.u32 %v3860, 4294901760
        %v3862 = vsub.f32 %v3860, %v3861
        %v3863 = vand.u32 %v3862, 4294901760
        %3864 = vmatpush.xpose.msra.mxu0 %v3863
        %v3865 = vand.u32 %v3765, 4294901760
        %v3866 = vsub.f32 %v3765, %v3865
        %v3867 = vand.u32 %v3866, 4294901760
        %v3868 = vsub.f32 %v3866, %v3867
        %v3869 = vand.u32 %v3868, 4294901760
        %3870 = vmatpush.xpose.msra.mxu0 %v3869
        %v3871 = vand.u32 %v3762, 4294901760
        %v3872 = vsub.f32 %v3762, %v3871
        %v3873 = vand.u32 %v3872, 4294901760
        %v3874 = vsub.f32 %v3872, %v3873
        %v3875 = vand.u32 %v3874, 4294901760
        %3876 = vmatpush.xpose.msra.mxu0 %v3875
        %v3877 = vand.u32 %v3759, 4294901760
        %v3878 = vsub.f32 %v3759, %v3877
        %v3879 = vand.u32 %v3878, 4294901760
        %v3880 = vsub.f32 %v3878, %v3879
        %v3881 = vand.u32 %v3880, 4294901760
        %3882 = vmatpush.xpose.msra.mxu0 %v3881
        %v3883 = vand.u32 %v3756, 4294901760
        %v3884 = vsub.f32 %v3756, %v3883
        %v3885 = vand.u32 %v3884, 4294901760
        %v3886 = vsub.f32 %v3884, %v3885
        %v3887 = vand.u32 %v3886, 4294901760
        %3888 = vmatpush.xpose.msra.mxu0 %v3887
        %v3889 = vand.u32 %v3753, 4294901760
        %v3890 = vsub.f32 %v3753, %v3889
        %v3891 = vand.u32 %v3890, 4294901760
        %v3892 = vsub.f32 %v3890, %v3891
        %v3893 = vand.u32 %v3892, 4294901760
        %3894 = vmatpush.xpose.msra.mxu0 %v3893
        %v3895 = vand.u32 %v3750, 4294901760
        %v3896 = vsub.f32 %v3750, %v3895
        %v3897 = vand.u32 %v3896, 4294901760
        %v3898 = vsub.f32 %v3896, %v3897
        %v3899 = vand.u32 %v3898, 4294901760
        %3900 = vmatpush.xpose.msra.mxu0 %v3899
        %v3901 = vand.u32 %v3747, 4294901760
        %v3902 = vsub.f32 %v3747, %v3901
        %v3903 = vand.u32 %v3902, 4294901760
        %v3904 = vsub.f32 %v3902, %v3903
        %v3905 = vand.u32 %v3904, 4294901760
        %3906 = vmatpush.xpose.msra.mxu0 %v3905
        %v3907 = vand.u32 %v3744, 4294901760
        %v3908 = vsub.f32 %v3744, %v3907
        %v3909 = vand.u32 %v3908, 4294901760
        %v3910 = vsub.f32 %v3908, %v3909
        %v3911 = vand.u32 %v3910, 4294901760
        %3912 = vmatpush.xpose.msra.mxu0 %v3911
        %v3913 = vand.u32 %v3741, 4294901760
        %v3914 = vsub.f32 %v3741, %v3913
        %v3915 = vand.u32 %v3914, 4294901760
        %v3916 = vsub.f32 %v3914, %v3915
        %v3917 = vand.u32 %v3916, 4294901760
        %3918 = vmatpush.xpose.msra.mxu0 %v3917
        %v3919 = vand.u32 %v3738, 4294901760
        %v3920 = vsub.f32 %v3738, %v3919
        %v3921 = vand.u32 %v3920, 4294901760
        %v3922 = vsub.f32 %v3920, %v3921
        %v3923 = vand.u32 %v3922, 4294901760
        %3924 = vmatpush.xpose.msra.mxu0 %v3923
        %v3925 = vand.u32 %v3735, 4294901760
        %v3926 = vsub.f32 %v3735, %v3925
        %v3927 = vand.u32 %v3926, 4294901760
        %v3928 = vsub.f32 %v3926, %v3927
        %v3929 = vand.u32 %v3928, 4294901760
        %3930 = vmatpush.xpose.msra.mxu0 %v3929
        %v3931 = vand.u32 %v3732, 4294901760
        %v3932 = vsub.f32 %v3732, %v3931
        %v3933 = vand.u32 %v3932, 4294901760
        %v3934 = vsub.f32 %v3932, %v3933
        %v3935 = vand.u32 %v3934, 4294901760
        %3936 = vmatpush.xpose.msra.mxu0 %v3935
        %v3937 = vand.u32 %v3729, 4294901760
        %v3938 = vsub.f32 %v3729, %v3937
        %v3939 = vand.u32 %v3938, 4294901760
        %v3940 = vsub.f32 %v3938, %v3939
        %v3941 = vand.u32 %v3940, 4294901760
        %3942 = vmatpush.xpose.msra.mxu0 %v3941
        %v3943 = vand.u32 %v3726, 4294901760
        %v3944 = vsub.f32 %v3726, %v3943
        %v3945 = vand.u32 %v3944, 4294901760
        %v3946 = vsub.f32 %v3944, %v3945
        %v3947 = vand.u32 %v3946, 4294901760
        %3948 = vmatpush.xpose.msra.mxu0 %v3947
        %v3949 = vand.u32 %v3723, 4294901760
        %v3950 = vsub.f32 %v3723, %v3949
        %v3951 = vand.u32 %v3950, 4294901760
        %v3952 = vsub.f32 %v3950, %v3951
        %v3953 = vand.u32 %v3952, 4294901760
        %3954 = vmatpush.xpose.msra.mxu0 %v3953
        %v3955 = vand.u32 %v3720, 4294901760
        %3956 = vmatmul.f32.gmra.mxu0 %v3955
        %v3957 = vpop.f32.mrf.mxu0
        %v3958 = vadd.f32 %v3857, %v3957
        %3959 = vdwg.mxu0
        %v3960 = vand.u32 %v3768, 4294901760
        %v3961 = vsub.f32 %v3768, %v3960
        %3962 = vmatpush.xpose.msra.mxu0 %v3961
        %v3963 = vand.u32 %v3765, 4294901760
        %v3964 = vsub.f32 %v3765, %v3963
        %3965 = vmatpush.xpose.msra.mxu0 %v3964
        %v3966 = vand.u32 %v3762, 4294901760
        %v3967 = vsub.f32 %v3762, %v3966
        %3968 = vmatpush.xpose.msra.mxu0 %v3967
        %v3969 = vand.u32 %v3759, 4294901760
        %v3970 = vsub.f32 %v3759, %v3969
        %3971 = vmatpush.xpose.msra.mxu0 %v3970
        %v3972 = vand.u32 %v3756, 4294901760
        %v3973 = vsub.f32 %v3756, %v3972
        %3974 = vmatpush.xpose.msra.mxu0 %v3973
        %v3975 = vand.u32 %v3753, 4294901760
        %v3976 = vsub.f32 %v3753, %v3975
        %3977 = vmatpush.xpose.msra.mxu0 %v3976
        %v3978 = vand.u32 %v3750, 4294901760
        %v3979 = vsub.f32 %v3750, %v3978
        %3980 = vmatpush.xpose.msra.mxu0 %v3979
        %v3981 = vand.u32 %v3747, 4294901760
        %v3982 = vsub.f32 %v3747, %v3981
        %3983 = vmatpush.xpose.msra.mxu0 %v3982
        %v3984 = vand.u32 %v3744, 4294901760
        %v3985 = vsub.f32 %v3744, %v3984
        %3986 = vmatpush.xpose.msra.mxu0 %v3985
        %v3987 = vand.u32 %v3741, 4294901760
        %v3988 = vsub.f32 %v3741, %v3987
        %3989 = vmatpush.xpose.msra.mxu0 %v3988
        %v3990 = vand.u32 %v3738, 4294901760
        %v3991 = vsub.f32 %v3738, %v3990
        %3992 = vmatpush.xpose.msra.mxu0 %v3991
        %v3993 = vand.u32 %v3735, 4294901760
        %v3994 = vsub.f32 %v3735, %v3993
        %3995 = vmatpush.xpose.msra.mxu0 %v3994
        %v3996 = vand.u32 %v3732, 4294901760
        %v3997 = vsub.f32 %v3732, %v3996
        %3998 = vmatpush.xpose.msra.mxu0 %v3997
        %v3999 = vand.u32 %v3729, 4294901760
        %v4000 = vsub.f32 %v3729, %v3999
        %4001 = vmatpush.xpose.msra.mxu0 %v4000
        %v4002 = vand.u32 %v3726, 4294901760
        %v4003 = vsub.f32 %v3726, %v4002
        %4004 = vmatpush.xpose.msra.mxu0 %v4003
        %v4005 = vand.u32 %v3723, 4294901760
        %v4006 = vsub.f32 %v3723, %v4005
        %4007 = vmatpush.xpose.msra.mxu0 %v4006
        %v4008 = vand.u32 %v3720, 4294901760
        %v4009 = vsub.f32 %v3720, %v4008
        %4010 = vmatmul.f32.gmra.mxu0 %v4009
        %v4011 = vpop.f32.mrf.mxu0
        %v4012 = vadd.f32 %v3958, %v4011
        %4013 = vdwg.mxu0
        %v4014 = vand.u32 %v3768, 4294901760
        %4015 = vmatpush.xpose.msra.mxu0 %v4014
        %v4016 = vand.u32 %v3765, 4294901760
        %4017 = vmatpush.xpose.msra.mxu0 %v4016
        %v4018 = vand.u32 %v3762, 4294901760
        %4019 = vmatpush.xpose.msra.mxu0 %v4018
        %v4020 = vand.u32 %v3759, 4294901760
        %4021 = vmatpush.xpose.msra.mxu0 %v4020
        %v4022 = vand.u32 %v3756, 4294901760
        %4023 = vmatpush.xpose.msra.mxu0 %v4022
        %v4024 = vand.u32 %v3753, 4294901760
        %4025 = vmatpush.xpose.msra.mxu0 %v4024
        %v4026 = vand.u32 %v3750, 4294901760
        %4027 = vmatpush.xpose.msra.mxu0 %v4026
        %v4028 = vand.u32 %v3747, 4294901760
        %4029 = vmatpush.xpose.msra.mxu0 %v4028
        %v4030 = vand.u32 %v3744, 4294901760
        %4031 = vmatpush.xpose.msra.mxu0 %v4030
        %v4032 = vand.u32 %v3741, 4294901760
        %4033 = vmatpush.xpose.msra.mxu0 %v4032
        %v4034 = vand.u32 %v3738, 4294901760
        %4035 = vmatpush.xpose.msra.mxu0 %v4034
        %v4036 = vand.u32 %v3735, 4294901760
        %4037 = vmatpush.xpose.msra.mxu0 %v4036
        %v4038 = vand.u32 %v3732, 4294901760
        %4039 = vmatpush.xpose.msra.mxu0 %v4038
        %v4040 = vand.u32 %v3729, 4294901760
        %4041 = vmatpush.xpose.msra.mxu0 %v4040
        %v4042 = vand.u32 %v3726, 4294901760
        %4043 = vmatpush.xpose.msra.mxu0 %v4042
        %v4044 = vand.u32 %v3723, 4294901760
        %4045 = vmatpush.xpose.msra.mxu0 %v4044
        %v4046 = vand.u32 %v3720, 4294901760
        %v4047 = vsub.f32 %v3720, %v4046
        %v4048 = vand.u32 %v4047, 4294901760
        %4049 = vmatmul.f32.gmra.mxu0 %v4048
        %v4050 = vpop.f32.mrf.mxu0
        %v4051 = vadd.f32 %v4012, %v4050
        %4052 = vdwg.mxu0
        %v4053 = vand.u32 %v3768, 4294901760
        %v4054 = vsub.f32 %v3768, %v4053
        %v4055 = vand.u32 %v4054, 4294901760
        %4056 = vmatpush.xpose.msra.mxu0 %v4055
        %v4057 = vand.u32 %v3765, 4294901760
        %v4058 = vsub.f32 %v3765, %v4057
        %v4059 = vand.u32 %v4058, 4294901760
        %4060 = vmatpush.xpose.msra.mxu0 %v4059
        %v4061 = vand.u32 %v3762, 4294901760
        %v4062 = vsub.f32 %v3762, %v4061
        %v4063 = vand.u32 %v4062, 4294901760
        %4064 = vmatpush.xpose.msra.mxu0 %v4063
        %v4065 = vand.u32 %v3759, 4294901760
        %v4066 = vsub.f32 %v3759, %v4065
        %v4067 = vand.u32 %v4066, 4294901760
        %4068 = vmatpush.xpose.msra.mxu0 %v4067
        %v4069 = vand.u32 %v3756, 4294901760
        %v4070 = vsub.f32 %v3756, %v4069
        %v4071 = vand.u32 %v4070, 4294901760
        %4072 = vmatpush.xpose.msra.mxu0 %v4071
        %v4073 = vand.u32 %v3753, 4294901760
        %v4074 = vsub.f32 %v3753, %v4073
        %v4075 = vand.u32 %v4074, 4294901760
        %4076 = vmatpush.xpose.msra.mxu0 %v4075
        %v4077 = vand.u32 %v3750, 4294901760
        %v4078 = vsub.f32 %v3750, %v4077
        %v4079 = vand.u32 %v4078, 4294901760
        %4080 = vmatpush.xpose.msra.mxu0 %v4079
        %v4081 = vand.u32 %v3747, 4294901760
        %v4082 = vsub.f32 %v3747, %v4081
        %v4083 = vand.u32 %v4082, 4294901760
        %4084 = vmatpush.xpose.msra.mxu0 %v4083
        %v4085 = vand.u32 %v3744, 4294901760
        %v4086 = vsub.f32 %v3744, %v4085
        %v4087 = vand.u32 %v4086, 4294901760
        %4088 = vmatpush.xpose.msra.mxu0 %v4087
        %v4089 = vand.u32 %v3741, 4294901760
        %v4090 = vsub.f32 %v3741, %v4089
        %v4091 = vand.u32 %v4090, 4294901760
        %4092 = vmatpush.xpose.msra.mxu0 %v4091
        %v4093 = vand.u32 %v3738, 4294901760
        %v4094 = vsub.f32 %v3738, %v4093
        %v4095 = vand.u32 %v4094, 4294901760
        %4096 = vmatpush.xpose.msra.mxu0 %v4095
        %v4097 = vand.u32 %v3735, 4294901760
        %v4098 = vsub.f32 %v3735, %v4097
        %v4099 = vand.u32 %v4098, 4294901760
        %4100 = vmatpush.xpose.msra.mxu0 %v4099
        %v4101 = vand.u32 %v3732, 4294901760
        %v4102 = vsub.f32 %v3732, %v4101
        %v4103 = vand.u32 %v4102, 4294901760
        %4104 = vmatpush.xpose.msra.mxu0 %v4103
        %v4105 = vand.u32 %v3729, 4294901760
        %v4106 = vsub.f32 %v3729, %v4105
        %v4107 = vand.u32 %v4106, 4294901760
        %4108 = vmatpush.xpose.msra.mxu0 %v4107
        %v4109 = vand.u32 %v3726, 4294901760
        %v4110 = vsub.f32 %v3726, %v4109
        %v4111 = vand.u32 %v4110, 4294901760
        %4112 = vmatpush.xpose.msra.mxu0 %v4111
        %v4113 = vand.u32 %v3723, 4294901760
        %v4114 = vsub.f32 %v3723, %v4113
        %v4115 = vand.u32 %v4114, 4294901760
        %4116 = vmatpush.xpose.msra.mxu0 %v4115
        %v4117 = vand.u32 %v3720, 4294901760
        %4118 = vmatmul.f32.gmra.mxu0 %v4117
        %v4119 = vpop.f32.mrf.mxu0
        %v4120 = vadd.f32 %v4051, %v4119
        %4121 = vdwg.mxu0
        %v4122 = vand.u32 %v3768, 4294901760
        %4123 = vmatpush.xpose.msra.mxu0 %v4122
        %v4124 = vand.u32 %v3765, 4294901760
        %4125 = vmatpush.xpose.msra.mxu0 %v4124
        %v4126 = vand.u32 %v3762, 4294901760
        %4127 = vmatpush.xpose.msra.mxu0 %v4126
        %v4128 = vand.u32 %v3759, 4294901760
        %4129 = vmatpush.xpose.msra.mxu0 %v4128
        %v4130 = vand.u32 %v3756, 4294901760
        %4131 = vmatpush.xpose.msra.mxu0 %v4130
        %v4132 = vand.u32 %v3753, 4294901760
        %4133 = vmatpush.xpose.msra.mxu0 %v4132
        %v4134 = vand.u32 %v3750, 4294901760
        %4135 = vmatpush.xpose.msra.mxu0 %v4134
        %v4136 = vand.u32 %v3747, 4294901760
        %4137 = vmatpush.xpose.msra.mxu0 %v4136
        %v4138 = vand.u32 %v3744, 4294901760
        %4139 = vmatpush.xpose.msra.mxu0 %v4138
        %v4140 = vand.u32 %v3741, 4294901760
        %4141 = vmatpush.xpose.msra.mxu0 %v4140
        %v4142 = vand.u32 %v3738, 4294901760
        %4143 = vmatpush.xpose.msra.mxu0 %v4142
        %v4144 = vand.u32 %v3735, 4294901760
        %4145 = vmatpush.xpose.msra.mxu0 %v4144
        %v4146 = vand.u32 %v3732, 4294901760
        %4147 = vmatpush.xpose.msra.mxu0 %v4146
        %v4148 = vand.u32 %v3729, 4294901760
        %4149 = vmatpush.xpose.msra.mxu0 %v4148
        %v4150 = vand.u32 %v3726, 4294901760
        %4151 = vmatpush.xpose.msra.mxu0 %v4150
        %v4152 = vand.u32 %v3723, 4294901760
        %4153 = vmatpush.xpose.msra.mxu0 %v4152
        %v4154 = vand.u32 %v3720, 4294901760
        %4155 = vmatmul.f32.gmra.mxu0 %v4154
        %v4156 = vpop.f32.mrf.mxu0
        %v4157 = vadd.f32 %v4120, %v4156
        %4158 = vdwg.mxu0
        %v4159 = vand.u32 %v3816, 4294901760
        %4160 = vmatpush.xpose.msra.mxu0 %v4159
        %v4161 = vand.u32 %v3813, 4294901760
        %4162 = vmatpush.xpose.msra.mxu0 %v4161
        %v4163 = vand.u32 %v3810, 4294901760
        %4164 = vmatpush.xpose.msra.mxu0 %v4163
        %v4165 = vand.u32 %v3807, 4294901760
        %4166 = vmatpush.xpose.msra.mxu0 %v4165
        %v4167 = vand.u32 %v3804, 4294901760
        %4168 = vmatpush.xpose.msra.mxu0 %v4167
        %v4169 = vand.u32 %v3801, 4294901760
        %4170 = vmatpush.xpose.msra.mxu0 %v4169
        %v4171 = vand.u32 %v3798, 4294901760
        %4172 = vmatpush.xpose.msra.mxu0 %v4171
        %v4173 = vand.u32 %v3795, 4294901760
        %4174 = vmatpush.xpose.msra.mxu0 %v4173
        %v4175 = vand.u32 %v3792, 4294901760
        %4176 = vmatpush.xpose.msra.mxu0 %v4175
        %v4177 = vand.u32 %v3789, 4294901760
        %4178 = vmatpush.xpose.msra.mxu0 %v4177
        %v4179 = vand.u32 %v3786, 4294901760
        %4180 = vmatpush.xpose.msra.mxu0 %v4179
        %v4181 = vand.u32 %v3783, 4294901760
        %4182 = vmatpush.xpose.msra.mxu0 %v4181
        %v4183 = vand.u32 %v3780, 4294901760
        %4184 = vmatpush.xpose.msra.mxu0 %v4183
        %v4185 = vand.u32 %v3777, 4294901760
        %4186 = vmatpush.xpose.msra.mxu0 %v4185
        %v4187 = vand.u32 %v3774, 4294901760
        %4188 = vmatpush.xpose.msra.mxu0 %v4187
        %v4189 = vand.u32 %v3771, 4294901760
        %4190 = vmatpush.xpose.msra.mxu0 %v4189
        %v4191 = vand.u32 %v3720, 4294901760
        %v4192 = vsub.f32 %v3720, %v4191
        %v4193 = vand.u32 %v4192, 4294901760
        %v4194 = vsub.f32 %v4192, %v4193
        %v4195 = vand.u32 %v4194, 4294901760
        %4196 = vmatmul.f32.gmra.mxu0 %v4195
        %v4197 = vpop.f32.mrf.mxu0
        %v4198 = vadd.f32 0.0, %v4197
        %4199 = vdwg.mxu0
        %v4200 = vand.u32 %v3816, 4294901760
        %v4201 = vsub.f32 %v3816, %v4200
        %v4202 = vand.u32 %v4201, 4294901760
        %v4203 = vsub.f32 %v4201, %v4202
        %v4204 = vand.u32 %v4203, 4294901760
        %4205 = vmatpush.xpose.msra.mxu0 %v4204
        %v4206 = vand.u32 %v3813, 4294901760
        %v4207 = vsub.f32 %v3813, %v4206
        %v4208 = vand.u32 %v4207, 4294901760
        %v4209 = vsub.f32 %v4207, %v4208
        %v4210 = vand.u32 %v4209, 4294901760
        %4211 = vmatpush.xpose.msra.mxu0 %v4210
        %v4212 = vand.u32 %v3810, 4294901760
        %v4213 = vsub.f32 %v3810, %v4212
        %v4214 = vand.u32 %v4213, 4294901760
        %v4215 = vsub.f32 %v4213, %v4214
        %v4216 = vand.u32 %v4215, 4294901760
        %4217 = vmatpush.xpose.msra.mxu0 %v4216
        %v4218 = vand.u32 %v3807, 4294901760
        %v4219 = vsub.f32 %v3807, %v4218
        %v4220 = vand.u32 %v4219, 4294901760
        %v4221 = vsub.f32 %v4219, %v4220
        %v4222 = vand.u32 %v4221, 4294901760
        %4223 = vmatpush.xpose.msra.mxu0 %v4222
        %v4224 = vand.u32 %v3804, 4294901760
        %v4225 = vsub.f32 %v3804, %v4224
        %v4226 = vand.u32 %v4225, 4294901760
        %v4227 = vsub.f32 %v4225, %v4226
        %v4228 = vand.u32 %v4227, 4294901760
        %4229 = vmatpush.xpose.msra.mxu0 %v4228
        %v4230 = vand.u32 %v3801, 4294901760
        %v4231 = vsub.f32 %v3801, %v4230
        %v4232 = vand.u32 %v4231, 4294901760
        %v4233 = vsub.f32 %v4231, %v4232
        %v4234 = vand.u32 %v4233, 4294901760
        %4235 = vmatpush.xpose.msra.mxu0 %v4234
        %v4236 = vand.u32 %v3798, 4294901760
        %v4237 = vsub.f32 %v3798, %v4236
        %v4238 = vand.u32 %v4237, 4294901760
        %v4239 = vsub.f32 %v4237, %v4238
        %v4240 = vand.u32 %v4239, 4294901760
        %4241 = vmatpush.xpose.msra.mxu0 %v4240
        %v4242 = vand.u32 %v3795, 4294901760
        %v4243 = vsub.f32 %v3795, %v4242
        %v4244 = vand.u32 %v4243, 4294901760
        %v4245 = vsub.f32 %v4243, %v4244
        %v4246 = vand.u32 %v4245, 4294901760
        %4247 = vmatpush.xpose.msra.mxu0 %v4246
        %v4248 = vand.u32 %v3792, 4294901760
        %v4249 = vsub.f32 %v3792, %v4248
        %v4250 = vand.u32 %v4249, 4294901760
        %v4251 = vsub.f32 %v4249, %v4250
        %v4252 = vand.u32 %v4251, 4294901760
        %4253 = vmatpush.xpose.msra.mxu0 %v4252
        %v4254 = vand.u32 %v3789, 4294901760
        %v4255 = vsub.f32 %v3789, %v4254
        %v4256 = vand.u32 %v4255, 4294901760
        %v4257 = vsub.f32 %v4255, %v4256
        %v4258 = vand.u32 %v4257, 4294901760
        %4259 = vmatpush.xpose.msra.mxu0 %v4258
        %v4260 = vand.u32 %v3786, 4294901760
        %v4261 = vsub.f32 %v3786, %v4260
        %v4262 = vand.u32 %v4261, 4294901760
        %v4263 = vsub.f32 %v4261, %v4262
        %v4264 = vand.u32 %v4263, 4294901760
        %4265 = vmatpush.xpose.msra.mxu0 %v4264
        %v4266 = vand.u32 %v3783, 4294901760
        %v4267 = vsub.f32 %v3783, %v4266
        %v4268 = vand.u32 %v4267, 4294901760
        %v4269 = vsub.f32 %v4267, %v4268
        %v4270 = vand.u32 %v4269, 4294901760
        %4271 = vmatpush.xpose.msra.mxu0 %v4270
        %v4272 = vand.u32 %v3780, 4294901760
        %v4273 = vsub.f32 %v3780, %v4272
        %v4274 = vand.u32 %v4273, 4294901760
        %v4275 = vsub.f32 %v4273, %v4274
        %v4276 = vand.u32 %v4275, 4294901760
        %4277 = vmatpush.xpose.msra.mxu0 %v4276
        %v4278 = vand.u32 %v3777, 4294901760
        %v4279 = vsub.f32 %v3777, %v4278
        %v4280 = vand.u32 %v4279, 4294901760
        %v4281 = vsub.f32 %v4279, %v4280
        %v4282 = vand.u32 %v4281, 4294901760
        %4283 = vmatpush.xpose.msra.mxu0 %v4282
        %v4284 = vand.u32 %v3774, 4294901760
        %v4285 = vsub.f32 %v3774, %v4284
        %v4286 = vand.u32 %v4285, 4294901760
        %v4287 = vsub.f32 %v4285, %v4286
        %v4288 = vand.u32 %v4287, 4294901760
        %4289 = vmatpush.xpose.msra.mxu0 %v4288
        %v4290 = vand.u32 %v3771, 4294901760
        %v4291 = vsub.f32 %v3771, %v4290
        %v4292 = vand.u32 %v4291, 4294901760
        %v4293 = vsub.f32 %v4291, %v4292
        %v4294 = vand.u32 %v4293, 4294901760
        %4295 = vmatpush.xpose.msra.mxu0 %v4294
        %v4296 = vand.u32 %v3720, 4294901760
        %4297 = vmatmul.f32.gmra.mxu0 %v4296
        %v4298 = vpop.f32.mrf.mxu0
        %v4299 = vadd.f32 %v4198, %v4298
        %4300 = vdwg.mxu0
        %v4301 = vand.u32 %v3816, 4294901760
        %v4302 = vsub.f32 %v3816, %v4301
        %4303 = vmatpush.xpose.msra.mxu0 %v4302
        %v4304 = vand.u32 %v3813, 4294901760
        %v4305 = vsub.f32 %v3813, %v4304
        %4306 = vmatpush.xpose.msra.mxu0 %v4305
        %v4307 = vand.u32 %v3810, 4294901760
        %v4308 = vsub.f32 %v3810, %v4307
        %4309 = vmatpush.xpose.msra.mxu0 %v4308
        %v4310 = vand.u32 %v3807, 4294901760
        %v4311 = vsub.f32 %v3807, %v4310
        %4312 = vmatpush.xpose.msra.mxu0 %v4311
        %v4313 = vand.u32 %v3804, 4294901760
        %v4314 = vsub.f32 %v3804, %v4313
        %4315 = vmatpush.xpose.msra.mxu0 %v4314
        %v4316 = vand.u32 %v3801, 4294901760
        %v4317 = vsub.f32 %v3801, %v4316
        %4318 = vmatpush.xpose.msra.mxu0 %v4317
        %v4319 = vand.u32 %v3798, 4294901760
        %v4320 = vsub.f32 %v3798, %v4319
        %4321 = vmatpush.xpose.msra.mxu0 %v4320
        %v4322 = vand.u32 %v3795, 4294901760
        %v4323 = vsub.f32 %v3795, %v4322
        %4324 = vmatpush.xpose.msra.mxu0 %v4323
        %v4325 = vand.u32 %v3792, 4294901760
        %v4326 = vsub.f32 %v3792, %v4325
        %4327 = vmatpush.xpose.msra.mxu0 %v4326
        %v4328 = vand.u32 %v3789, 4294901760
        %v4329 = vsub.f32 %v3789, %v4328
        %4330 = vmatpush.xpose.msra.mxu0 %v4329
        %v4331 = vand.u32 %v3786, 4294901760
        %v4332 = vsub.f32 %v3786, %v4331
        %4333 = vmatpush.xpose.msra.mxu0 %v4332
        %v4334 = vand.u32 %v3783, 4294901760
        %v4335 = vsub.f32 %v3783, %v4334
        %4336 = vmatpush.xpose.msra.mxu0 %v4335
        %v4337 = vand.u32 %v3780, 4294901760
        %v4338 = vsub.f32 %v3780, %v4337
        %4339 = vmatpush.xpose.msra.mxu0 %v4338
        %v4340 = vand.u32 %v3777, 4294901760
        %v4341 = vsub.f32 %v3777, %v4340
        %4342 = vmatpush.xpose.msra.mxu0 %v4341
        %v4343 = vand.u32 %v3774, 4294901760
        %v4344 = vsub.f32 %v3774, %v4343
        %4345 = vmatpush.xpose.msra.mxu0 %v4344
        %v4346 = vand.u32 %v3771, 4294901760
        %v4347 = vsub.f32 %v3771, %v4346
        %4348 = vmatpush.xpose.msra.mxu0 %v4347
        %v4349 = vand.u32 %v3720, 4294901760
        %v4350 = vsub.f32 %v3720, %v4349
        %4351 = vmatmul.f32.gmra.mxu0 %v4350
        %v4352 = vpop.f32.mrf.mxu0
        %v4353 = vadd.f32 %v4299, %v4352
        %4354 = vdwg.mxu0
        %v4355 = vand.u32 %v3816, 4294901760
        %4356 = vmatpush.xpose.msra.mxu0 %v4355
        %v4357 = vand.u32 %v3813, 4294901760
        %4358 = vmatpush.xpose.msra.mxu0 %v4357
        %v4359 = vand.u32 %v3810, 4294901760
        %4360 = vmatpush.xpose.msra.mxu0 %v4359
        %v4361 = vand.u32 %v3807, 4294901760
        %4362 = vmatpush.xpose.msra.mxu0 %v4361
        %v4363 = vand.u32 %v3804, 4294901760
        %4364 = vmatpush.xpose.msra.mxu0 %v4363
        %v4365 = vand.u32 %v3801, 4294901760
        %4366 = vmatpush.xpose.msra.mxu0 %v4365
        %v4367 = vand.u32 %v3798, 4294901760
        %4368 = vmatpush.xpose.msra.mxu0 %v4367
        %v4369 = vand.u32 %v3795, 4294901760
        %4370 = vmatpush.xpose.msra.mxu0 %v4369
        %v4371 = vand.u32 %v3792, 4294901760
        %4372 = vmatpush.xpose.msra.mxu0 %v4371
        %v4373 = vand.u32 %v3789, 4294901760
        %4374 = vmatpush.xpose.msra.mxu0 %v4373
        %v4375 = vand.u32 %v3786, 4294901760
        %4376 = vmatpush.xpose.msra.mxu0 %v4375
        %v4377 = vand.u32 %v3783, 4294901760
        %4378 = vmatpush.xpose.msra.mxu0 %v4377
        %v4379 = vand.u32 %v3780, 4294901760
        %4380 = vmatpush.xpose.msra.mxu0 %v4379
        %v4381 = vand.u32 %v3777, 4294901760
        %4382 = vmatpush.xpose.msra.mxu0 %v4381
        %v4383 = vand.u32 %v3774, 4294901760
        %4384 = vmatpush.xpose.msra.mxu0 %v4383
        %v4385 = vand.u32 %v3771, 4294901760
        %4386 = vmatpush.xpose.msra.mxu0 %v4385
        %v4387 = vand.u32 %v3720, 4294901760
        %v4388 = vsub.f32 %v3720, %v4387
        %v4389 = vand.u32 %v4388, 4294901760
        %4390 = vmatmul.f32.gmra.mxu0 %v4389
        %v4391 = vpop.f32.mrf.mxu0
        %v4392 = vadd.f32 %v4353, %v4391
        %4393 = vdwg.mxu0
        %v4394 = vand.u32 %v3816, 4294901760
        %v4395 = vsub.f32 %v3816, %v4394
        %v4396 = vand.u32 %v4395, 4294901760
        %4397 = vmatpush.xpose.msra.mxu0 %v4396
        %v4398 = vand.u32 %v3813, 4294901760
        %v4399 = vsub.f32 %v3813, %v4398
        %v4400 = vand.u32 %v4399, 4294901760
        %4401 = vmatpush.xpose.msra.mxu0 %v4400
        %v4402 = vand.u32 %v3810, 4294901760
        %v4403 = vsub.f32 %v3810, %v4402
        %v4404 = vand.u32 %v4403, 4294901760
        %4405 = vmatpush.xpose.msra.mxu0 %v4404
        %v4406 = vand.u32 %v3807, 4294901760
        %v4407 = vsub.f32 %v3807, %v4406
        %v4408 = vand.u32 %v4407, 4294901760
        %4409 = vmatpush.xpose.msra.mxu0 %v4408
        %v4410 = vand.u32 %v3804, 4294901760
        %v4411 = vsub.f32 %v3804, %v4410
        %v4412 = vand.u32 %v4411, 4294901760
        %4413 = vmatpush.xpose.msra.mxu0 %v4412
        %v4414 = vand.u32 %v3801, 4294901760
        %v4415 = vsub.f32 %v3801, %v4414
        %v4416 = vand.u32 %v4415, 4294901760
        %4417 = vmatpush.xpose.msra.mxu0 %v4416
        %v4418 = vand.u32 %v3798, 4294901760
        %v4419 = vsub.f32 %v3798, %v4418
        %v4420 = vand.u32 %v4419, 4294901760
        %4421 = vmatpush.xpose.msra.mxu0 %v4420
        %v4422 = vand.u32 %v3795, 4294901760
        %v4423 = vsub.f32 %v3795, %v4422
        %v4424 = vand.u32 %v4423, 4294901760
        %4425 = vmatpush.xpose.msra.mxu0 %v4424
        %v4426 = vand.u32 %v3792, 4294901760
        %v4427 = vsub.f32 %v3792, %v4426
        %v4428 = vand.u32 %v4427, 4294901760
        %4429 = vmatpush.xpose.msra.mxu0 %v4428
        %v4430 = vand.u32 %v3789, 4294901760
        %v4431 = vsub.f32 %v3789, %v4430
        %v4432 = vand.u32 %v4431, 4294901760
        %4433 = vmatpush.xpose.msra.mxu0 %v4432
        %v4434 = vand.u32 %v3786, 4294901760
        %v4435 = vsub.f32 %v3786, %v4434
        %v4436 = vand.u32 %v4435, 4294901760
        %4437 = vmatpush.xpose.msra.mxu0 %v4436
        %v4438 = vand.u32 %v3783, 4294901760
        %v4439 = vsub.f32 %v3783, %v4438
        %v4440 = vand.u32 %v4439, 4294901760
        %4441 = vmatpush.xpose.msra.mxu0 %v4440
        %v4442 = vand.u32 %v3780, 4294901760
        %v4443 = vsub.f32 %v3780, %v4442
        %v4444 = vand.u32 %v4443, 4294901760
        %4445 = vmatpush.xpose.msra.mxu0 %v4444
        %v4446 = vand.u32 %v3777, 4294901760
        %v4447 = vsub.f32 %v3777, %v4446
        %v4448 = vand.u32 %v4447, 4294901760
        %4449 = vmatpush.xpose.msra.mxu0 %v4448
        %v4450 = vand.u32 %v3774, 4294901760
        %v4451 = vsub.f32 %v3774, %v4450
        %v4452 = vand.u32 %v4451, 4294901760
        %4453 = vmatpush.xpose.msra.mxu0 %v4452
        %v4454 = vand.u32 %v3771, 4294901760
        %v4455 = vsub.f32 %v3771, %v4454
        %v4456 = vand.u32 %v4455, 4294901760
        %4457 = vmatpush.xpose.msra.mxu0 %v4456
        %v4458 = vand.u32 %v3720, 4294901760
        %4459 = vmatmul.f32.gmra.mxu0 %v4458
        %v4460 = vpop.f32.mrf.mxu0
        %v4461 = vadd.f32 %v4392, %v4460
        %4462 = vdwg.mxu0
        %v4463 = vand.u32 %v3816, 4294901760
        %4464 = vmatpush.xpose.msra.mxu0 %v4463
        %v4465 = vand.u32 %v3813, 4294901760
        %4466 = vmatpush.xpose.msra.mxu0 %v4465
        %v4467 = vand.u32 %v3810, 4294901760
        %4468 = vmatpush.xpose.msra.mxu0 %v4467
        %v4469 = vand.u32 %v3807, 4294901760
        %4470 = vmatpush.xpose.msra.mxu0 %v4469
        %v4471 = vand.u32 %v3804, 4294901760
        %4472 = vmatpush.xpose.msra.mxu0 %v4471
        %v4473 = vand.u32 %v3801, 4294901760
        %4474 = vmatpush.xpose.msra.mxu0 %v4473
        %v4475 = vand.u32 %v3798, 4294901760
        %4476 = vmatpush.xpose.msra.mxu0 %v4475
        %v4477 = vand.u32 %v3795, 4294901760
        %4478 = vmatpush.xpose.msra.mxu0 %v4477
        %v4479 = vand.u32 %v3792, 4294901760
        %4480 = vmatpush.xpose.msra.mxu0 %v4479
        %v4481 = vand.u32 %v3789, 4294901760
        %4482 = vmatpush.xpose.msra.mxu0 %v4481
        %v4483 = vand.u32 %v3786, 4294901760
        %4484 = vmatpush.xpose.msra.mxu0 %v4483
        %v4485 = vand.u32 %v3783, 4294901760
        %4486 = vmatpush.xpose.msra.mxu0 %v4485
        %v4487 = vand.u32 %v3780, 4294901760
        %4488 = vmatpush.xpose.msra.mxu0 %v4487
        %v4489 = vand.u32 %v3777, 4294901760
        %4490 = vmatpush.xpose.msra.mxu0 %v4489
        %v4491 = vand.u32 %v3774, 4294901760
        %4492 = vmatpush.xpose.msra.mxu0 %v4491
        %v4493 = vand.u32 %v3771, 4294901760
        %4494 = vmatpush.xpose.msra.mxu0 %v4493
        %v4495 = vand.u32 %v3720, 4294901760
        %4496 = vmatmul.f32.gmra.mxu0 %v4495
        %v4497 = vpop.f32.mrf.mxu0
        %v4498 = vadd.f32 %v4461, %v4497
        %4499 = vdwg.mxu0
        %v4500 = vmul.f32 %v3376, %v4157
        %v4501 = vmul.f32 %v3717, %v4498
        %v4504 = vrot.slane %v4501, 7
        %vm4505 = vcmask 1040384
        %v4506 = vsel %vm4505, %v4500, %v4504
        %v4507 = vsel %vm470, %v4500, %v4504
        %v4508 = vrot.slane %v4507, 1
        %v4509 = vperm.slane %v4506, 0
        %v4510 = vperm.slane %v4506, 1
        %v4511 = vperm.slane %v4508, 0
        %v4512 = vperm.slane %v4508, 1
        %v4517 = vmul.f32 %v310, %v4509
        %v4518 = vmul.f32 %v311, %v4510
        %v4519 = vmul.f32 %v312, %v4509
        %v4520 = vmul.f32 %v313, %v4510
        %v4521 = vmul.f32 %v314, %v4509
        %v4522 = vmul.f32 %v315, %v4510
        %v4523 = vmul.f32 %v316, %v4509
        %v4524 = vmul.f32 %v317, %v4510
        %v4525 = vmul.f32 %v318, %v4511
        %v4526 = vmul.f32 %v319, %v4512
        %v4527 = vmul.f32 %v320, %v4511
        %v4528 = vmul.f32 %v321, %v4512
        %v4529 = vmul.f32 %v322, %v4511
        %v4530 = vmul.f32 %v323, %v4512
        %v4531 = vmul.f32 %v324, %v4511
        %v4532 = vmul.f32 %v325, %v4512
        %v4533 = vperm.slane %v2937, 0
        %v4534 = vlaneseq
        %v4535 = vshrl.u32 %v4534, 7
        %4537 = vset.pattern.permute.xlu0 %v4535
        %4538 = vperm.xlu0 %4537, %v4533
        %v4539 = vpop.permute.xlu0 %4538
        %v4540 = vlaneseq
        %v4541 = vshrl.u32 %v4540, 7
        %v4542 = vadd.s32 %v4541, 8
        %4543 = vset.pattern.permute.xlu0 %v4542
        %4544 = vperm.xlu0 %4543, %v4533
        %v4545 = vpop.permute.xlu0 %4544
        %v4546 = vlaneseq
        %v4547 = vshrl.u32 %v4546, 7
        %v4548 = vadd.s32 %v4547, 16
        %4549 = vset.pattern.permute.xlu0 %v4548
        %4550 = vperm.xlu0 %4549, %v4533
        %v4551 = vpop.permute.xlu0 %4550
        %v4552 = vlaneseq
        %v4553 = vshrl.u32 %v4552, 7
        %v4554 = vadd.s32 %v4553, 24
        %4555 = vset.pattern.permute.xlu0 %v4554
        %4556 = vperm.xlu0 %4555, %v4533
        %v4557 = vpop.permute.xlu0 %4556
        %v4558 = vperm.slane %v2937, 1
        %v4559 = vlaneseq
        %v4560 = vshrl.u32 %v4559, 7
        %4562 = vset.pattern.permute.xlu0 %v4560
        %4563 = vperm.xlu0 %4562, %v4558
        %v4564 = vpop.permute.xlu0 %4563
        %v4565 = vlaneseq
        %v4566 = vshrl.u32 %v4565, 7
        %v4567 = vadd.s32 %v4566, 8
        %4568 = vset.pattern.permute.xlu0 %v4567
        %4569 = vperm.xlu0 %4568, %v4558
        %v4570 = vpop.permute.xlu0 %4569
        %v4571 = vlaneseq
        %v4572 = vshrl.u32 %v4571, 7
        %v4573 = vadd.s32 %v4572, 16
        %4574 = vset.pattern.permute.xlu0 %v4573
        %4575 = vperm.xlu0 %4574, %v4558
        %v4576 = vpop.permute.xlu0 %4575
        %v4577 = vlaneseq
        %v4578 = vshrl.u32 %v4577, 7
        %v4579 = vadd.s32 %v4578, 24
        %4580 = vset.pattern.permute.xlu0 %v4579
        %4581 = vperm.xlu0 %4580, %v4558
        %v4582 = vpop.permute.xlu0 %4581
        %v4583 = vmul.f32 %v4517, %v4539
        %v4584 = vmul.f32 %v4518, %v4539
        %v4585 = vmul.f32 %v4519, %v4545
        %v4586 = vmul.f32 %v4520, %v4545
        %v4587 = vmul.f32 %v4521, %v4551
        %v4588 = vmul.f32 %v4522, %v4551
        %v4589 = vmul.f32 %v4523, %v4557
        %v4590 = vmul.f32 %v4524, %v4557
        %v4591 = vmul.f32 %v4525, %v4564
        %v4592 = vmul.f32 %v4526, %v4564
        %v4593 = vmul.f32 %v4527, %v4570
        %v4594 = vmul.f32 %v4528, %v4570
        %v4595 = vmul.f32 %v4529, %v4576
        %v4596 = vmul.f32 %v4530, %v4576
        %v4597 = vmul.f32 %v4531, %v4582
        %v4598 = vmul.f32 %v4532, %v4582
        %4599 = vst [vmem:[%s301] sm:$0xff] %v4583
        %4600 = vst [vmem:[%s301 + $0x8] sm:$0xff] %v4584
        %4601 = vst [vmem:[%s301 + $0x10] sm:$0xff] %v4585
        %4602 = vst [vmem:[%s301 + $0x18] sm:$0xff] %v4586
        %4603 = vst [vmem:[%s301 + $0x20] sm:$0xff] %v4587
        %4604 = vst [vmem:[%s301 + $0x28] sm:$0xff] %v4588
        %4605 = vst [vmem:[%s301 + $0x30] sm:$0xff] %v4589
        %4606 = vst [vmem:[%s301 + $0x38] sm:$0xff] %v4590
        %4607 = vst [vmem:[%s301 + $0x40] sm:$0xff] %v4591
        %4608 = vst [vmem:[%s301 + $0x48] sm:$0xff] %v4592
        %4609 = vst [vmem:[%s301 + $0x50] sm:$0xff] %v4593
        %4610 = vst [vmem:[%s301 + $0x58] sm:$0xff] %v4594
        %4611 = vst [vmem:[%s301 + $0x60] sm:$0xff] %v4595
        %4612 = vst [vmem:[%s301 + $0x68] sm:$0xff] %v4596
        %4613 = vst [vmem:[%s301 + $0x70] sm:$0xff] %v4597
        %4614 = vst [vmem:[%s301 + $0x78] sm:$0xff] %v4598
        %s4615 = sand.u32 %s203, 1
        %s4616 = scalar_lea.sflag [#allocation3], %s4615
        %s4617 = sand.u32 %s203, 1
        %s4618 = smul.addr %s4617, 128
        %s4619 = scalar_lea.vmem [#allocation2], %s4618
        // Predicated region
        $region53: #{tpu_custom_call.1} parent=51 // pred_check
          %p4620 = pneg %p213
        $region54: #{tpu_custom_call.1} parent=51 // pred_check_branch
          %4622 = sbr.rel (%p4620) target = $region56
        $region55: #{tpu_custom_call.1} parent=51 // pred_region
          %s4623 = smul.u32 2, %s22
          %4625 = vsyncadd %s4616, 0
          %s4626 = smul.addr %s4623, 8
          %s4627 = smul.addr %s4626, 8
          %s4628 = scalar_lea.hbm %s8, %s4627
          %s4629 = sshll.u32 %s4619, 4
          %s4630 = int_to_ptr.vmem [resolvable:$true] %s4629
          %s4631 = sshll.u32 %s4628, 4
          %s4632 = int_to_ptr.hbm [resolvable:$true] %s4631
          %4637 = dma.vmem_to_hbm [thread:$0]  %s4630, 2048, %s4632, %s4616, 256, 256, 16
        $region56: #{tpu_custom_call.1} parent=51 // pred_fallthru
          _
      $region52: #{tpu_custom_call.1} parent=5 // pred_fallthru
        _
      %p4638 = scmp.le.s32.totalorder 2, %s17
      // Predicated region
      $region57: #{tpu_custom_call.1} parent=5 // pred_check
        %p4639 = pneg %p4638
      $region58: #{tpu_custom_call.1} parent=5 // pred_check_branch
        %4641 = sbr.rel (%p4639) target = $region60
      $region59: #{tpu_custom_call.1} parent=5 // pred_region
        %s4642 = ssub.s32 %s17, 2
        // Predicated region
        $region61: #{tpu_custom_call.1} parent=59 // pred_check
          %p4643 = pneg %p219
        $region62: #{tpu_custom_call.1} parent=59 // pred_check_branch
          %4645 = sbr.rel (%p4643) target = $region64
        $region63: #{tpu_custom_call.1} parent=59 // pred_region
          %s4646 = sand.u32 %s204, 1
          %s4647 = scalar_lea.sflag [#allocation3], %s4646
          %s4648 = sand.u32 %s204, 1
          %s4649 = smul.addr %s4648, 128
          %s4650 = scalar_lea.vmem [#allocation2], %s4649
          %4652 = dma.done %s4647, 2048
        $region64: #{tpu_custom_call.1} parent=59 // pred_fallthru
          _
      $region60: #{tpu_custom_call.1} parent=5 // pred_fallthru
        _
    $region6: #{tpu_custom_call.1} parent=1 // loop_footer
      %s21 = sadd.s32 1, %s17
    $region7: #{tpu_custom_call.1} parent=1 // loop_footer_branch
      %16 = sbr.rel target = $region3
    $region8: #{tpu_custom_call.1} parent=1 // loop_exit
      _
    %4653 = vsyncpa [#allocation3], 1
    %s4654 = scalar_lea.sflag [#allocation3], 1
    %4655 = vsyncpa %s4654, 1

</llo_original>
